<compile_context>
chip_gen: v7x
topology: tpu7x:2x2x1
jax: 0.10.0
libtpu: 0.0.40
codegen_flags: <defaults>
</compile_context>

<pallas_src>
import functools

import jax
import jax.numpy as jnp
from jax.experimental import pallas as pl
from jax.experimental.pallas import tpu as pltpu

LANE = 128


# ---------------------------------------------------------------------------
# Spectral norm (tiny power iteration on the (Cout, Cin*kh*kw) matrix — JAX glue)
# ---------------------------------------------------------------------------
def l2normalize(v, eps=1e-12):
    return v / (jnp.linalg.norm(v) + eps)


def spectral_norm_weight(w_bar, u, v, power_iterations=1):
    # TODO(synk): PyTorch's SpectralNorm persists the power-iterated u/v as running
    # buffers; here they are recomputed functionally each call (single forward matches).
    out_dim = w_bar.shape[0]
    w_mat = w_bar.reshape(out_dim, -1)
    for _ in range(power_iterations):
        v = l2normalize(w_mat.T @ u)
        u = l2normalize(w_mat @ v)
    sigma = u @ (w_mat @ v)
    return w_bar / sigma


# ---------------------------------------------------------------------------
# Pallas kernel: fused direct conv (stride 1) + bias + LeakyReLU on one row-band
# ---------------------------------------------------------------------------
def _conv_block_kernel(x_ref, w_ref, b_ref, o_ref, *, kh, kw, wp, m_rows, slope):
    """x_ref: (1, 1, L, Cin)      flattened padded-input band (row-major, L >= (kh-1)*wp + (kw-1) + m_rows)
       w_ref: (kh*kw, Cin, Coutp) spectrally-normalized weight, Cout lane-padded to Coutp
       b_ref: (1, Coutp)          bias (f32)
       o_ref: (1, 1, m_rows, Coutp)
    """
    coutp = w_ref.shape[-1]
    acc = jnp.zeros((m_rows, coutp), jnp.float32)
    for di in range(kh):
        for dj in range(kw):
            # With the M axis flattened as (out_row * wp + out_col) and stride 1, the
            # source window of tap (di, dj) is a single contiguous slice of the band.
            tap = x_ref[0, 0, pl.ds(di * wp + dj, m_rows), :]        # (m_rows, Cin)
            acc = acc + jnp.dot(tap, w_ref[di * kw + dj],
                                preferred_element_type=jnp.float32)
    acc = acc + b_ref[...]                                           # (1, Coutp) broadcast
    acc = jnp.where(acc >= 0.0, acc, slope * acc)                    # LeakyReLU(0.2)
    o_ref[0, 0, :, :] = acc.astype(o_ref.dtype)


def _pick_row_tile(ho, wp, cin, coutp, kh, kw, in_itemsize,
                   target_rows, vmem_budget_bytes):
    """Pick output-row tile so one grid step has ~target_rows flattened positions and
    the double-buffered working set stays under the (v7x-safe) VMEM budget."""
    ho_t = max(1, min(ho, max(1, target_rows // wp)))

    def vmem_bytes(ht):
        band = (ht + kh) * wp * cin * in_itemsize          # one input band
        outb = ht * wp * coutp * 4                         # one output block (f32)
        wgt = kh * kw * cin * coutp * in_itemsize
        acc = ht * wp * coutp * 4
        return 2 * band + 2 * outb + wgt + acc + (1 << 20)  # double-buffered io + slack

    while ho_t > 1 and vmem_bytes(ho_t) > vmem_budget_bytes:
        ho_t = max(1, ho_t // 2)
    return ho_t, vmem_bytes(ho_t)


# ---------------------------------------------------------------------------
# Wrapper: ReflectionPad2d -> SpectralNorm(Conv2d) -> LeakyReLU(0.2)
# ---------------------------------------------------------------------------
def conv2d_block_forward(x, w_bar, bias, u, v, *, stride, padding,
                         power_iterations=1, slope=0.2,
                         compute_dtype=jnp.float32,
                         target_rows_per_tile=1024,
                         vmem_budget_bytes=32 * 1024 * 1024):
    """x: (N, Cin, H, W); w_bar: (Cout, Cin, kh, kw); bias: (Cout,). Returns NCHW output."""
    N, Cin, H, W = x.shape
    Cout, _, kh, kw = w_bar.shape

    # --- ReflectionPad2d (boundary data movement; stays outside the kernel) ---
    if padding > 0:
        x = jnp.pad(x, ((0, 0), (0, 0), (padding, padding), (padding, padding)),
                    mode="reflect")
    Hp, Wp = x.shape[2], x.shape[3]

    # The fused kernel always computes the stride-1 conv; strided conv = subsampled output.
    # TODO(synk): a dedicated strided path would avoid the stride**2 extra compute.
    Ho1 = Hp - kh + 1
    Wo1 = Wp - kw + 1

    # --- NCHW -> NHWC once at the module boundary ---
    xp = jnp.transpose(x, (0, 2, 3, 1))                    # (N, Hp, Wp, Cin)

    # --- SpectralNorm: weight = w_bar / sigma ---
    w = spectral_norm_weight(w_bar, u, v, power_iterations)

    # --- weight / bias in kernel layout, Cout lane-padded to a multiple of 128 ---
    Coutp = ((Cout + LANE - 1) // LANE) * LANE
    w_k = jnp.transpose(w, (2, 3, 1, 0)).reshape(kh * kw, Cin, Cout)        # [tap, ci, co]
    w_k = jnp.pad(w_k, ((0, 0), (0, 0), (0, Coutp - Cout))).astype(compute_dtype)
    b_k = jnp.pad(bias.reshape(1, Cout), ((0, 0), (0, Coutp - Cout))).astype(jnp.float32)

    # --- tile output rows into bands (only a kh-row halo duplicated per band) ---
    ho_t, vmem_est = _pick_row_tile(Ho1, Wp, Cin, Coutp, kh, kw,
                                    jnp.dtype(compute_dtype).itemsize,
                                    target_rows_per_tile, vmem_budget_bytes)
    T = -(-Ho1 // ho_t)                                    # ceil(Ho1 / ho_t)
    Ho_pad = T * ho_t
    bh = ho_t + kh                                         # band rows (incl. one extra halo row)
    Hneed = Ho_pad + kh
    xp = jnp.pad(xp, ((0, 0), (0, Hneed - Hp), (0, 0), (0, 0)))
    if T == 1:
        xb = xp[:, None]                                   # (N, 1, bh, Wp, Cin), no extra copy
    else:
        xb = jnp.stack([xp[:, t * ho_t: t * ho_t + bh] for t in range(T)], axis=1)
    xb = xb.reshape(N, T, bh * Wp, Cin).astype(compute_dtype)   # flatten (row, col): free reshape

    m_rows = ho_t * Wp                                     # flattened (row, widened-col) per tile
    L = bh * Wp

    kernel = functools.partial(_conv_block_kernel, kh=kh, kw=kw, wp=Wp,
                               m_rows=m_rows, slope=slope)
    out = pl.pallas_call(
        kernel,
        out_shape=jax.ShapeDtypeStruct((N, T, m_rows, Coutp), jnp.float32),
        grid_spec=pltpu.PrefetchScalarGridSpec(
            num_scalar_prefetch=0,
            grid=(N, T),
            in_specs=[
                pl.BlockSpec((1, 1, L, Cin), lambda n, t: (n, t, 0, 0)),        # input band
                pl.BlockSpec((kh * kw, Cin, Coutp), lambda n, t: (0, 0, 0)),    # resident weight
                pl.BlockSpec((1, Coutp), lambda n, t: (0, 0)),                  # bias row
            ],
            out_specs=pl.BlockSpec((1, 1, m_rows, Coutp), lambda n, t: (n, t, 0, 0)),
        ),
        compiler_params=pltpu.CompilerParams(
            dimension_semantics=("parallel", "parallel"),
            vmem_limit_bytes=int(min(max(2 * vmem_est, 32 * 1024 * 1024),
                                     max(vmem_budget_bytes, 32 * 1024 * 1024))),
        ),
    )(xb, w_k, b_k)

    # --- un-flatten, drop garbage rows / widened cols / channel pad, back to NCHW ---
    out = out.reshape(N, Ho_pad, Wp, Coutp)[:, :Ho1, :Wo1, :Cout]
    if stride > 1:
        out = out[:, ::stride, ::stride, :]
    out = jnp.transpose(out, (0, 3, 1, 2))
    return out


# ---------------------------------------------------------------------------
# Pure-JAX reference for verification
# ---------------------------------------------------------------------------
def reference_forward(x, w_bar, bias, u, v, *, stride, padding, slope=0.2):
    if padding > 0:
        x = jnp.pad(x, ((0, 0), (0, 0), (padding, padding), (padding, padding)),
                    mode="reflect")
    w = spectral_norm_weight(w_bar, u, v)
    y = jax.lax.conv_general_dilated(
        x, w, window_strides=(stride, stride), padding="VALID",
        dimension_numbers=("NCHW", "OIHW", "NCHW"))
    y = y + bias.reshape(1, -1, 1, 1)
    return jnp.where(y >= 0, y, slope * y)


if __name__ == "__main__":
    # Module config: Conv2dBlock(input_dim=4, output_dim=8, kernel_size=3, stride=1, padding=1)
    N, Cin, H, W = 2, 4, 16, 16
    Cout, ksz, stride, padding = 8, 3, 1, 1

    key = jax.random.PRNGKey(0)
    kx, kw_, kb, ku, kv = jax.random.split(key, 5)

    x = jax.random.normal(kx, (N, Cin, H, W), dtype=jnp.float32)
    w_bar = jax.random.normal(kw_, (Cout, Cin, ksz, ksz), dtype=jnp.float32) * 0.1
    bias = jax.random.normal(kb, (Cout,), dtype=jnp.float32) * 0.1
    # SpectralNorm buffers: normal init then l2-normalized (as in _make_params)
    u = l2normalize(jax.random.normal(ku, (Cout,), dtype=jnp.float32))
    v = l2normalize(jax.random.normal(kv, (Cin * ksz * ksz,), dtype=jnp.float32))

    out = conv2d_block_forward(x, w_bar, bias, u, v, stride=stride, padding=padding)
    out = jax.block_until_ready(out)

    ref = reference_forward(x, w_bar, bias, u, v, stride=stride, padding=padding)
    assert out.shape == (N, Cout, H, W), out.shape
    assert jnp.allclose(out, ref, atol=1e-4, rtol=1e-4), float(jnp.max(jnp.abs(out - ref)))

    print("KERNEL_OK")
</pallas_src>

<mosaic_0001>
module attributes {stable_mosaic.version = 11 : i64} {
  func.func @_conv_block_kernel(%arg0: i32, %arg1: i32, %arg2: memref<1x1x342x4xf32, #tpu.memory_space<vmem>>, %arg3: memref<9x4x128xf32, #tpu.memory_space<vmem>>, %arg4: memref<1x128xf32, #tpu.memory_space<vmem>>, %arg5: memref<1x1x288x128xf32, #tpu.memory_space<vmem>>) attributes {dimension_semantics = [#tpu.dimension_semantics<parallel>, #tpu.dimension_semantics<parallel>], iteration_bounds = array<i64: 2, 1>, scalar_prefetch = 0 : i64, scratch_operands = 0 : i64, tpu.core_type = #tpu.core_type<tc>, window_params = [{transform_indices = @transform_0, window_bounds = array<i64: 1, 1, 342, 4>}, {pipeline_mode = #tpu.pipeline_mode<synchronous>, transform_indices = @transform_1, window_bounds = array<i64: 9, 4, 128>}, {pipeline_mode = #tpu.pipeline_mode<synchronous>, transform_indices = @transform_2, window_bounds = array<i64: 1, 128>}, {transform_indices = @transform_3, window_bounds = array<i64: 1, 1, 288, 128>}]} {
    %cst = arith.constant 0.000000e+00 : f32
    %0 = vector.broadcast %cst : f32 to vector<288x128xf32>
    %c0 = arith.constant 0 : index
    %c0_0 = arith.constant 0 : index
    %c0_1 = arith.constant 0 : index
    %c0_2 = arith.constant 0 : index
    %1 = vector.load %arg2[%c0, %c0_0, %c0_1, %c0_2] : memref<1x1x342x4xf32, #tpu.memory_space<vmem>>, vector<1x1x288x4xf32>
    %2 = vector.shape_cast %1 : vector<1x1x288x4xf32> to vector<288x4xf32>
    %c0_3 = arith.constant 0 : index
    %c0_4 = arith.constant 0 : index
    %c0_5 = arith.constant 0 : index
    %3 = vector.load %arg3[%c0_3, %c0_4, %c0_5] : memref<9x4x128xf32, #tpu.memory_space<vmem>>, vector<1x4x128xf32>
    %4 = vector.shape_cast %3 : vector<1x4x128xf32> to vector<4x128xf32>
    %cst_6 = arith.constant dense<0.000000e+00> : vector<288x128xf32>
    %5 = tpu.matmul %2, %4, %cst_6 {dimension_numbers = #tpu.dot_dimension_numbers<[1], [0], [0], [1], [0, 0, 1, 1], [], []>} : vector<288x4xf32>, vector<4x128xf32>, vector<288x128xf32> -> vector<288x128xf32>
    %6 = arith.addf %0, %5 : vector<288x128xf32>
    %c0_7 = arith.constant 0 : index
    %c0_8 = arith.constant 0 : index
    %c1 = arith.constant 1 : index
    %c0_9 = arith.constant 0 : index
    %7 = vector.load %arg2[%c0_7, %c0_8, %c1, %c0_9] : memref<1x1x342x4xf32, #tpu.memory_space<vmem>>, vector<1x1x288x4xf32>
    %8 = vector.shape_cast %7 : vector<1x1x288x4xf32> to vector<288x4xf32>
    %c1_10 = arith.constant 1 : index
    %c0_11 = arith.constant 0 : index
    %c0_12 = arith.constant 0 : index
    %9 = vector.load %arg3[%c1_10, %c0_11, %c0_12] : memref<9x4x128xf32, #tpu.memory_space<vmem>>, vector<1x4x128xf32>
    %10 = vector.shape_cast %9 : vector<1x4x128xf32> to vector<4x128xf32>
    %cst_13 = arith.constant dense<0.000000e+00> : vector<288x128xf32>
    %11 = tpu.matmul %8, %10, %cst_13 {dimension_numbers = #tpu.dot_dimension_numbers<[1], [0], [0], [1], [0, 0, 1, 1], [], []>} : vector<288x4xf32>, vector<4x128xf32>, vector<288x128xf32> -> vector<288x128xf32>
    %12 = arith.addf %6, %11 : vector<288x128xf32>
    %c0_14 = arith.constant 0 : index
    %c0_15 = arith.constant 0 : index
    %c2 = arith.constant 2 : index
    %c0_16 = arith.constant 0 : index
    %13 = vector.load %arg2[%c0_14, %c0_15, %c2, %c0_16] : memref<1x1x342x4xf32, #tpu.memory_space<vmem>>, vector<1x1x288x4xf32>
    %14 = vector.shape_cast %13 : vector<1x1x288x4xf32> to vector<288x4xf32>
    %c2_17 = arith.constant 2 : index
    %c0_18 = arith.constant 0 : index
    %c0_19 = arith.constant 0 : index
    %15 = vector.load %arg3[%c2_17, %c0_18, %c0_19] : memref<9x4x128xf32, #tpu.memory_space<vmem>>, vector<1x4x128xf32>
    %16 = vector.shape_cast %15 : vector<1x4x128xf32> to vector<4x128xf32>
    %cst_20 = arith.constant dense<0.000000e+00> : vector<288x128xf32>
    %17 = tpu.matmul %14, %16, %cst_20 {dimension_numbers = #tpu.dot_dimension_numbers<[1], [0], [0], [1], [0, 0, 1, 1], [], []>} : vector<288x4xf32>, vector<4x128xf32>, vector<288x128xf32> -> vector<288x128xf32>
    %18 = arith.addf %12, %17 : vector<288x128xf32>
    %c0_21 = arith.constant 0 : index
    %c0_22 = arith.constant 0 : index
    %c18 = arith.constant 18 : index
    %c0_23 = arith.constant 0 : index
    %19 = vector.load %arg2[%c0_21, %c0_22, %c18, %c0_23] : memref<1x1x342x4xf32, #tpu.memory_space<vmem>>, vector<1x1x288x4xf32>
    %20 = vector.shape_cast %19 : vector<1x1x288x4xf32> to vector<288x4xf32>
    %c3 = arith.constant 3 : index
    %c0_24 = arith.constant 0 : index
    %c0_25 = arith.constant 0 : index
    %21 = vector.load %arg3[%c3, %c0_24, %c0_25] : memref<9x4x128xf32, #tpu.memory_space<vmem>>, vector<1x4x128xf32>
    %22 = vector.shape_cast %21 : vector<1x4x128xf32> to vector<4x128xf32>
    %cst_26 = arith.constant dense<0.000000e+00> : vector<288x128xf32>
    %23 = tpu.matmul %20, %22, %cst_26 {dimension_numbers = #tpu.dot_dimension_numbers<[1], [0], [0], [1], [0, 0, 1, 1], [], []>} : vector<288x4xf32>, vector<4x128xf32>, vector<288x128xf32> -> vector<288x128xf32>
    %24 = arith.addf %18, %23 : vector<288x128xf32>
    %c0_27 = arith.constant 0 : index
    %c0_28 = arith.constant 0 : index
    %c19 = arith.constant 19 : index
    %c0_29 = arith.constant 0 : index
    %25 = vector.load %arg2[%c0_27, %c0_28, %c19, %c0_29] : memref<1x1x342x4xf32, #tpu.memory_space<vmem>>, vector<1x1x288x4xf32>
    %26 = vector.shape_cast %25 : vector<1x1x288x4xf32> to vector<288x4xf32>
    %c4 = arith.constant 4 : index
    %c0_30 = arith.constant 0 : index
    %c0_31 = arith.constant 0 : index
    %27 = vector.load %arg3[%c4, %c0_30, %c0_31] : memref<9x4x128xf32, #tpu.memory_space<vmem>>, vector<1x4x128xf32>
    %28 = vector.shape_cast %27 : vector<1x4x128xf32> to vector<4x128xf32>
    %cst_32 = arith.constant dense<0.000000e+00> : vector<288x128xf32>
    %29 = tpu.matmul %26, %28, %cst_32 {dimension_numbers = #tpu.dot_dimension_numbers<[1], [0], [0], [1], [0, 0, 1, 1], [], []>} : vector<288x4xf32>, vector<4x128xf32>, vector<288x128xf32> -> vector<288x128xf32>
    %30 = arith.addf %24, %29 : vector<288x128xf32>
    %c0_33 = arith.constant 0 : index
    %c0_34 = arith.constant 0 : index
    %c20 = arith.constant 20 : index
    %c0_35 = arith.constant 0 : index
    %31 = vector.load %arg2[%c0_33, %c0_34, %c20, %c0_35] : memref<1x1x342x4xf32, #tpu.memory_space<vmem>>, vector<1x1x288x4xf32>
    %32 = vector.shape_cast %31 : vector<1x1x288x4xf32> to vector<288x4xf32>
    %c5 = arith.constant 5 : index
    %c0_36 = arith.constant 0 : index
    %c0_37 = arith.constant 0 : index
    %33 = vector.load %arg3[%c5, %c0_36, %c0_37] : memref<9x4x128xf32, #tpu.memory_space<vmem>>, vector<1x4x128xf32>
    %34 = vector.shape_cast %33 : vector<1x4x128xf32> to vector<4x128xf32>
    %cst_38 = arith.constant dense<0.000000e+00> : vector<288x128xf32>
    %35 = tpu.matmul %32, %34, %cst_38 {dimension_numbers = #tpu.dot_dimension_numbers<[1], [0], [0], [1], [0, 0, 1, 1], [], []>} : vector<288x4xf32>, vector<4x128xf32>, vector<288x128xf32> -> vector<288x128xf32>
    %36 = arith.addf %30, %35 : vector<288x128xf32>
    %c0_39 = arith.constant 0 : index
    %c0_40 = arith.constant 0 : index
    %c36 = arith.constant 36 : index
    %c0_41 = arith.constant 0 : index
    %37 = vector.load %arg2[%c0_39, %c0_40, %c36, %c0_41] : memref<1x1x342x4xf32, #tpu.memory_space<vmem>>, vector<1x1x288x4xf32>
    %38 = vector.shape_cast %37 : vector<1x1x288x4xf32> to vector<288x4xf32>
    %c6 = arith.constant 6 : index
    %c0_42 = arith.constant 0 : index
    %c0_43 = arith.constant 0 : index
    %39 = vector.load %arg3[%c6, %c0_42, %c0_43] : memref<9x4x128xf32, #tpu.memory_space<vmem>>, vector<1x4x128xf32>
    %40 = vector.shape_cast %39 : vector<1x4x128xf32> to vector<4x128xf32>
    %cst_44 = arith.constant dense<0.000000e+00> : vector<288x128xf32>
    %41 = tpu.matmul %38, %40, %cst_44 {dimension_numbers = #tpu.dot_dimension_numbers<[1], [0], [0], [1], [0, 0, 1, 1], [], []>} : vector<288x4xf32>, vector<4x128xf32>, vector<288x128xf32> -> vector<288x128xf32>
    %42 = arith.addf %36, %41 : vector<288x128xf32>
    %c0_45 = arith.constant 0 : index
    %c0_46 = arith.constant 0 : index
    %c37 = arith.constant 37 : index
    %c0_47 = arith.constant 0 : index
    %43 = vector.load %arg2[%c0_45, %c0_46, %c37, %c0_47] : memref<1x1x342x4xf32, #tpu.memory_space<vmem>>, vector<1x1x288x4xf32>
    %44 = vector.shape_cast %43 : vector<1x1x288x4xf32> to vector<288x4xf32>
    %c7 = arith.constant 7 : index
    %c0_48 = arith.constant 0 : index
    %c0_49 = arith.constant 0 : index
    %45 = vector.load %arg3[%c7, %c0_48, %c0_49] : memref<9x4x128xf32, #tpu.memory_space<vmem>>, vector<1x4x128xf32>
    %46 = vector.shape_cast %45 : vector<1x4x128xf32> to vector<4x128xf32>
    %cst_50 = arith.constant dense<0.000000e+00> : vector<288x128xf32>
    %47 = tpu.matmul %44, %46, %cst_50 {dimension_numbers = #tpu.dot_dimension_numbers<[1], [0], [0], [1], [0, 0, 1, 1], [], []>} : vector<288x4xf32>, vector<4x128xf32>, vector<288x128xf32> -> vector<288x128xf32>
    %48 = arith.addf %42, %47 : vector<288x128xf32>
    %c0_51 = arith.constant 0 : index
    %c0_52 = arith.constant 0 : index
    %c38 = arith.constant 38 : index
    %c0_53 = arith.constant 0 : index
    %49 = vector.load %arg2[%c0_51, %c0_52, %c38, %c0_53] : memref<1x1x342x4xf32, #tpu.memory_space<vmem>>, vector<1x1x288x4xf32>
    %50 = vector.shape_cast %49 : vector<1x1x288x4xf32> to vector<288x4xf32>
    %c8 = arith.constant 8 : index
    %c0_54 = arith.constant 0 : index
    %c0_55 = arith.constant 0 : index
    %51 = vector.load %arg3[%c8, %c0_54, %c0_55] : memref<9x4x128xf32, #tpu.memory_space<vmem>>, vector<1x4x128xf32>
    %52 = vector.shape_cast %51 : vector<1x4x128xf32> to vector<4x128xf32>
    %cst_56 = arith.constant dense<0.000000e+00> : vector<288x128xf32>
    %53 = tpu.matmul %50, %52, %cst_56 {dimension_numbers = #tpu.dot_dimension_numbers<[1], [0], [0], [1], [0, 0, 1, 1], [], []>} : vector<288x4xf32>, vector<4x128xf32>, vector<288x128xf32> -> vector<288x128xf32>
    %54 = arith.addf %48, %53 : vector<288x128xf32>
    %c0_57 = arith.constant 0 : index
    %c0_58 = arith.constant 0 : index
    %55 = vector.load %arg4[%c0_57, %c0_58] : memref<1x128xf32, #tpu.memory_space<vmem>>, vector<1x128xf32>
    %56 = vector.broadcast %55 : vector<1x128xf32> to vector<288x128xf32>
    %57 = arith.addf %54, %56 : vector<288x128xf32>
    %cst_59 = arith.constant 0.000000e+00 : f32
    %58 = vector.broadcast %cst_59 : f32 to vector<288x128xf32>
    %59 = arith.cmpf oge, %57, %58 : vector<288x128xf32>
    %cst_60 = arith.constant 2.000000e-01 : f32
    %60 = vector.broadcast %cst_60 : f32 to vector<288x128xf32>
    %61 = arith.mulf %60, %57 : vector<288x128xf32>
    %62 = arith.select %59, %57, %61 : vector<288x128xi1>, vector<288x128xf32>
    %c0_61 = arith.constant 0 : index
    %c0_62 = arith.constant 0 : index
    %c0_63 = arith.constant 0 : index
    %c0_64 = arith.constant 0 : index
    %63 = vector.load %arg5[%c0_61, %c0_62, %c0_63, %c0_64] : memref<1x1x288x128xf32, #tpu.memory_space<vmem>>, vector<1x1x288x128xf32>
    %64 = vector.shape_cast %63 : vector<1x1x288x128xf32> to vector<288x128xf32>
    %65 = vector.shape_cast %62 : vector<288x128xf32> to vector<1x1x288x128xf32>
    tpu.vector_store %arg5[%c0_61, %c0_62, %c0_63, %c0_64], %65 {strides = array<i32>} : memref<1x1x288x128xf32, #tpu.memory_space<vmem>>, vector<1x1x288x128xf32>,
    return
  }
  func.func @transform_0(%arg0: i32, %arg1: i32) -> (i32, i32, i32, i32) {
    %c0_i32 = arith.constant 0 : i32
    %c0_i32_0 = arith.constant 0 : i32
    %c0_i32_1 = arith.constant 0 : i32
    return %arg0, %arg1, %c0_i32, %c0_i32_0 : i32, i32, i32, i32
  }
  func.func @transform_1(%arg0: i32, %arg1: i32) -> (i32, i32, i32) {
    %c0_i32 = arith.constant 0 : i32
    %c0_i32_0 = arith.constant 0 : i32
    %c0_i32_1 = arith.constant 0 : i32
    %c0_i32_2 = arith.constant 0 : i32
    return %c0_i32, %c0_i32_0, %c0_i32_1 : i32, i32, i32
  }
  func.func @transform_2(%arg0: i32, %arg1: i32) -> (i32, i32) {
    %c0_i32 = arith.constant 0 : i32
    %c0_i32_0 = arith.constant 0 : i32
    %c0_i32_1 = arith.constant 0 : i32
    return %c0_i32, %c0_i32_0 : i32, i32
  }
  func.func @transform_3(%arg0: i32, %arg1: i32) -> (i32, i32, i32, i32) {
    %c0_i32 = arith.constant 0 : i32
    %c0_i32_0 = arith.constant 0 : i32
    %c0_i32_1 = arith.constant 0 : i32
    return %arg0, %arg1, %c0_i32, %c0_i32_0 : i32, i32, i32, i32
  }
}

</mosaic_0001>

<llo_original>
// kernel: tpu_custom_call.1
$region0: #{tpu_custom_call.1}
  #allocation0 [shape = 'u32[]', space=smem, size = 0x4, offset = 0x4, fixed_abs, tag = 'smem constant byte address 0x4 - core index']
  #allocation1 [shape = 'u32[144,128]{1,0:T(1,128)}', space=vmem, size = 0x12000, scoped, tag = 'internal scratch']
  %s0 = inlined_call_operand.vmem [shape: f32[2,1,342,4], index: 0, kind: input, shape index: {}]
  %s1 = inlined_call_operand.vmem [shape: f32[9,4,128], index: 1, kind: input, shape index: {}]
  %s2 = inlined_call_operand.vmem [shape: f32[1,128], index: 2, kind: input, shape index: {}]
  %s3 = inlined_call_operand.hbm [shape: f32[2,1,288,128], index: 3, kind: output, shape index: {}]
  %s4 = sld [smem:[#allocation0]]
  $region45: #{tpu_custom_call.1} parent=0
    _
  %s6 = ssub.s32 1, %s4
  %s7 = scalar_select 0, %s6, %s4
  $region1: #{tpu_custom_call.1} parent=0
    #allocation2 [shape = 'u8[294912]{0}', space=vmem, size = 0x48000, scoped, tag = 'output window, operand 0']
    #allocation3 [shape = 's32[2]{0}', space=sflag, size = 0x8, scoped, tag = 'scoped memory for tpu_custom_call.1']
    %8 = vsyncpa [#allocation3], 0
    %s9 = scalar_lea.sflag [#allocation3], 1
    %10 = vsyncpa %s9, 0
    loop: start=0, step=1, limit=4
    $region2: #{tpu_custom_call.1} parent=1 // loop_pre_header
      _
    $region3: #{tpu_custom_call.1} parent=1 // loop_header
      %s12 = sphi 0, %s16
      %p13 = scmp.ge.s32.totalorder %s12, 4
      %s19 = sphi 0, %s31
      %s20 = sphi 0, %s27
      %s21 = sphi 0, %s19
      %s22 = sphi 0, %s20
      %s23 = sphi 0, %s21
      %s24 = sphi 0, %s22
      %s36 = sphi 0, %s38
      %s39 = sphi 0, %s36
      %s40 = sphi 0, %s39
      %s56 = sphi 0, %s40
      %s60 = sphi 0, %s60
      %s62 = sphi 0, %s60
      %s63 = sphi 0, %s62
      %s77 = sphi 0, %s63
      %s81 = sphi 0, %s81
      %s83 = sphi 0, %s81
      %s84 = sphi 0, %s83
      %s98 = sphi 0, %s84
      %s106 = sphi 0, %s108
      %s109 = sphi 0, %s106
      %s110 = sphi 0, %s109
      %s126 = sphi 0, %s110
    $region4: #{tpu_custom_call.1} parent=1 // loop_header_branch
      %15 = sbr.rel (%p13) target = $region8
    $region5: #{tpu_custom_call.1} parent=1 // loop_body
      %s17 = ssub.s32 %s12, 1
      %s18 = ssub.s32 %s12, 2
      %s25 = sadd.s32 1, %s20
      %p26 = scmp.ge.s32.totalorder %s25, 1
      %s27 = scalar_select %p26, 0, %s25
      %s28 = sadd.s32 1, %s19
      %s29 = scalar_select %p26, %s28, %s19
      %p30 = scmp.ge.s32.totalorder %s29, 2
      %s31 = scalar_select %p30, 0, %s29
      %s32 = ssub.s32 %s19, %s31
      %s33 = ssub.s32 %s20, %s27
      %s34 = sor.u32 %s32, %s33
      %p35 = scmp.eq.s32.totalorder %s34, 0
      %s37 = sadd.s32 %s36, 1
      %s38 = scalar_select %p35, %s36, %s37
      %p41 = pneg %p35
      %p42 = scmp.eq.s32.totalorder %s12, 1
      %p43 = por %p41, %p42
      %p44 = scmp.ne.s32.totalorder %s36, %s39
      %p45 = scmp.eq.s32.totalorder %s12, 0
      %p46 = por %p44, %p45
      %p47 = scmp.ne.s32.totalorder %s36, %s39
      %p48 = scmp.eq.s32.totalorder %s17, 1
      %p49 = por %p47, %p48
      %p50 = scmp.ne.s32.totalorder %s39, %s40
      %p51 = scmp.eq.s32.totalorder %s17, 0
      %p52 = por %p50, %p51
      %p53 = scmp.ne.s32.totalorder %s39, %s40
      %p54 = scmp.eq.s32.totalorder %s18, 1
      %p55 = por %p53, %p54
      %p57 = scmp.ne.s32.totalorder %s40, %s56
      %p58 = scmp.eq.s32.totalorder %s18, 0
      %p59 = por %p57, %p58
      %s61 = sadd.s32 %s60, 1
      %p64 = scmp.eq.s32.totalorder %s12, 1
      %p65 = scmp.ne.s32.totalorder %s60, %s62
      %p66 = scmp.eq.s32.totalorder %s12, 0
      %p67 = por %p65, %p66
      %p68 = scmp.ne.s32.totalorder %s60, %s62
      %p69 = scmp.eq.s32.totalorder %s17, 1
      %p70 = por %p68, %p69
      %p71 = scmp.ne.s32.totalorder %s62, %s63
      %p72 = scmp.eq.s32.totalorder %s17, 0
      %p73 = por %p71, %p72
      %p74 = scmp.ne.s32.totalorder %s62, %s63
      %p75 = scmp.eq.s32.totalorder %s18, 1
      %p76 = por %p74, %p75
      %p78 = scmp.ne.s32.totalorder %s63, %s77
      %p79 = scmp.eq.s32.totalorder %s18, 0
      %p80 = por %p78, %p79
      %s82 = sadd.s32 %s81, 1
      %p85 = scmp.eq.s32.totalorder %s12, 1
      %p86 = scmp.ne.s32.totalorder %s81, %s83
      %p87 = scmp.eq.s32.totalorder %s12, 0
      %p88 = por %p86, %p87
      %p89 = scmp.ne.s32.totalorder %s81, %s83
      %p90 = scmp.eq.s32.totalorder %s17, 1
      %p91 = por %p89, %p90
      %p92 = scmp.ne.s32.totalorder %s83, %s84
      %p93 = scmp.eq.s32.totalorder %s17, 0
      %p94 = por %p92, %p93
      %p95 = scmp.ne.s32.totalorder %s83, %s84
      %p96 = scmp.eq.s32.totalorder %s18, 1
      %p97 = por %p95, %p96
      %p99 = scmp.ne.s32.totalorder %s84, %s98
      %p100 = scmp.eq.s32.totalorder %s18, 0
      %p101 = por %p99, %p100
      %s102 = ssub.s32 %s19, %s31
      %s103 = ssub.s32 %s20, %s27
      %s104 = sor.u32 %s102, %s103
      %p105 = scmp.eq.s32.totalorder %s104, 0
      %s107 = sadd.s32 %s106, 1
      %s108 = scalar_select %p105, %s106, %s107
      %p111 = pneg %p105
      %p112 = scmp.eq.s32.totalorder %s12, 1
      %p113 = por %p111, %p112
      %p114 = scmp.ne.s32.totalorder %s106, %s109
      %p115 = scmp.eq.s32.totalorder %s12, 0
      %p116 = por %p114, %p115
      %p117 = scmp.ne.s32.totalorder %s106, %s109
      %p118 = scmp.eq.s32.totalorder %s17, 1
      %p119 = por %p117, %p118
      %p120 = scmp.ne.s32.totalorder %s109, %s110
      %p121 = scmp.eq.s32.totalorder %s17, 0
      %p122 = por %p120, %p121
      %p123 = scmp.ne.s32.totalorder %s109, %s110
      %p124 = scmp.eq.s32.totalorder %s18, 1
      %p125 = por %p123, %p124
      %p127 = scmp.ne.s32.totalorder %s110, %s126
      %p128 = scmp.eq.s32.totalorder %s18, 0
      %p129 = por %p127, %p128
      %p130 = scmp.le.s32.totalorder 1, %s12
      %p131 = scmp.lt.s32.totalorder %s12, 3
      %p132 = pnand %p130, %p131
      %p133 = pneg %p132
      // Predicated region
      $region9: #{tpu_custom_call.1} parent=5 // pred_check
        _
      $region10: #{tpu_custom_call.1} parent=5 // pred_check_branch
        %135 = sbr.rel (%p132) target = $region12
      $region11: #{tpu_custom_call.1} parent=5 // pred_region
        %s136 = ssub.s32 %s12, 1
        // Predicated region
        $region13: #{tpu_custom_call.1} parent=11 // pred_check
          %p137 = pneg %p73
        $region14: #{tpu_custom_call.1} parent=11 // pred_check_branch
          %139 = sbr.rel (%p137) target = $region16
        $region15: #{tpu_custom_call.1} parent=11 // pred_region
          _
        $region16: #{tpu_custom_call.1} parent=11 // pred_fallthru
          _
        // Predicated region
        $region17: #{tpu_custom_call.1} parent=11 // pred_check
          %p140 = pneg %p94
        $region18: #{tpu_custom_call.1} parent=11 // pred_check_branch
          %142 = sbr.rel (%p140) target = $region20
        $region19: #{tpu_custom_call.1} parent=11 // pred_region
          _
        $region20: #{tpu_custom_call.1} parent=11 // pred_fallthru
          _
      $region12: #{tpu_custom_call.1} parent=5 // pred_fallthru
        _
      %p143 = scmp.lt.s32.totalorder %s12, 2
      // Predicated region
      $region21: #{tpu_custom_call.1} parent=5 // pred_check
        %p144 = pneg %p143
      $region22: #{tpu_custom_call.1} parent=5 // pred_check_branch
        %146 = sbr.rel (%p144) target = $region24
      $region23: #{tpu_custom_call.1} parent=5 // pred_region
        // Predicated region
        $region25: #{tpu_custom_call.1} parent=23 // pred_check
          %p147 = pneg %p46
        $region26: #{tpu_custom_call.1} parent=23 // pred_check_branch
          %149 = sbr.rel (%p147) target = $region28
        $region27: #{tpu_custom_call.1} parent=23 // pred_region
          %p150 = scmp.lt.s32.totalorder %s19, 1
          %s151 = scalar_select %p150, %s19, 1
          %p152 = scmp.lt.s32.totalorder %s20, 0
          %s153 = scalar_select %p152, %s20, 0
          %s154 = smul.addr %s153, 43
          %s155 = smul.addr %s151, 43
          %s156 = sadd.s32 %s154, %s155
          %s157 = smul.addr %s156, 8
          %s158 = scalar_lea.vmem %s0, %s157
        $region28: #{tpu_custom_call.1} parent=23 // pred_fallthru
          _
      $region24: #{tpu_custom_call.1} parent=5 // pred_fallthru
        _
      %p159 = scmp.le.s32.totalorder 1, %s12
      %p160 = scmp.lt.s32.totalorder %s12, 3
      %p161 = pnand %p159, %p160
      %p162 = pneg %p161
      // Predicated region
      $region29: #{tpu_custom_call.1} parent=5 // pred_check
        _
      $region30: #{tpu_custom_call.1} parent=5 // pred_check_branch
        %164 = sbr.rel (%p161) target = $region32
      $region31: #{tpu_custom_call.1} parent=5 // pred_region
        %s165 = ssub.s32 %s12, 1
        %p166 = scmp.lt.s32.totalorder %s21, 1
        %s167 = scalar_select %p166, %s21, 1
        %p168 = scmp.lt.s32.totalorder %s22, 0
        %s169 = scalar_select %p168, %s22, 0
        %s170 = smul.addr %s169, 43
        %s171 = smul.addr %s167, 43
        %s172 = sadd.s32 %s170, %s171
        %s173 = smul.addr %s172, 8
        %s174 = scalar_lea.vmem %s0, %s173
        %p175 = pneg %p52
        %p176 = pneg %p49
        %p177 = pneg %p73
        %p178 = pneg %p70
        %p179 = pneg %p94
        %p180 = pneg %p91
        %p181 = pneg %p122
        %p182 = pneg %p119
        %s183 = sand.u32 %s109, 1
        %s184 = scalar_lea.sflag [#allocation3], %s183
        %s185 = sand.u32 %s109, 1
        %s186 = smul.addr %s185, 288
        %s187 = scalar_lea.vmem [#allocation2], %s186
        %p188 = scmp.lt.s32.totalorder %s21, 1
        %s189 = scalar_select %p188, %s21, 1
        %p190 = scmp.lt.s32.totalorder %s22, 0
        %s191 = scalar_select %p190, %s22, 0
        %s192 = smul.addr %s191, 43
        %s193 = smul.addr %s189, 43
        %s194 = sadd.s32 %s192, %s193
        %s195 = smul.addr %s194, 8
        %s196 = scalar_lea.vmem %s0, %s195
        %v197 = vld [vmem:[%s196] sm:$0xff]
        %v198 = vld [vmem:[%s196 + $0x8] sm:$0xff]
        %v199 = vld [vmem:[%s196 + $0x10] sm:$0xff]
        %v200 = vld [vmem:[%s196 + $0x18] sm:$0xff]
        %v201 = vld [vmem:[%s196 + $0x20] sm:$0xff]
        %v202 = vld [vmem:[%s196 + $0x28] sm:$0xff]
        %v203 = vld [vmem:[%s196 + $0x30] sm:$0xff]
        %v204 = vld [vmem:[%s196 + $0x38] sm:$0xff]
        %v205 = vld [vmem:[%s196 + $0x40] sm:$0xff]
        %v206 = vld [vmem:[%s196 + $0x48] sm:$0xff]
        %v207 = vld [vmem:[%s196 + $0x50] sm:$0xff]
        %v208 = vld [vmem:[%s196 + $0x58] sm:$0xff]
        %v209 = vld [vmem:[%s196 + $0x60] sm:$0xff]
        %v210 = vld [vmem:[%s196 + $0x68] sm:$0xff]
        %v211 = vld [vmem:[%s196 + $0x70] sm:$0xff]
        %v212 = vld [vmem:[%s196 + $0x78] sm:$0xff]
        %v213 = vld [vmem:[%s196 + $0x80] sm:$0xff]
        %v214 = vld [vmem:[%s196 + $0x88] sm:$0xff]
        %v215 = vld [vmem:[%s196 + $0x90] sm:$0xff]
        %v216 = vld [vmem:[%s196 + $0x98] sm:$0xff]
        %v217 = vld [vmem:[%s196 + $0xa0] sm:$0xff]
        %v218 = vld [vmem:[%s196 + $0xa8] sm:$0xff]
        %v219 = vld [vmem:[%s196 + $0xb0] sm:$0xff]
        %v220 = vld [vmem:[%s196 + $0xb8] sm:$0xff]
        %v221 = vld [vmem:[%s196 + $0xc0] sm:$0xff]
        %v222 = vld [vmem:[%s196 + $0xc8] sm:$0xff]
        %v223 = vld [vmem:[%s196 + $0xd0] sm:$0xff]
        %v224 = vld [vmem:[%s196 + $0xd8] sm:$0xff]
        %v225 = vld [vmem:[%s196 + $0xe0] sm:$0xff]
        %v226 = vld [vmem:[%s196 + $0xe8] sm:$0xff]
        %v227 = vld [vmem:[%s196 + $0xf0] sm:$0xff]
        %v228 = vld [vmem:[%s196 + $0xf8] sm:$0xff]
        %v229 = vld [vmem:[%s196 + $0x100] sm:$0xff]
        %v230 = vld [vmem:[%s196 + $0x108] sm:$0xff]
        %v231 = vld [vmem:[%s196 + $0x110] sm:$0xff]
        %v232 = vld [vmem:[%s196 + $0x118] sm:$0xff]
        %v233 = vld [vmem:[%s1] sm:$0xf]
        %v234 = vld [vmem:[%s196 + $0x1] sm:$0xff]
        %v235 = vld [vmem:[%s196 + $0x9] sm:$0xff]
        %v236 = vld [vmem:[%s196 + $0x11] sm:$0xff]
        %v237 = vld [vmem:[%s196 + $0x19] sm:$0xff]
        %v238 = vld [vmem:[%s196 + $0x21] sm:$0xff]
        %v239 = vld [vmem:[%s196 + $0x29] sm:$0xff]
        %v240 = vld [vmem:[%s196 + $0x31] sm:$0xff]
        %v241 = vld [vmem:[%s196 + $0x39] sm:$0xff]
        %v242 = vld [vmem:[%s196 + $0x41] sm:$0xff]
        %v243 = vld [vmem:[%s196 + $0x49] sm:$0xff]
        %v244 = vld [vmem:[%s196 + $0x51] sm:$0xff]
        %v245 = vld [vmem:[%s196 + $0x59] sm:$0xff]
        %v246 = vld [vmem:[%s196 + $0x61] sm:$0xff]
        %v247 = vld [vmem:[%s196 + $0x69] sm:$0xff]
        %v248 = vld [vmem:[%s196 + $0x71] sm:$0xff]
        %v249 = vld [vmem:[%s196 + $0x79] sm:$0xff]
        %v250 = vld [vmem:[%s196 + $0x81] sm:$0xff]
        %v251 = vld [vmem:[%s196 + $0x89] sm:$0xff]
        %v252 = vld [vmem:[%s196 + $0x91] sm:$0xff]
        %v253 = vld [vmem:[%s196 + $0x99] sm:$0xff]
        %v254 = vld [vmem:[%s196 + $0xa1] sm:$0xff]
        %v255 = vld [vmem:[%s196 + $0xa9] sm:$0xff]
        %v256 = vld [vmem:[%s196 + $0xb1] sm:$0xff]
        %v257 = vld [vmem:[%s196 + $0xb9] sm:$0xff]
        %v258 = vld [vmem:[%s196 + $0xc1] sm:$0xff]
        %v259 = vld [vmem:[%s196 + $0xc9] sm:$0xff]
        %v260 = vld [vmem:[%s196 + $0xd1] sm:$0xff]
        %v261 = vld [vmem:[%s196 + $0xd9] sm:$0xff]
        %v262 = vld [vmem:[%s196 + $0xe1] sm:$0xff]
        %v263 = vld [vmem:[%s196 + $0xe9] sm:$0xff]
        %v264 = vld [vmem:[%s196 + $0xf1] sm:$0xff]
        %v265 = vld [vmem:[%s196 + $0xf9] sm:$0xff]
        %v266 = vld [vmem:[%s196 + $0x101] sm:$0xff]
        %v267 = vld [vmem:[%s196 + $0x109] sm:$0xff]
        %v268 = vld [vmem:[%s196 + $0x111] sm:$0xff]
        %v269 = vld [vmem:[%s196 + $0x119] sm:$0xff]
        %s270 = scalar_lea.vmem %s1, 4
        %v271 = vld [vmem:[%s270] sm:$0xf]
        %vm272 = vcmask 31744
        %v274 = vsel %vm272, %v234, 0
        %v277 = vsel %vm272, %v235, 0
        %v280 = vsel %vm272, %v236, 0
        %v283 = vsel %vm272, %v237, 0
        %v286 = vsel %vm272, %v238, 0
        %v289 = vsel %vm272, %v239, 0
        %v292 = vsel %vm272, %v240, 0
        %v295 = vsel %vm272, %v241, 0
        %v298 = vsel %vm272, %v242, 0
        %v301 = vsel %vm272, %v243, 0
        %v304 = vsel %vm272, %v244, 0
        %v307 = vsel %vm272, %v245, 0
        %v310 = vsel %vm272, %v246, 0
        %v313 = vsel %vm272, %v247, 0
        %v316 = vsel %vm272, %v248, 0
        %v319 = vsel %vm272, %v249, 0
        %v322 = vsel %vm272, %v250, 0
        %v325 = vsel %vm272, %v251, 0
        %v328 = vsel %vm272, %v252, 0
        %v331 = vsel %vm272, %v253, 0
        %v334 = vsel %vm272, %v254, 0
        %v337 = vsel %vm272, %v255, 0
        %v340 = vsel %vm272, %v256, 0
        %v343 = vsel %vm272, %v257, 0
        %v346 = vsel %vm272, %v258, 0
        %v349 = vsel %vm272, %v259, 0
        %v352 = vsel %vm272, %v260, 0
        %v355 = vsel %vm272, %v261, 0
        %v358 = vsel %vm272, %v262, 0
        %v361 = vsel %vm272, %v263, 0
        %v364 = vsel %vm272, %v264, 0
        %v367 = vsel %vm272, %v265, 0
        %v370 = vsel %vm272, %v266, 0
        %v373 = vsel %vm272, %v267, 0
        %v376 = vsel %vm272, %v268, 0
        %v379 = vsel %vm272, %v269, 0
        %vm381 = vcmask 1043456
        %v383 = vsel %vm381, %v271, 0
        %385 = vmatprep.subr.mxu0 0.0
        %386 = vmatpush1.msra.mxu0 %v383
        %387 = vmatprep.subr.mxu0 0.0
        %388 = vmatpush1.msra.mxu0 0.0
        %389 = vmatprep.subr.mxu0 0.0
        %390 = vmatpush1.msra.mxu0 0.0
        %391 = vmatprep.subr.mxu0 0.0
        %392 = vmatpush1.msra.mxu0 0.0
        %393 = vmatprep.subr.mxu0 0.0
        %394 = vmatpush1.msra.mxu0 0.0
        %395 = vmatprep.subr.mxu0 0.0
        %396 = vmatpush1.msra.mxu0 0.0
        %397 = vmatprep.subr.mxu0 0.0
        %398 = vmatpush1.msra.mxu0 0.0
        %399 = vmatprep.subr.mxu0 0.0
        %400 = vmatpush1.msra.mxu0 0.0
        %401 = vmatprep.subr.mxu0 0.0
        %402 = vmatpush1.msra.mxu0 0.0
        %403 = vmatprep.subr.mxu0 0.0
        %404 = vmatpush1.msra.mxu0 0.0
        %405 = vmatprep.subr.mxu0 0.0
        %406 = vmatpush1.msra.mxu0 0.0
        %407 = vmatprep.subr.mxu0 0.0
        %408 = vmatpush1.msra.mxu0 0.0
        %409 = vmatprep.subr.mxu0 0.0
        %410 = vmatpush1.msra.mxu0 0.0
        %411 = vmatprep.subr.mxu0 0.0
        %412 = vmatpush1.msra.mxu0 0.0
        %413 = vmatprep.subr.mxu0 0.0
        %414 = vmatpush1.msra.mxu0 0.0
        %415 = vmatprep.subr.mxu0 0.0
        %416 = vmatpush1.msra.mxu0 0.0
        %417 = vmatprep.subr.mxu0 0.0
        %418 = vmatpush1.msra.mxu0 0.0
        %419 = vmatprep.subr.mxu0 0.0
        %420 = vmatpush1.msra.mxu0 0.0
        %421 = vmatprep.subr.mxu0 0.0
        %422 = vmatpush1.msra.mxu0 0.0
        %423 = vmatprep.subr.mxu0 0.0
        %424 = vmatpush1.msra.mxu0 0.0
        %425 = vmatprep.subr.mxu0 0.0
        %426 = vmatpush1.msra.mxu0 0.0
        %427 = vmatprep.subr.mxu0 0.0
        %428 = vmatpush1.msra.mxu0 0.0
        %429 = vmatprep.subr.mxu0 0.0
        %430 = vmatpush1.msra.mxu0 0.0
        %431 = vmatprep.subr.mxu0 0.0
        %432 = vmatpush1.msra.mxu0 0.0
        %433 = vmatprep.subr.mxu0 0.0
        %434 = vmatpush1.msra.mxu0 0.0
        %435 = vmatprep.subr.mxu0 0.0
        %436 = vmatpush1.msra.mxu0 0.0
        %437 = vmatprep.subr.mxu0 0.0
        %438 = vmatpush1.msra.mxu0 0.0
        %439 = vmatprep.subr.mxu0 0.0
        %440 = vmatpush1.msra.mxu0 0.0
        %441 = vmatprep.subr.mxu0 0.0
        %442 = vmatpush1.msra.mxu0 0.0
        %443 = vmatprep.subr.mxu0 0.0
        %444 = vmatpush1.msra.mxu0 0.0
        %445 = vmatprep.subr.mxu0 0.0
        %446 = vmatpush1.msra.mxu0 0.0
        %447 = vmatprep.subr.mxu0 0.0
        %448 = vmatpush1.msra.mxu0 0.0
        %449 = vmatprep.mubr.f32.mxu0 0.0
        %450 = vmatmul.mubr.f32.gmra.mrb[0].mxu0 %v274
        %v451 = vpop.f32.mrb[0].mxu0
        %v452 = vadd.f32 0.0, %v451
        %v453 = vpop.f32.mrb[0].mxu0
        %454 = vmatprep.mubr.f32.mxu0 0.0
        %455 = vmatmul.mubr.f32.gmra.mrb[0].mxu0 %v277
        %v456 = vpop.f32.mrb[0].mxu0
        %v457 = vadd.f32 0.0, %v456
        %v458 = vpop.f32.mrb[0].mxu0
        %459 = vmatprep.mubr.f32.mxu0 0.0
        %460 = vmatmul.mubr.f32.gmra.mrb[0].mxu0 %v280
        %v461 = vpop.f32.mrb[0].mxu0
        %v462 = vadd.f32 0.0, %v461
        %v463 = vpop.f32.mrb[0].mxu0
        %464 = vmatprep.mubr.f32.mxu0 0.0
        %465 = vmatmul.mubr.f32.gmra.mrb[0].mxu0 %v283
        %v466 = vpop.f32.mrb[0].mxu0
        %v467 = vadd.f32 0.0, %v466
        %v468 = vpop.f32.mrb[0].mxu0
        %469 = vmatprep.mubr.f32.mxu0 0.0
        %470 = vmatmul.mubr.f32.gmra.mrb[0].mxu0 %v286
        %v471 = vpop.f32.mrb[0].mxu0
        %v472 = vadd.f32 0.0, %v471
        %v473 = vpop.f32.mrb[0].mxu0
        %474 = vmatprep.mubr.f32.mxu0 0.0
        %475 = vmatmul.mubr.f32.gmra.mrb[0].mxu0 %v289
        %v476 = vpop.f32.mrb[0].mxu0
        %v477 = vadd.f32 0.0, %v476
        %v478 = vpop.f32.mrb[0].mxu0
        %479 = vmatprep.mubr.f32.mxu0 0.0
        %480 = vmatmul.mubr.f32.gmra.mrb[0].mxu0 %v292
        %v481 = vpop.f32.mrb[0].mxu0
        %v482 = vadd.f32 0.0, %v481
        %v483 = vpop.f32.mrb[0].mxu0
        %484 = vmatprep.mubr.f32.mxu0 0.0
        %485 = vmatmul.mubr.f32.gmra.mrb[0].mxu0 %v295
        %v486 = vpop.f32.mrb[0].mxu0
        %v487 = vadd.f32 0.0, %v486
        %v488 = vpop.f32.mrb[0].mxu0
        %489 = vmatprep.mubr.f32.mxu0 0.0
        %490 = vmatmul.mubr.f32.gmra.mrb[0].mxu0 %v298
        %v491 = vpop.f32.mrb[0].mxu0
        %v492 = vadd.f32 0.0, %v491
        %v493 = vpop.f32.mrb[0].mxu0
        %494 = vmatprep.mubr.f32.mxu0 0.0
        %495 = vmatmul.mubr.f32.gmra.mrb[0].mxu0 %v301
        %v496 = vpop.f32.mrb[0].mxu0
        %v497 = vadd.f32 0.0, %v496
        %v498 = vpop.f32.mrb[0].mxu0
        %499 = vmatprep.mubr.f32.mxu0 0.0
        %500 = vmatmul.mubr.f32.gmra.mrb[0].mxu0 %v304
        %v501 = vpop.f32.mrb[0].mxu0
        %v502 = vadd.f32 0.0, %v501
        %v503 = vpop.f32.mrb[0].mxu0
        %504 = vmatprep.mubr.f32.mxu0 0.0
        %505 = vmatmul.mubr.f32.gmra.mrb[0].mxu0 %v307
        %v506 = vpop.f32.mrb[0].mxu0
        %v507 = vadd.f32 0.0, %v506
        %v508 = vpop.f32.mrb[0].mxu0
        %509 = vmatprep.mubr.f32.mxu0 0.0
        %510 = vmatmul.mubr.f32.gmra.mrb[0].mxu0 %v310
        %v511 = vpop.f32.mrb[0].mxu0
        %v512 = vadd.f32 0.0, %v511
        %v513 = vpop.f32.mrb[0].mxu0
        %514 = vmatprep.mubr.f32.mxu0 0.0
        %515 = vmatmul.mubr.f32.gmra.mrb[0].mxu0 %v313
        %v516 = vpop.f32.mrb[0].mxu0
        %v517 = vadd.f32 0.0, %v516
        %v518 = vpop.f32.mrb[0].mxu0
        %519 = vmatprep.mubr.f32.mxu0 0.0
        %520 = vmatmul.mubr.f32.gmra.mrb[0].mxu0 %v316
        %v521 = vpop.f32.mrb[0].mxu0
        %v522 = vadd.f32 0.0, %v521
        %v523 = vpop.f32.mrb[0].mxu0
        %524 = vmatprep.mubr.f32.mxu0 0.0
        %525 = vmatmul.mubr.f32.gmra.mrb[0].mxu0 %v319
        %v526 = vpop.f32.mrb[0].mxu0
        %v527 = vadd.f32 0.0, %v526
        %v528 = vpop.f32.mrb[0].mxu0
        %529 = vmatprep.mubr.f32.mxu0 0.0
        %530 = vmatmul.mubr.f32.gmra.mrb[0].mxu0 %v322
        %v531 = vpop.f32.mrb[0].mxu0
        %v532 = vadd.f32 0.0, %v531
        %v533 = vpop.f32.mrb[0].mxu0
        %534 = vmatprep.mubr.f32.mxu0 0.0
        %535 = vmatmul.mubr.f32.gmra.mrb[0].mxu0 %v325
        %v536 = vpop.f32.mrb[0].mxu0
        %v537 = vadd.f32 0.0, %v536
        %v538 = vpop.f32.mrb[0].mxu0
        %539 = vmatprep.mubr.f32.mxu0 0.0
        %540 = vmatmul.mubr.f32.gmra.mrb[0].mxu0 %v328
        %v541 = vpop.f32.mrb[0].mxu0
        %v542 = vadd.f32 0.0, %v541
        %v543 = vpop.f32.mrb[0].mxu0
        %544 = vmatprep.mubr.f32.mxu0 0.0
        %545 = vmatmul.mubr.f32.gmra.mrb[0].mxu0 %v331
        %v546 = vpop.f32.mrb[0].mxu0
        %v547 = vadd.f32 0.0, %v546
        %v548 = vpop.f32.mrb[0].mxu0
        %549 = vmatprep.mubr.f32.mxu0 0.0
        %550 = vmatmul.mubr.f32.gmra.mrb[0].mxu0 %v334
        %v551 = vpop.f32.mrb[0].mxu0
        %v552 = vadd.f32 0.0, %v551
        %v553 = vpop.f32.mrb[0].mxu0
        %554 = vmatprep.mubr.f32.mxu0 0.0
        %555 = vmatmul.mubr.f32.gmra.mrb[0].mxu0 %v337
        %v556 = vpop.f32.mrb[0].mxu0
        %v557 = vadd.f32 0.0, %v556
        %v558 = vpop.f32.mrb[0].mxu0
        %559 = vmatprep.mubr.f32.mxu0 0.0
        %560 = vmatmul.mubr.f32.gmra.mrb[0].mxu0 %v340
        %v561 = vpop.f32.mrb[0].mxu0
        %v562 = vadd.f32 0.0, %v561
        %v563 = vpop.f32.mrb[0].mxu0
        %564 = vmatprep.mubr.f32.mxu0 0.0
        %565 = vmatmul.mubr.f32.gmra.mrb[0].mxu0 %v343
        %v566 = vpop.f32.mrb[0].mxu0
        %v567 = vadd.f32 0.0, %v566
        %v568 = vpop.f32.mrb[0].mxu0
        %569 = vmatprep.mubr.f32.mxu0 0.0
        %570 = vmatmul.mubr.f32.gmra.mrb[0].mxu0 %v346
        %v571 = vpop.f32.mrb[0].mxu0
        %v572 = vadd.f32 0.0, %v571
        %v573 = vpop.f32.mrb[0].mxu0
        %574 = vmatprep.mubr.f32.mxu0 0.0
        %575 = vmatmul.mubr.f32.gmra.mrb[0].mxu0 %v349
        %v576 = vpop.f32.mrb[0].mxu0
        %v577 = vadd.f32 0.0, %v576
        %v578 = vpop.f32.mrb[0].mxu0
        %579 = vmatprep.mubr.f32.mxu0 0.0
        %580 = vmatmul.mubr.f32.gmra.mrb[0].mxu0 %v352
        %v581 = vpop.f32.mrb[0].mxu0
        %v582 = vadd.f32 0.0, %v581
        %v583 = vpop.f32.mrb[0].mxu0
        %584 = vmatprep.mubr.f32.mxu0 0.0
        %585 = vmatmul.mubr.f32.gmra.mrb[0].mxu0 %v355
        %v586 = vpop.f32.mrb[0].mxu0
        %v587 = vadd.f32 0.0, %v586
        %v588 = vpop.f32.mrb[0].mxu0
        %589 = vmatprep.mubr.f32.mxu0 0.0
        %590 = vmatmul.mubr.f32.gmra.mrb[0].mxu0 %v358
        %v591 = vpop.f32.mrb[0].mxu0
        %v592 = vadd.f32 0.0, %v591
        %v593 = vpop.f32.mrb[0].mxu0
        %594 = vmatprep.mubr.f32.mxu0 0.0
        %595 = vmatmul.mubr.f32.gmra.mrb[0].mxu0 %v361
        %v596 = vpop.f32.mrb[0].mxu0
        %v597 = vadd.f32 0.0, %v596
        %v598 = vpop.f32.mrb[0].mxu0
        %599 = vmatprep.mubr.f32.mxu0 0.0
        %600 = vmatmul.mubr.f32.gmra.mrb[0].mxu0 %v364
        %v601 = vpop.f32.mrb[0].mxu0
        %v602 = vadd.f32 0.0, %v601
        %v603 = vpop.f32.mrb[0].mxu0
        %604 = vmatprep.mubr.f32.mxu0 0.0
        %605 = vmatmul.mubr.f32.gmra.mrb[0].mxu0 %v367
        %v606 = vpop.f32.mrb[0].mxu0
        %v607 = vadd.f32 0.0, %v606
        %v608 = vpop.f32.mrb[0].mxu0
        %609 = vmatprep.mubr.f32.mxu0 0.0
        %610 = vmatmul.mubr.f32.gmra.mrb[0].mxu0 %v370
        %v611 = vpop.f32.mrb[0].mxu0
        %v612 = vadd.f32 0.0, %v611
        %v613 = vpop.f32.mrb[0].mxu0
        %614 = vmatprep.mubr.f32.mxu0 0.0
        %615 = vmatmul.mubr.f32.gmra.mrb[0].mxu0 %v373
        %v616 = vpop.f32.mrb[0].mxu0
        %v617 = vadd.f32 0.0, %v616
        %v618 = vpop.f32.mrb[0].mxu0
        %619 = vmatprep.mubr.f32.mxu0 0.0
        %620 = vmatmul.mubr.f32.gmra.mrb[0].mxu0 %v376
        %v621 = vpop.f32.mrb[0].mxu0
        %v622 = vadd.f32 0.0, %v621
        %v623 = vpop.f32.mrb[0].mxu0
        %624 = vmatprep.mubr.f32.mxu0 0.0
        %625 = vmatmul.mubr.f32.gmra.mrb[0].mxu0 %v379
        %v626 = vpop.f32.mrb[0].mxu0
        %v627 = vadd.f32 0.0, %v626
        %v628 = vpop.f32.mrb[0].mxu0
        %629 = vdwg.mxu0
        %v631 = vsel %vm272, %v197, 0
        %v634 = vsel %vm272, %v198, 0
        %v637 = vsel %vm272, %v199, 0
        %v640 = vsel %vm272, %v200, 0
        %v643 = vsel %vm272, %v201, 0
        %v646 = vsel %vm272, %v202, 0
        %v649 = vsel %vm272, %v203, 0
        %v652 = vsel %vm272, %v204, 0
        %v655 = vsel %vm272, %v205, 0
        %v658 = vsel %vm272, %v206, 0
        %v661 = vsel %vm272, %v207, 0
        %v664 = vsel %vm272, %v208, 0
        %v667 = vsel %vm272, %v209, 0
        %v670 = vsel %vm272, %v210, 0
        %v673 = vsel %vm272, %v211, 0
        %v676 = vsel %vm272, %v212, 0
        %v679 = vsel %vm272, %v213, 0
        %v682 = vsel %vm272, %v214, 0
        %v685 = vsel %vm272, %v215, 0
        %v688 = vsel %vm272, %v216, 0
        %v691 = vsel %vm272, %v217, 0
        %v694 = vsel %vm272, %v218, 0
        %v697 = vsel %vm272, %v219, 0
        %v700 = vsel %vm272, %v220, 0
        %v703 = vsel %vm272, %v221, 0
        %v706 = vsel %vm272, %v222, 0
        %v709 = vsel %vm272, %v223, 0
        %v712 = vsel %vm272, %v224, 0
        %v715 = vsel %vm272, %v225, 0
        %v718 = vsel %vm272, %v226, 0
        %v721 = vsel %vm272, %v227, 0
        %v724 = vsel %vm272, %v228, 0
        %v727 = vsel %vm272, %v229, 0
        %v730 = vsel %vm272, %v230, 0
        %v733 = vsel %vm272, %v231, 0
        %v736 = vsel %vm272, %v232, 0
        %v739 = vsel %vm381, %v233, 0
        %741 = vmatprep.subr.mxu0 0.0
        %742 = vmatpush1.msra.mxu0 %v739
        %743 = vmatprep.subr.mxu0 0.0
        %744 = vmatpush1.msra.mxu0 0.0
        %745 = vmatprep.subr.mxu0 0.0
        %746 = vmatpush1.msra.mxu0 0.0
        %747 = vmatprep.subr.mxu0 0.0
        %748 = vmatpush1.msra.mxu0 0.0
        %749 = vmatprep.subr.mxu0 0.0
        %750 = vmatpush1.msra.mxu0 0.0
        %751 = vmatprep.subr.mxu0 0.0
        %752 = vmatpush1.msra.mxu0 0.0
        %753 = vmatprep.subr.mxu0 0.0
        %754 = vmatpush1.msra.mxu0 0.0
        %755 = vmatprep.subr.mxu0 0.0
        %756 = vmatpush1.msra.mxu0 0.0
        %757 = vmatprep.subr.mxu0 0.0
        %758 = vmatpush1.msra.mxu0 0.0
        %759 = vmatprep.subr.mxu0 0.0
        %760 = vmatpush1.msra.mxu0 0.0
        %761 = vmatprep.subr.mxu0 0.0
        %762 = vmatpush1.msra.mxu0 0.0
        %763 = vmatprep.subr.mxu0 0.0
        %764 = vmatpush1.msra.mxu0 0.0
        %765 = vmatprep.subr.mxu0 0.0
        %766 = vmatpush1.msra.mxu0 0.0
        %767 = vmatprep.subr.mxu0 0.0
        %768 = vmatpush1.msra.mxu0 0.0
        %769 = vmatprep.subr.mxu0 0.0
        %770 = vmatpush1.msra.mxu0 0.0
        %771 = vmatprep.subr.mxu0 0.0
        %772 = vmatpush1.msra.mxu0 0.0
        %773 = vmatprep.subr.mxu0 0.0
        %774 = vmatpush1.msra.mxu0 0.0
        %775 = vmatprep.subr.mxu0 0.0
        %776 = vmatpush1.msra.mxu0 0.0
        %777 = vmatprep.subr.mxu0 0.0
        %778 = vmatpush1.msra.mxu0 0.0
        %779 = vmatprep.subr.mxu0 0.0
        %780 = vmatpush1.msra.mxu0 0.0
        %781 = vmatprep.subr.mxu0 0.0
        %782 = vmatpush1.msra.mxu0 0.0
        %783 = vmatprep.subr.mxu0 0.0
        %784 = vmatpush1.msra.mxu0 0.0
        %785 = vmatprep.subr.mxu0 0.0
        %786 = vmatpush1.msra.mxu0 0.0
        %787 = vmatprep.subr.mxu0 0.0
        %788 = vmatpush1.msra.mxu0 0.0
        %789 = vmatprep.subr.mxu0 0.0
        %790 = vmatpush1.msra.mxu0 0.0
        %791 = vmatprep.subr.mxu0 0.0
        %792 = vmatpush1.msra.mxu0 0.0
        %793 = vmatprep.subr.mxu0 0.0
        %794 = vmatpush1.msra.mxu0 0.0
        %795 = vmatprep.subr.mxu0 0.0
        %796 = vmatpush1.msra.mxu0 0.0
        %797 = vmatprep.subr.mxu0 0.0
        %798 = vmatpush1.msra.mxu0 0.0
        %799 = vmatprep.subr.mxu0 0.0
        %800 = vmatpush1.msra.mxu0 0.0
        %801 = vmatprep.subr.mxu0 0.0
        %802 = vmatpush1.msra.mxu0 0.0
        %803 = vmatprep.subr.mxu0 0.0
        %804 = vmatpush1.msra.mxu0 0.0
        %805 = vmatprep.mubr.f32.mxu0 0.0
        %806 = vmatmul.mubr.f32.gmra.mrb[0].mxu0 %v631
        %v807 = vpop.f32.mrb[0].mxu0
        %v808 = vadd.f32 %v452, %v807
        %v809 = vpop.f32.mrb[0].mxu0
        %810 = vmatprep.mubr.f32.mxu0 0.0
        %811 = vmatmul.mubr.f32.gmra.mrb[0].mxu0 %v634
        %v812 = vpop.f32.mrb[0].mxu0
        %v813 = vadd.f32 %v457, %v812
        %v814 = vpop.f32.mrb[0].mxu0
        %815 = vmatprep.mubr.f32.mxu0 0.0
        %816 = vmatmul.mubr.f32.gmra.mrb[0].mxu0 %v637
        %v817 = vpop.f32.mrb[0].mxu0
        %v818 = vadd.f32 %v462, %v817
        %v819 = vpop.f32.mrb[0].mxu0
        %820 = vmatprep.mubr.f32.mxu0 0.0
        %821 = vmatmul.mubr.f32.gmra.mrb[0].mxu0 %v640
        %v822 = vpop.f32.mrb[0].mxu0
        %v823 = vadd.f32 %v467, %v822
        %v824 = vpop.f32.mrb[0].mxu0
        %825 = vmatprep.mubr.f32.mxu0 0.0
        %826 = vmatmul.mubr.f32.gmra.mrb[0].mxu0 %v643
        %v827 = vpop.f32.mrb[0].mxu0
        %v828 = vadd.f32 %v472, %v827
        %v829 = vpop.f32.mrb[0].mxu0
        %830 = vmatprep.mubr.f32.mxu0 0.0
        %831 = vmatmul.mubr.f32.gmra.mrb[0].mxu0 %v646
        %v832 = vpop.f32.mrb[0].mxu0
        %v833 = vadd.f32 %v477, %v832
        %v834 = vpop.f32.mrb[0].mxu0
        %835 = vmatprep.mubr.f32.mxu0 0.0
        %836 = vmatmul.mubr.f32.gmra.mrb[0].mxu0 %v649
        %v837 = vpop.f32.mrb[0].mxu0
        %v838 = vadd.f32 %v482, %v837
        %v839 = vpop.f32.mrb[0].mxu0
        %840 = vmatprep.mubr.f32.mxu0 0.0
        %841 = vmatmul.mubr.f32.gmra.mrb[0].mxu0 %v652
        %v842 = vpop.f32.mrb[0].mxu0
        %v843 = vadd.f32 %v487, %v842
        %v844 = vpop.f32.mrb[0].mxu0
        %845 = vmatprep.mubr.f32.mxu0 0.0
        %846 = vmatmul.mubr.f32.gmra.mrb[0].mxu0 %v655
        %v847 = vpop.f32.mrb[0].mxu0
        %v848 = vadd.f32 %v492, %v847
        %v849 = vpop.f32.mrb[0].mxu0
        %850 = vmatprep.mubr.f32.mxu0 0.0
        %851 = vmatmul.mubr.f32.gmra.mrb[0].mxu0 %v658
        %v852 = vpop.f32.mrb[0].mxu0
        %v853 = vadd.f32 %v497, %v852
        %v854 = vpop.f32.mrb[0].mxu0
        %855 = vmatprep.mubr.f32.mxu0 0.0
        %856 = vmatmul.mubr.f32.gmra.mrb[0].mxu0 %v661
        %v857 = vpop.f32.mrb[0].mxu0
        %v858 = vadd.f32 %v502, %v857
        %v859 = vpop.f32.mrb[0].mxu0
        %860 = vmatprep.mubr.f32.mxu0 0.0
        %861 = vmatmul.mubr.f32.gmra.mrb[0].mxu0 %v664
        %v862 = vpop.f32.mrb[0].mxu0
        %v863 = vadd.f32 %v507, %v862
        %v864 = vpop.f32.mrb[0].mxu0
        %865 = vmatprep.mubr.f32.mxu0 0.0
        %866 = vmatmul.mubr.f32.gmra.mrb[0].mxu0 %v667
        %v867 = vpop.f32.mrb[0].mxu0
        %v868 = vadd.f32 %v512, %v867
        %v869 = vpop.f32.mrb[0].mxu0
        %870 = vmatprep.mubr.f32.mxu0 0.0
        %871 = vmatmul.mubr.f32.gmra.mrb[0].mxu0 %v670
        %v872 = vpop.f32.mrb[0].mxu0
        %v873 = vadd.f32 %v517, %v872
        %v874 = vpop.f32.mrb[0].mxu0
        %875 = vmatprep.mubr.f32.mxu0 0.0
        %876 = vmatmul.mubr.f32.gmra.mrb[0].mxu0 %v673
        %v877 = vpop.f32.mrb[0].mxu0
        %v878 = vadd.f32 %v522, %v877
        %v879 = vpop.f32.mrb[0].mxu0
        %880 = vmatprep.mubr.f32.mxu0 0.0
        %881 = vmatmul.mubr.f32.gmra.mrb[0].mxu0 %v676
        %v882 = vpop.f32.mrb[0].mxu0
        %v883 = vadd.f32 %v527, %v882
        %v884 = vpop.f32.mrb[0].mxu0
        %885 = vmatprep.mubr.f32.mxu0 0.0
        %886 = vmatmul.mubr.f32.gmra.mrb[0].mxu0 %v679
        %v887 = vpop.f32.mrb[0].mxu0
        %v888 = vadd.f32 %v532, %v887
        %v889 = vpop.f32.mrb[0].mxu0
        %890 = vmatprep.mubr.f32.mxu0 0.0
        %891 = vmatmul.mubr.f32.gmra.mrb[0].mxu0 %v682
        %v892 = vpop.f32.mrb[0].mxu0
        %v893 = vadd.f32 %v537, %v892
        %v894 = vpop.f32.mrb[0].mxu0
        %895 = vmatprep.mubr.f32.mxu0 0.0
        %896 = vmatmul.mubr.f32.gmra.mrb[0].mxu0 %v685
        %v897 = vpop.f32.mrb[0].mxu0
        %v898 = vadd.f32 %v542, %v897
        %v899 = vpop.f32.mrb[0].mxu0
        %900 = vmatprep.mubr.f32.mxu0 0.0
        %901 = vmatmul.mubr.f32.gmra.mrb[0].mxu0 %v688
        %v902 = vpop.f32.mrb[0].mxu0
        %v903 = vadd.f32 %v547, %v902
        %v904 = vpop.f32.mrb[0].mxu0
        %905 = vmatprep.mubr.f32.mxu0 0.0
        %906 = vmatmul.mubr.f32.gmra.mrb[0].mxu0 %v691
        %v907 = vpop.f32.mrb[0].mxu0
        %v908 = vadd.f32 %v552, %v907
        %v909 = vpop.f32.mrb[0].mxu0
        %910 = vmatprep.mubr.f32.mxu0 0.0
        %911 = vmatmul.mubr.f32.gmra.mrb[0].mxu0 %v694
        %v912 = vpop.f32.mrb[0].mxu0
        %v913 = vadd.f32 %v557, %v912
        %v914 = vpop.f32.mrb[0].mxu0
        %915 = vmatprep.mubr.f32.mxu0 0.0
        %916 = vmatmul.mubr.f32.gmra.mrb[0].mxu0 %v697
        %v917 = vpop.f32.mrb[0].mxu0
        %v918 = vadd.f32 %v562, %v917
        %v919 = vpop.f32.mrb[0].mxu0
        %920 = vmatprep.mubr.f32.mxu0 0.0
        %921 = vmatmul.mubr.f32.gmra.mrb[0].mxu0 %v700
        %v922 = vpop.f32.mrb[0].mxu0
        %v923 = vadd.f32 %v567, %v922
        %v924 = vpop.f32.mrb[0].mxu0
        %925 = vmatprep.mubr.f32.mxu0 0.0
        %926 = vmatmul.mubr.f32.gmra.mrb[0].mxu0 %v703
        %v927 = vpop.f32.mrb[0].mxu0
        %v928 = vadd.f32 %v572, %v927
        %v929 = vpop.f32.mrb[0].mxu0
        %930 = vmatprep.mubr.f32.mxu0 0.0
        %931 = vmatmul.mubr.f32.gmra.mrb[0].mxu0 %v706
        %v932 = vpop.f32.mrb[0].mxu0
        %v933 = vadd.f32 %v577, %v932
        %v934 = vpop.f32.mrb[0].mxu0
        %935 = vmatprep.mubr.f32.mxu0 0.0
        %936 = vmatmul.mubr.f32.gmra.mrb[0].mxu0 %v709
        %v937 = vpop.f32.mrb[0].mxu0
        %v938 = vadd.f32 %v582, %v937
        %v939 = vpop.f32.mrb[0].mxu0
        %940 = vmatprep.mubr.f32.mxu0 0.0
        %941 = vmatmul.mubr.f32.gmra.mrb[0].mxu0 %v712
        %v942 = vpop.f32.mrb[0].mxu0
        %v943 = vadd.f32 %v587, %v942
        %v944 = vpop.f32.mrb[0].mxu0
        %945 = vmatprep.mubr.f32.mxu0 0.0
        %946 = vmatmul.mubr.f32.gmra.mrb[0].mxu0 %v715
        %v947 = vpop.f32.mrb[0].mxu0
        %v948 = vadd.f32 %v592, %v947
        %v949 = vpop.f32.mrb[0].mxu0
        %950 = vmatprep.mubr.f32.mxu0 0.0
        %951 = vmatmul.mubr.f32.gmra.mrb[0].mxu0 %v718
        %v952 = vpop.f32.mrb[0].mxu0
        %v953 = vadd.f32 %v597, %v952
        %v954 = vpop.f32.mrb[0].mxu0
        %955 = vmatprep.mubr.f32.mxu0 0.0
        %956 = vmatmul.mubr.f32.gmra.mrb[0].mxu0 %v721
        %v957 = vpop.f32.mrb[0].mxu0
        %v958 = vadd.f32 %v602, %v957
        %v959 = vpop.f32.mrb[0].mxu0
        %960 = vmatprep.mubr.f32.mxu0 0.0
        %961 = vmatmul.mubr.f32.gmra.mrb[0].mxu0 %v724
        %v962 = vpop.f32.mrb[0].mxu0
        %v963 = vadd.f32 %v607, %v962
        %v964 = vpop.f32.mrb[0].mxu0
        %965 = vmatprep.mubr.f32.mxu0 0.0
        %966 = vmatmul.mubr.f32.gmra.mrb[0].mxu0 %v727
        %v967 = vpop.f32.mrb[0].mxu0
        %v968 = vadd.f32 %v612, %v967
        %v969 = vpop.f32.mrb[0].mxu0
        %970 = vmatprep.mubr.f32.mxu0 0.0
        %971 = vmatmul.mubr.f32.gmra.mrb[0].mxu0 %v730
        %v972 = vpop.f32.mrb[0].mxu0
        %v973 = vadd.f32 %v617, %v972
        %v974 = vpop.f32.mrb[0].mxu0
        %975 = vmatprep.mubr.f32.mxu0 0.0
        %976 = vmatmul.mubr.f32.gmra.mrb[0].mxu0 %v733
        %v977 = vpop.f32.mrb[0].mxu0
        %v978 = vadd.f32 %v622, %v977
        %v979 = vpop.f32.mrb[0].mxu0
        %980 = vmatprep.mubr.f32.mxu0 0.0
        %981 = vmatmul.mubr.f32.gmra.mrb[0].mxu0 %v736
        %v982 = vpop.f32.mrb[0].mxu0
        %v983 = vadd.f32 %v627, %v982
        %v984 = vpop.f32.mrb[0].mxu0
        %985 = vdwg.mxu0
        %v986 = vld [vmem:[%s196 + $0x2] sm:$0xff]
        %v987 = vld [vmem:[%s196 + $0xa] sm:$0xff]
        %v988 = vld [vmem:[%s196 + $0x12] sm:$0xff]
        %v989 = vld [vmem:[%s196 + $0x1a] sm:$0xff]
        %v990 = vld [vmem:[%s196 + $0x22] sm:$0xff]
        %v991 = vld [vmem:[%s196 + $0x2a] sm:$0xff]
        %v992 = vld [vmem:[%s196 + $0x32] sm:$0xff]
        %v993 = vld [vmem:[%s196 + $0x3a] sm:$0xff]
        %v994 = vld [vmem:[%s196 + $0x42] sm:$0xff]
        %v995 = vld [vmem:[%s196 + $0x4a] sm:$0xff]
        %v996 = vld [vmem:[%s196 + $0x52] sm:$0xff]
        %v997 = vld [vmem:[%s196 + $0x5a] sm:$0xff]
        %v998 = vld [vmem:[%s196 + $0x62] sm:$0xff]
        %v999 = vld [vmem:[%s196 + $0x6a] sm:$0xff]
        %v1000 = vld [vmem:[%s196 + $0x72] sm:$0xff]
        %v1001 = vld [vmem:[%s196 + $0x7a] sm:$0xff]
        %v1002 = vld [vmem:[%s196 + $0x82] sm:$0xff]
        %v1003 = vld [vmem:[%s196 + $0x8a] sm:$0xff]
        %v1004 = vld [vmem:[%s196 + $0x92] sm:$0xff]
        %v1005 = vld [vmem:[%s196 + $0x9a] sm:$0xff]
        %v1006 = vld [vmem:[%s196 + $0xa2] sm:$0xff]
        %v1007 = vld [vmem:[%s196 + $0xaa] sm:$0xff]
        %v1008 = vld [vmem:[%s196 + $0xb2] sm:$0xff]
        %v1009 = vld [vmem:[%s196 + $0xba] sm:$0xff]
        %v1010 = vld [vmem:[%s196 + $0xc2] sm:$0xff]
        %v1011 = vld [vmem:[%s196 + $0xca] sm:$0xff]
        %v1012 = vld [vmem:[%s196 + $0xd2] sm:$0xff]
        %v1013 = vld [vmem:[%s196 + $0xda] sm:$0xff]
        %v1014 = vld [vmem:[%s196 + $0xe2] sm:$0xff]
        %v1015 = vld [vmem:[%s196 + $0xea] sm:$0xff]
        %v1016 = vld [vmem:[%s196 + $0xf2] sm:$0xff]
        %v1017 = vld [vmem:[%s196 + $0xfa] sm:$0xff]
        %v1018 = vld [vmem:[%s196 + $0x102] sm:$0xff]
        %v1019 = vld [vmem:[%s196 + $0x10a] sm:$0xff]
        %v1020 = vld [vmem:[%s196 + $0x112] sm:$0xff]
        %v1021 = vld [vmem:[%s196 + $0x11a] sm:$0xff]
        %s1022 = scalar_lea.vmem %s1, 8
        %v1023 = vld [vmem:[%s1022] sm:$0xf]
        %v1025 = vsel %vm272, %v986, 0
        %v1028 = vsel %vm272, %v987, 0
        %v1031 = vsel %vm272, %v988, 0
        %v1034 = vsel %vm272, %v989, 0
        %v1037 = vsel %vm272, %v990, 0
        %v1040 = vsel %vm272, %v991, 0
        %v1043 = vsel %vm272, %v992, 0
        %v1046 = vsel %vm272, %v993, 0
        %v1049 = vsel %vm272, %v994, 0
        %v1052 = vsel %vm272, %v995, 0
        %v1055 = vsel %vm272, %v996, 0
        %v1058 = vsel %vm272, %v997, 0
        %v1061 = vsel %vm272, %v998, 0
        %v1064 = vsel %vm272, %v999, 0
        %v1067 = vsel %vm272, %v1000, 0
        %v1070 = vsel %vm272, %v1001, 0
        %v1073 = vsel %vm272, %v1002, 0
        %v1076 = vsel %vm272, %v1003, 0
        %v1079 = vsel %vm272, %v1004, 0
        %v1082 = vsel %vm272, %v1005, 0
        %v1085 = vsel %vm272, %v1006, 0
        %v1088 = vsel %vm272, %v1007, 0
        %v1091 = vsel %vm272, %v1008, 0
        %v1094 = vsel %vm272, %v1009, 0
        %v1097 = vsel %vm272, %v1010, 0
        %v1100 = vsel %vm272, %v1011, 0
        %v1103 = vsel %vm272, %v1012, 0
        %v1106 = vsel %vm272, %v1013, 0
        %v1109 = vsel %vm272, %v1014, 0
        %v1112 = vsel %vm272, %v1015, 0
        %v1115 = vsel %vm272, %v1016, 0
        %v1118 = vsel %vm272, %v1017, 0
        %v1121 = vsel %vm272, %v1018, 0
        %v1124 = vsel %vm272, %v1019, 0
        %v1127 = vsel %vm272, %v1020, 0
        %v1130 = vsel %vm272, %v1021, 0
        %v1133 = vsel %vm381, %v1023, 0
        %1135 = vmatprep.subr.mxu0 0.0
        %1136 = vmatpush1.msra.mxu0 %v1133
        %1137 = vmatprep.subr.mxu0 0.0
        %1138 = vmatpush1.msra.mxu0 0.0
        %1139 = vmatprep.subr.mxu0 0.0
        %1140 = vmatpush1.msra.mxu0 0.0
        %1141 = vmatprep.subr.mxu0 0.0
        %1142 = vmatpush1.msra.mxu0 0.0
        %1143 = vmatprep.subr.mxu0 0.0
        %1144 = vmatpush1.msra.mxu0 0.0
        %1145 = vmatprep.subr.mxu0 0.0
        %1146 = vmatpush1.msra.mxu0 0.0
        %1147 = vmatprep.subr.mxu0 0.0
        %1148 = vmatpush1.msra.mxu0 0.0
        %1149 = vmatprep.subr.mxu0 0.0
        %1150 = vmatpush1.msra.mxu0 0.0
        %1151 = vmatprep.subr.mxu0 0.0
        %1152 = vmatpush1.msra.mxu0 0.0
        %1153 = vmatprep.subr.mxu0 0.0
        %1154 = vmatpush1.msra.mxu0 0.0
        %1155 = vmatprep.subr.mxu0 0.0
        %1156 = vmatpush1.msra.mxu0 0.0
        %1157 = vmatprep.subr.mxu0 0.0
        %1158 = vmatpush1.msra.mxu0 0.0
        %1159 = vmatprep.subr.mxu0 0.0
        %1160 = vmatpush1.msra.mxu0 0.0
        %1161 = vmatprep.subr.mxu0 0.0
        %1162 = vmatpush1.msra.mxu0 0.0
        %1163 = vmatprep.subr.mxu0 0.0
        %1164 = vmatpush1.msra.mxu0 0.0
        %1165 = vmatprep.subr.mxu0 0.0
        %1166 = vmatpush1.msra.mxu0 0.0
        %1167 = vmatprep.subr.mxu0 0.0
        %1168 = vmatpush1.msra.mxu0 0.0
        %1169 = vmatprep.subr.mxu0 0.0
        %1170 = vmatpush1.msra.mxu0 0.0
        %1171 = vmatprep.subr.mxu0 0.0
        %1172 = vmatpush1.msra.mxu0 0.0
        %1173 = vmatprep.subr.mxu0 0.0
        %1174 = vmatpush1.msra.mxu0 0.0
        %1175 = vmatprep.subr.mxu0 0.0
        %1176 = vmatpush1.msra.mxu0 0.0
        %1177 = vmatprep.subr.mxu0 0.0
        %1178 = vmatpush1.msra.mxu0 0.0
        %1179 = vmatprep.subr.mxu0 0.0
        %1180 = vmatpush1.msra.mxu0 0.0
        %1181 = vmatprep.subr.mxu0 0.0
        %1182 = vmatpush1.msra.mxu0 0.0
        %1183 = vmatprep.subr.mxu0 0.0
        %1184 = vmatpush1.msra.mxu0 0.0
        %1185 = vmatprep.subr.mxu0 0.0
        %1186 = vmatpush1.msra.mxu0 0.0
        %1187 = vmatprep.subr.mxu0 0.0
        %1188 = vmatpush1.msra.mxu0 0.0
        %1189 = vmatprep.subr.mxu0 0.0
        %1190 = vmatpush1.msra.mxu0 0.0
        %1191 = vmatprep.subr.mxu0 0.0
        %1192 = vmatpush1.msra.mxu0 0.0
        %1193 = vmatprep.subr.mxu0 0.0
        %1194 = vmatpush1.msra.mxu0 0.0
        %1195 = vmatprep.subr.mxu0 0.0
        %1196 = vmatpush1.msra.mxu0 0.0
        %1197 = vmatprep.subr.mxu0 0.0
        %1198 = vmatpush1.msra.mxu0 0.0
        %1199 = vmatprep.mubr.f32.mxu0 0.0
        %1200 = vmatmul.mubr.f32.gmra.mrb[0].mxu0 %v1025
        %v1201 = vpop.f32.mrb[0].mxu0
        %v1202 = vadd.f32 0.0, %v1201
        %v1203 = vpop.f32.mrb[0].mxu0
        %1204 = vmatprep.mubr.f32.mxu0 0.0
        %1205 = vmatmul.mubr.f32.gmra.mrb[0].mxu0 %v1028
        %v1206 = vpop.f32.mrb[0].mxu0
        %v1207 = vadd.f32 0.0, %v1206
        %v1208 = vpop.f32.mrb[0].mxu0
        %1209 = vmatprep.mubr.f32.mxu0 0.0
        %1210 = vmatmul.mubr.f32.gmra.mrb[0].mxu0 %v1031
        %v1211 = vpop.f32.mrb[0].mxu0
        %v1212 = vadd.f32 0.0, %v1211
        %v1213 = vpop.f32.mrb[0].mxu0
        %1214 = vmatprep.mubr.f32.mxu0 0.0
        %1215 = vmatmul.mubr.f32.gmra.mrb[0].mxu0 %v1034
        %v1216 = vpop.f32.mrb[0].mxu0
        %v1217 = vadd.f32 0.0, %v1216
        %v1218 = vpop.f32.mrb[0].mxu0
        %1219 = vmatprep.mubr.f32.mxu0 0.0
        %1220 = vmatmul.mubr.f32.gmra.mrb[0].mxu0 %v1037
        %v1221 = vpop.f32.mrb[0].mxu0
        %v1222 = vadd.f32 0.0, %v1221
        %v1223 = vpop.f32.mrb[0].mxu0
        %1224 = vmatprep.mubr.f32.mxu0 0.0
        %1225 = vmatmul.mubr.f32.gmra.mrb[0].mxu0 %v1040
        %v1226 = vpop.f32.mrb[0].mxu0
        %v1227 = vadd.f32 0.0, %v1226
        %v1228 = vpop.f32.mrb[0].mxu0
        %1229 = vmatprep.mubr.f32.mxu0 0.0
        %1230 = vmatmul.mubr.f32.gmra.mrb[0].mxu0 %v1043
        %v1231 = vpop.f32.mrb[0].mxu0
        %v1232 = vadd.f32 0.0, %v1231
        %v1233 = vpop.f32.mrb[0].mxu0
        %1234 = vmatprep.mubr.f32.mxu0 0.0
        %1235 = vmatmul.mubr.f32.gmra.mrb[0].mxu0 %v1046
        %v1236 = vpop.f32.mrb[0].mxu0
        %v1237 = vadd.f32 0.0, %v1236
        %v1238 = vpop.f32.mrb[0].mxu0
        %1239 = vmatprep.mubr.f32.mxu0 0.0
        %1240 = vmatmul.mubr.f32.gmra.mrb[0].mxu0 %v1049
        %v1241 = vpop.f32.mrb[0].mxu0
        %v1242 = vadd.f32 0.0, %v1241
        %v1243 = vpop.f32.mrb[0].mxu0
        %1244 = vmatprep.mubr.f32.mxu0 0.0
        %1245 = vmatmul.mubr.f32.gmra.mrb[0].mxu0 %v1052
        %v1246 = vpop.f32.mrb[0].mxu0
        %v1247 = vadd.f32 0.0, %v1246
        %v1248 = vpop.f32.mrb[0].mxu0
        %1249 = vmatprep.mubr.f32.mxu0 0.0
        %1250 = vmatmul.mubr.f32.gmra.mrb[0].mxu0 %v1055
        %v1251 = vpop.f32.mrb[0].mxu0
        %v1252 = vadd.f32 0.0, %v1251
        %v1253 = vpop.f32.mrb[0].mxu0
        %1254 = vmatprep.mubr.f32.mxu0 0.0
        %1255 = vmatmul.mubr.f32.gmra.mrb[0].mxu0 %v1058
        %v1256 = vpop.f32.mrb[0].mxu0
        %v1257 = vadd.f32 0.0, %v1256
        %v1258 = vpop.f32.mrb[0].mxu0
        %1259 = vmatprep.mubr.f32.mxu0 0.0
        %1260 = vmatmul.mubr.f32.gmra.mrb[0].mxu0 %v1061
        %v1261 = vpop.f32.mrb[0].mxu0
        %v1262 = vadd.f32 0.0, %v1261
        %v1263 = vpop.f32.mrb[0].mxu0
        %1264 = vmatprep.mubr.f32.mxu0 0.0
        %1265 = vmatmul.mubr.f32.gmra.mrb[0].mxu0 %v1064
        %v1266 = vpop.f32.mrb[0].mxu0
        %v1267 = vadd.f32 0.0, %v1266
        %v1268 = vpop.f32.mrb[0].mxu0
        %1269 = vmatprep.mubr.f32.mxu0 0.0
        %1270 = vmatmul.mubr.f32.gmra.mrb[0].mxu0 %v1067
        %v1271 = vpop.f32.mrb[0].mxu0
        %v1272 = vadd.f32 0.0, %v1271
        %v1273 = vpop.f32.mrb[0].mxu0
        %1274 = vmatprep.mubr.f32.mxu0 0.0
        %1275 = vmatmul.mubr.f32.gmra.mrb[0].mxu0 %v1070
        %v1276 = vpop.f32.mrb[0].mxu0
        %v1277 = vadd.f32 0.0, %v1276
        %v1278 = vpop.f32.mrb[0].mxu0
        %1279 = vmatprep.mubr.f32.mxu0 0.0
        %1280 = vmatmul.mubr.f32.gmra.mrb[0].mxu0 %v1073
        %v1281 = vpop.f32.mrb[0].mxu0
        %v1282 = vadd.f32 0.0, %v1281
        %v1283 = vpop.f32.mrb[0].mxu0
        %1284 = vmatprep.mubr.f32.mxu0 0.0
        %1285 = vmatmul.mubr.f32.gmra.mrb[0].mxu0 %v1076
        %v1286 = vpop.f32.mrb[0].mxu0
        %v1287 = vadd.f32 0.0, %v1286
        %v1288 = vpop.f32.mrb[0].mxu0
        %1289 = vmatprep.mubr.f32.mxu0 0.0
        %1290 = vmatmul.mubr.f32.gmra.mrb[0].mxu0 %v1079
        %v1291 = vpop.f32.mrb[0].mxu0
        %v1292 = vadd.f32 0.0, %v1291
        %v1293 = vpop.f32.mrb[0].mxu0
        %1294 = vmatprep.mubr.f32.mxu0 0.0
        %1295 = vmatmul.mubr.f32.gmra.mrb[0].mxu0 %v1082
        %v1296 = vpop.f32.mrb[0].mxu0
        %v1297 = vadd.f32 0.0, %v1296
        %v1298 = vpop.f32.mrb[0].mxu0
        %1299 = vmatprep.mubr.f32.mxu0 0.0
        %1300 = vmatmul.mubr.f32.gmra.mrb[0].mxu0 %v1085
        %v1301 = vpop.f32.mrb[0].mxu0
        %v1302 = vadd.f32 0.0, %v1301
        %v1303 = vpop.f32.mrb[0].mxu0
        %1304 = vmatprep.mubr.f32.mxu0 0.0
        %1305 = vmatmul.mubr.f32.gmra.mrb[0].mxu0 %v1088
        %v1306 = vpop.f32.mrb[0].mxu0
        %v1307 = vadd.f32 0.0, %v1306
        %v1308 = vpop.f32.mrb[0].mxu0
        %1309 = vmatprep.mubr.f32.mxu0 0.0
        %1310 = vmatmul.mubr.f32.gmra.mrb[0].mxu0 %v1091
        %v1311 = vpop.f32.mrb[0].mxu0
        %v1312 = vadd.f32 0.0, %v1311
        %v1313 = vpop.f32.mrb[0].mxu0
        %1314 = vmatprep.mubr.f32.mxu0 0.0
        %1315 = vmatmul.mubr.f32.gmra.mrb[0].mxu0 %v1094
        %v1316 = vpop.f32.mrb[0].mxu0
        %v1317 = vadd.f32 0.0, %v1316
        %v1318 = vpop.f32.mrb[0].mxu0
        %1319 = vmatprep.mubr.f32.mxu0 0.0
        %1320 = vmatmul.mubr.f32.gmra.mrb[0].mxu0 %v1097
        %v1321 = vpop.f32.mrb[0].mxu0
        %v1322 = vadd.f32 0.0, %v1321
        %v1323 = vpop.f32.mrb[0].mxu0
        %1324 = vmatprep.mubr.f32.mxu0 0.0
        %1325 = vmatmul.mubr.f32.gmra.mrb[0].mxu0 %v1100
        %v1326 = vpop.f32.mrb[0].mxu0
        %v1327 = vadd.f32 0.0, %v1326
        %v1328 = vpop.f32.mrb[0].mxu0
        %1329 = vmatprep.mubr.f32.mxu0 0.0
        %1330 = vmatmul.mubr.f32.gmra.mrb[0].mxu0 %v1103
        %v1331 = vpop.f32.mrb[0].mxu0
        %v1332 = vadd.f32 0.0, %v1331
        %v1333 = vpop.f32.mrb[0].mxu0
        %1334 = vmatprep.mubr.f32.mxu0 0.0
        %1335 = vmatmul.mubr.f32.gmra.mrb[0].mxu0 %v1106
        %v1336 = vpop.f32.mrb[0].mxu0
        %v1337 = vadd.f32 0.0, %v1336
        %v1338 = vpop.f32.mrb[0].mxu0
        %1339 = vmatprep.mubr.f32.mxu0 0.0
        %1340 = vmatmul.mubr.f32.gmra.mrb[0].mxu0 %v1109
        %v1341 = vpop.f32.mrb[0].mxu0
        %v1342 = vadd.f32 0.0, %v1341
        %v1343 = vpop.f32.mrb[0].mxu0
        %1344 = vmatprep.mubr.f32.mxu0 0.0
        %1345 = vmatmul.mubr.f32.gmra.mrb[0].mxu0 %v1112
        %v1346 = vpop.f32.mrb[0].mxu0
        %v1347 = vadd.f32 0.0, %v1346
        %v1348 = vpop.f32.mrb[0].mxu0
        %1349 = vmatprep.mubr.f32.mxu0 0.0
        %1350 = vmatmul.mubr.f32.gmra.mrb[0].mxu0 %v1115
        %v1351 = vpop.f32.mrb[0].mxu0
        %v1352 = vadd.f32 0.0, %v1351
        %v1353 = vpop.f32.mrb[0].mxu0
        %1354 = vmatprep.mubr.f32.mxu0 0.0
        %1355 = vmatmul.mubr.f32.gmra.mrb[0].mxu0 %v1118
        %v1356 = vpop.f32.mrb[0].mxu0
        %v1357 = vadd.f32 0.0, %v1356
        %v1358 = vpop.f32.mrb[0].mxu0
        %1359 = vmatprep.mubr.f32.mxu0 0.0
        %1360 = vmatmul.mubr.f32.gmra.mrb[0].mxu0 %v1121
        %v1361 = vpop.f32.mrb[0].mxu0
        %v1362 = vadd.f32 0.0, %v1361
        %v1363 = vpop.f32.mrb[0].mxu0
        %1364 = vmatprep.mubr.f32.mxu0 0.0
        %1365 = vmatmul.mubr.f32.gmra.mrb[0].mxu0 %v1124
        %v1366 = vpop.f32.mrb[0].mxu0
        %v1367 = vadd.f32 0.0, %v1366
        %v1368 = vpop.f32.mrb[0].mxu0
        %1369 = vmatprep.mubr.f32.mxu0 0.0
        %1370 = vmatmul.mubr.f32.gmra.mrb[0].mxu0 %v1127
        %v1371 = vpop.f32.mrb[0].mxu0
        %v1372 = vadd.f32 0.0, %v1371
        %v1373 = vpop.f32.mrb[0].mxu0
        %1374 = vmatprep.mubr.f32.mxu0 0.0
        %1375 = vmatmul.mubr.f32.gmra.mrb[0].mxu0 %v1130
        %v1376 = vpop.f32.mrb[0].mxu0
        %v1377 = vadd.f32 0.0, %v1376
        %v1378 = vpop.f32.mrb[0].mxu0
        %1379 = vdwg.mxu0
        %v1380 = vadd.f32 %v808, %v1202
        %v1381 = vadd.f32 %v813, %v1207
        %v1382 = vadd.f32 %v818, %v1212
        %v1383 = vadd.f32 %v823, %v1217
        %v1384 = vadd.f32 %v828, %v1222
        %v1385 = vadd.f32 %v833, %v1227
        %v1386 = vadd.f32 %v838, %v1232
        %v1387 = vadd.f32 %v843, %v1237
        %v1388 = vadd.f32 %v848, %v1242
        %v1389 = vadd.f32 %v853, %v1247
        %v1390 = vadd.f32 %v858, %v1252
        %v1391 = vadd.f32 %v863, %v1257
        %v1392 = vadd.f32 %v868, %v1262
        %v1393 = vadd.f32 %v873, %v1267
        %v1394 = vadd.f32 %v878, %v1272
        %v1395 = vadd.f32 %v883, %v1277
        %v1396 = vadd.f32 %v888, %v1282
        %v1397 = vadd.f32 %v893, %v1287
        %v1398 = vadd.f32 %v898, %v1292
        %v1399 = vadd.f32 %v903, %v1297
        %v1400 = vadd.f32 %v908, %v1302
        %v1401 = vadd.f32 %v913, %v1307
        %v1402 = vadd.f32 %v918, %v1312
        %v1403 = vadd.f32 %v923, %v1317
        %v1404 = vadd.f32 %v928, %v1322
        %v1405 = vadd.f32 %v933, %v1327
        %v1406 = vadd.f32 %v938, %v1332
        %v1407 = vadd.f32 %v943, %v1337
        %v1408 = vadd.f32 %v948, %v1342
        %v1409 = vadd.f32 %v953, %v1347
        %v1410 = vadd.f32 %v958, %v1352
        %v1411 = vadd.f32 %v963, %v1357
        %v1412 = vadd.f32 %v968, %v1362
        %v1413 = vadd.f32 %v973, %v1367
        %v1414 = vadd.f32 %v978, %v1372
        %v1415 = vadd.f32 %v983, %v1377
        %v1416 = vld [vmem:[%s196 + $0x12] sm:$0xff]
        %v1417 = vld [vmem:[%s196 + $0x1a] sm:$0xff]
        %v1418 = vld [vmem:[%s196 + $0x22] sm:$0xff]
        %v1419 = vld [vmem:[%s196 + $0x2a] sm:$0xff]
        %v1420 = vld [vmem:[%s196 + $0x32] sm:$0xff]
        %v1421 = vld [vmem:[%s196 + $0x3a] sm:$0xff]
        %v1422 = vld [vmem:[%s196 + $0x42] sm:$0xff]
        %v1423 = vld [vmem:[%s196 + $0x4a] sm:$0xff]
        %v1424 = vld [vmem:[%s196 + $0x52] sm:$0xff]
        %v1425 = vld [vmem:[%s196 + $0x5a] sm:$0xff]
        %v1426 = vld [vmem:[%s196 + $0x62] sm:$0xff]
        %v1427 = vld [vmem:[%s196 + $0x6a] sm:$0xff]
        %v1428 = vld [vmem:[%s196 + $0x72] sm:$0xff]
        %v1429 = vld [vmem:[%s196 + $0x7a] sm:$0xff]
        %v1430 = vld [vmem:[%s196 + $0x82] sm:$0xff]
        %v1431 = vld [vmem:[%s196 + $0x8a] sm:$0xff]
        %v1432 = vld [vmem:[%s196 + $0x92] sm:$0xff]
        %v1433 = vld [vmem:[%s196 + $0x9a] sm:$0xff]
        %v1434 = vld [vmem:[%s196 + $0xa2] sm:$0xff]
        %v1435 = vld [vmem:[%s196 + $0xaa] sm:$0xff]
        %v1436 = vld [vmem:[%s196 + $0xb2] sm:$0xff]
        %v1437 = vld [vmem:[%s196 + $0xba] sm:$0xff]
        %v1438 = vld [vmem:[%s196 + $0xc2] sm:$0xff]
        %v1439 = vld [vmem:[%s196 + $0xca] sm:$0xff]
        %v1440 = vld [vmem:[%s196 + $0xd2] sm:$0xff]
        %v1441 = vld [vmem:[%s196 + $0xda] sm:$0xff]
        %v1442 = vld [vmem:[%s196 + $0xe2] sm:$0xff]
        %v1443 = vld [vmem:[%s196 + $0xea] sm:$0xff]
        %v1444 = vld [vmem:[%s196 + $0xf2] sm:$0xff]
        %v1445 = vld [vmem:[%s196 + $0xfa] sm:$0xff]
        %v1446 = vld [vmem:[%s196 + $0x102] sm:$0xff]
        %v1447 = vld [vmem:[%s196 + $0x10a] sm:$0xff]
        %v1448 = vld [vmem:[%s196 + $0x112] sm:$0xff]
        %v1449 = vld [vmem:[%s196 + $0x11a] sm:$0xff]
        %v1450 = vld [vmem:[%s196 + $0x122] sm:$0xff]
        %v1451 = vld [vmem:[%s196 + $0x12a] sm:$0xff]
        %s1452 = scalar_lea.vmem %s1, 12
        %v1453 = vld [vmem:[%s1452] sm:$0xf]
        %v1455 = vsel %vm272, %v1416, 0
        %v1458 = vsel %vm272, %v1417, 0
        %v1461 = vsel %vm272, %v1418, 0
        %v1464 = vsel %vm272, %v1419, 0
        %v1467 = vsel %vm272, %v1420, 0
        %v1470 = vsel %vm272, %v1421, 0
        %v1473 = vsel %vm272, %v1422, 0
        %v1476 = vsel %vm272, %v1423, 0
        %v1479 = vsel %vm272, %v1424, 0
        %v1482 = vsel %vm272, %v1425, 0
        %v1485 = vsel %vm272, %v1426, 0
        %v1488 = vsel %vm272, %v1427, 0
        %v1491 = vsel %vm272, %v1428, 0
        %v1494 = vsel %vm272, %v1429, 0
        %v1497 = vsel %vm272, %v1430, 0
        %v1500 = vsel %vm272, %v1431, 0
        %v1503 = vsel %vm272, %v1432, 0
        %v1506 = vsel %vm272, %v1433, 0
        %v1509 = vsel %vm272, %v1434, 0
        %v1512 = vsel %vm272, %v1435, 0
        %v1515 = vsel %vm272, %v1436, 0
        %v1518 = vsel %vm272, %v1437, 0
        %v1521 = vsel %vm272, %v1438, 0
        %v1524 = vsel %vm272, %v1439, 0
        %v1527 = vsel %vm272, %v1440, 0
        %v1530 = vsel %vm272, %v1441, 0
        %v1533 = vsel %vm272, %v1442, 0
        %v1536 = vsel %vm272, %v1443, 0
        %v1539 = vsel %vm272, %v1444, 0
        %v1542 = vsel %vm272, %v1445, 0
        %v1545 = vsel %vm272, %v1446, 0
        %v1548 = vsel %vm272, %v1447, 0
        %v1551 = vsel %vm272, %v1448, 0
        %v1554 = vsel %vm272, %v1449, 0
        %v1557 = vsel %vm272, %v1450, 0
        %v1560 = vsel %vm272, %v1451, 0
        %v1563 = vsel %vm381, %v1453, 0
        %1565 = vmatprep.subr.mxu0 0.0
        %1566 = vmatpush1.msra.mxu0 %v1563
        %1567 = vmatprep.subr.mxu0 0.0
        %1568 = vmatpush1.msra.mxu0 0.0
        %1569 = vmatprep.subr.mxu0 0.0
        %1570 = vmatpush1.msra.mxu0 0.0
        %1571 = vmatprep.subr.mxu0 0.0
        %1572 = vmatpush1.msra.mxu0 0.0
        %1573 = vmatprep.subr.mxu0 0.0
        %1574 = vmatpush1.msra.mxu0 0.0
        %1575 = vmatprep.subr.mxu0 0.0
        %1576 = vmatpush1.msra.mxu0 0.0
        %1577 = vmatprep.subr.mxu0 0.0
        %1578 = vmatpush1.msra.mxu0 0.0
        %1579 = vmatprep.subr.mxu0 0.0
        %1580 = vmatpush1.msra.mxu0 0.0
        %1581 = vmatprep.subr.mxu0 0.0
        %1582 = vmatpush1.msra.mxu0 0.0
        %1583 = vmatprep.subr.mxu0 0.0
        %1584 = vmatpush1.msra.mxu0 0.0
        %1585 = vmatprep.subr.mxu0 0.0
        %1586 = vmatpush1.msra.mxu0 0.0
        %1587 = vmatprep.subr.mxu0 0.0
        %1588 = vmatpush1.msra.mxu0 0.0
        %1589 = vmatprep.subr.mxu0 0.0
        %1590 = vmatpush1.msra.mxu0 0.0
        %1591 = vmatprep.subr.mxu0 0.0
        %1592 = vmatpush1.msra.mxu0 0.0
        %1593 = vmatprep.subr.mxu0 0.0
        %1594 = vmatpush1.msra.mxu0 0.0
        %1595 = vmatprep.subr.mxu0 0.0
        %1596 = vmatpush1.msra.mxu0 0.0
        %1597 = vmatprep.subr.mxu0 0.0
        %1598 = vmatpush1.msra.mxu0 0.0
        %1599 = vmatprep.subr.mxu0 0.0
        %1600 = vmatpush1.msra.mxu0 0.0
        %1601 = vmatprep.subr.mxu0 0.0
        %1602 = vmatpush1.msra.mxu0 0.0
        %1603 = vmatprep.subr.mxu0 0.0
        %1604 = vmatpush1.msra.mxu0 0.0
        %1605 = vmatprep.subr.mxu0 0.0
        %1606 = vmatpush1.msra.mxu0 0.0
        %1607 = vmatprep.subr.mxu0 0.0
        %1608 = vmatpush1.msra.mxu0 0.0
        %1609 = vmatprep.subr.mxu0 0.0
        %1610 = vmatpush1.msra.mxu0 0.0
        %1611 = vmatprep.subr.mxu0 0.0
        %1612 = vmatpush1.msra.mxu0 0.0
        %1613 = vmatprep.subr.mxu0 0.0
        %1614 = vmatpush1.msra.mxu0 0.0
        %1615 = vmatprep.subr.mxu0 0.0
        %1616 = vmatpush1.msra.mxu0 0.0
        %1617 = vmatprep.subr.mxu0 0.0
        %1618 = vmatpush1.msra.mxu0 0.0
        %1619 = vmatprep.subr.mxu0 0.0
        %1620 = vmatpush1.msra.mxu0 0.0
        %1621 = vmatprep.subr.mxu0 0.0
        %1622 = vmatpush1.msra.mxu0 0.0
        %1623 = vmatprep.subr.mxu0 0.0
        %1624 = vmatpush1.msra.mxu0 0.0
        %1625 = vmatprep.subr.mxu0 0.0
        %1626 = vmatpush1.msra.mxu0 0.0
        %1627 = vmatprep.subr.mxu0 0.0
        %1628 = vmatpush1.msra.mxu0 0.0
        %1629 = vmatprep.mubr.f32.mxu0 0.0
        %1630 = vmatmul.mubr.f32.gmra.mrb[0].mxu0 %v1455
        %v1631 = vpop.f32.mrb[0].mxu0
        %v1632 = vadd.f32 0.0, %v1631
        %v1633 = vpop.f32.mrb[0].mxu0
        %1634 = vmatprep.mubr.f32.mxu0 0.0
        %1635 = vmatmul.mubr.f32.gmra.mrb[0].mxu0 %v1458
        %v1636 = vpop.f32.mrb[0].mxu0
        %v1637 = vadd.f32 0.0, %v1636
        %v1638 = vpop.f32.mrb[0].mxu0
        %1639 = vmatprep.mubr.f32.mxu0 0.0
        %1640 = vmatmul.mubr.f32.gmra.mrb[0].mxu0 %v1461
        %v1641 = vpop.f32.mrb[0].mxu0
        %v1642 = vadd.f32 0.0, %v1641
        %v1643 = vpop.f32.mrb[0].mxu0
        %1644 = vmatprep.mubr.f32.mxu0 0.0
        %1645 = vmatmul.mubr.f32.gmra.mrb[0].mxu0 %v1464
        %v1646 = vpop.f32.mrb[0].mxu0
        %v1647 = vadd.f32 0.0, %v1646
        %v1648 = vpop.f32.mrb[0].mxu0
        %1649 = vmatprep.mubr.f32.mxu0 0.0
        %1650 = vmatmul.mubr.f32.gmra.mrb[0].mxu0 %v1467
        %v1651 = vpop.f32.mrb[0].mxu0
        %v1652 = vadd.f32 0.0, %v1651
        %v1653 = vpop.f32.mrb[0].mxu0
        %1654 = vmatprep.mubr.f32.mxu0 0.0
        %1655 = vmatmul.mubr.f32.gmra.mrb[0].mxu0 %v1470
        %v1656 = vpop.f32.mrb[0].mxu0
        %v1657 = vadd.f32 0.0, %v1656
        %v1658 = vpop.f32.mrb[0].mxu0
        %1659 = vmatprep.mubr.f32.mxu0 0.0
        %1660 = vmatmul.mubr.f32.gmra.mrb[0].mxu0 %v1473
        %v1661 = vpop.f32.mrb[0].mxu0
        %v1662 = vadd.f32 0.0, %v1661
        %v1663 = vpop.f32.mrb[0].mxu0
        %1664 = vmatprep.mubr.f32.mxu0 0.0
        %1665 = vmatmul.mubr.f32.gmra.mrb[0].mxu0 %v1476
        %v1666 = vpop.f32.mrb[0].mxu0
        %v1667 = vadd.f32 0.0, %v1666
        %v1668 = vpop.f32.mrb[0].mxu0
        %1669 = vmatprep.mubr.f32.mxu0 0.0
        %1670 = vmatmul.mubr.f32.gmra.mrb[0].mxu0 %v1479
        %v1671 = vpop.f32.mrb[0].mxu0
        %v1672 = vadd.f32 0.0, %v1671
        %v1673 = vpop.f32.mrb[0].mxu0
        %1674 = vmatprep.mubr.f32.mxu0 0.0
        %1675 = vmatmul.mubr.f32.gmra.mrb[0].mxu0 %v1482
        %v1676 = vpop.f32.mrb[0].mxu0
        %v1677 = vadd.f32 0.0, %v1676
        %v1678 = vpop.f32.mrb[0].mxu0
        %1679 = vmatprep.mubr.f32.mxu0 0.0
        %1680 = vmatmul.mubr.f32.gmra.mrb[0].mxu0 %v1485
        %v1681 = vpop.f32.mrb[0].mxu0
        %v1682 = vadd.f32 0.0, %v1681
        %v1683 = vpop.f32.mrb[0].mxu0
        %1684 = vmatprep.mubr.f32.mxu0 0.0
        %1685 = vmatmul.mubr.f32.gmra.mrb[0].mxu0 %v1488
        %v1686 = vpop.f32.mrb[0].mxu0
        %v1687 = vadd.f32 0.0, %v1686
        %v1688 = vpop.f32.mrb[0].mxu0
        %1689 = vmatprep.mubr.f32.mxu0 0.0
        %1690 = vmatmul.mubr.f32.gmra.mrb[0].mxu0 %v1491
        %v1691 = vpop.f32.mrb[0].mxu0
        %v1692 = vadd.f32 0.0, %v1691
        %v1693 = vpop.f32.mrb[0].mxu0
        %1694 = vmatprep.mubr.f32.mxu0 0.0
        %1695 = vmatmul.mubr.f32.gmra.mrb[0].mxu0 %v1494
        %v1696 = vpop.f32.mrb[0].mxu0
        %v1697 = vadd.f32 0.0, %v1696
        %v1698 = vpop.f32.mrb[0].mxu0
        %1699 = vmatprep.mubr.f32.mxu0 0.0
        %1700 = vmatmul.mubr.f32.gmra.mrb[0].mxu0 %v1497
        %v1701 = vpop.f32.mrb[0].mxu0
        %v1702 = vadd.f32 0.0, %v1701
        %v1703 = vpop.f32.mrb[0].mxu0
        %1704 = vmatprep.mubr.f32.mxu0 0.0
        %1705 = vmatmul.mubr.f32.gmra.mrb[0].mxu0 %v1500
        %v1706 = vpop.f32.mrb[0].mxu0
        %v1707 = vadd.f32 0.0, %v1706
        %v1708 = vpop.f32.mrb[0].mxu0
        %1709 = vmatprep.mubr.f32.mxu0 0.0
        %1710 = vmatmul.mubr.f32.gmra.mrb[0].mxu0 %v1503
        %v1711 = vpop.f32.mrb[0].mxu0
        %v1712 = vadd.f32 0.0, %v1711
        %v1713 = vpop.f32.mrb[0].mxu0
        %1714 = vmatprep.mubr.f32.mxu0 0.0
        %1715 = vmatmul.mubr.f32.gmra.mrb[0].mxu0 %v1506
        %v1716 = vpop.f32.mrb[0].mxu0
        %v1717 = vadd.f32 0.0, %v1716
        %v1718 = vpop.f32.mrb[0].mxu0
        %1719 = vmatprep.mubr.f32.mxu0 0.0
        %1720 = vmatmul.mubr.f32.gmra.mrb[0].mxu0 %v1509
        %v1721 = vpop.f32.mrb[0].mxu0
        %v1722 = vadd.f32 0.0, %v1721
        %v1723 = vpop.f32.mrb[0].mxu0
        %1724 = vmatprep.mubr.f32.mxu0 0.0
        %1725 = vmatmul.mubr.f32.gmra.mrb[0].mxu0 %v1512
        %v1726 = vpop.f32.mrb[0].mxu0
        %v1727 = vadd.f32 0.0, %v1726
        %v1728 = vpop.f32.mrb[0].mxu0
        %1729 = vmatprep.mubr.f32.mxu0 0.0
        %1730 = vmatmul.mubr.f32.gmra.mrb[0].mxu0 %v1515
        %v1731 = vpop.f32.mrb[0].mxu0
        %v1732 = vadd.f32 0.0, %v1731
        %v1733 = vpop.f32.mrb[0].mxu0
        %1734 = vmatprep.mubr.f32.mxu0 0.0
        %1735 = vmatmul.mubr.f32.gmra.mrb[0].mxu0 %v1518
        %v1736 = vpop.f32.mrb[0].mxu0
        %v1737 = vadd.f32 0.0, %v1736
        %v1738 = vpop.f32.mrb[0].mxu0
        %1739 = vmatprep.mubr.f32.mxu0 0.0
        %1740 = vmatmul.mubr.f32.gmra.mrb[0].mxu0 %v1521
        %v1741 = vpop.f32.mrb[0].mxu0
        %v1742 = vadd.f32 0.0, %v1741
        %v1743 = vpop.f32.mrb[0].mxu0
        %1744 = vmatprep.mubr.f32.mxu0 0.0
        %1745 = vmatmul.mubr.f32.gmra.mrb[0].mxu0 %v1524
        %v1746 = vpop.f32.mrb[0].mxu0
        %v1747 = vadd.f32 0.0, %v1746
        %v1748 = vpop.f32.mrb[0].mxu0
        %1749 = vmatprep.mubr.f32.mxu0 0.0
        %1750 = vmatmul.mubr.f32.gmra.mrb[0].mxu0 %v1527
        %v1751 = vpop.f32.mrb[0].mxu0
        %v1752 = vadd.f32 0.0, %v1751
        %v1753 = vpop.f32.mrb[0].mxu0
        %1754 = vmatprep.mubr.f32.mxu0 0.0
        %1755 = vmatmul.mubr.f32.gmra.mrb[0].mxu0 %v1530
        %v1756 = vpop.f32.mrb[0].mxu0
        %v1757 = vadd.f32 0.0, %v1756
        %v1758 = vpop.f32.mrb[0].mxu0
        %1759 = vmatprep.mubr.f32.mxu0 0.0
        %1760 = vmatmul.mubr.f32.gmra.mrb[0].mxu0 %v1533
        %v1761 = vpop.f32.mrb[0].mxu0
        %v1762 = vadd.f32 0.0, %v1761
        %v1763 = vpop.f32.mrb[0].mxu0
        %1764 = vmatprep.mubr.f32.mxu0 0.0
        %1765 = vmatmul.mubr.f32.gmra.mrb[0].mxu0 %v1536
        %v1766 = vpop.f32.mrb[0].mxu0
        %v1767 = vadd.f32 0.0, %v1766
        %v1768 = vpop.f32.mrb[0].mxu0
        %1769 = vmatprep.mubr.f32.mxu0 0.0
        %1770 = vmatmul.mubr.f32.gmra.mrb[0].mxu0 %v1539
        %v1771 = vpop.f32.mrb[0].mxu0
        %v1772 = vadd.f32 0.0, %v1771
        %v1773 = vpop.f32.mrb[0].mxu0
        %1774 = vmatprep.mubr.f32.mxu0 0.0
        %1775 = vmatmul.mubr.f32.gmra.mrb[0].mxu0 %v1542
        %v1776 = vpop.f32.mrb[0].mxu0
        %v1777 = vadd.f32 0.0, %v1776
        %v1778 = vpop.f32.mrb[0].mxu0
        %1779 = vmatprep.mubr.f32.mxu0 0.0
        %1780 = vmatmul.mubr.f32.gmra.mrb[0].mxu0 %v1545
        %v1781 = vpop.f32.mrb[0].mxu0
        %v1782 = vadd.f32 0.0, %v1781
        %v1783 = vpop.f32.mrb[0].mxu0
        %1784 = vmatprep.mubr.f32.mxu0 0.0
        %1785 = vmatmul.mubr.f32.gmra.mrb[0].mxu0 %v1548
        %v1786 = vpop.f32.mrb[0].mxu0
        %v1787 = vadd.f32 0.0, %v1786
        %v1788 = vpop.f32.mrb[0].mxu0
        %1789 = vmatprep.mubr.f32.mxu0 0.0
        %1790 = vmatmul.mubr.f32.gmra.mrb[0].mxu0 %v1551
        %v1791 = vpop.f32.mrb[0].mxu0
        %v1792 = vadd.f32 0.0, %v1791
        %v1793 = vpop.f32.mrb[0].mxu0
        %1794 = vmatprep.mubr.f32.mxu0 0.0
        %1795 = vmatmul.mubr.f32.gmra.mrb[0].mxu0 %v1554
        %v1796 = vpop.f32.mrb[0].mxu0
        %v1797 = vadd.f32 0.0, %v1796
        %v1798 = vpop.f32.mrb[0].mxu0
        %1799 = vmatprep.mubr.f32.mxu0 0.0
        %1800 = vmatmul.mubr.f32.gmra.mrb[0].mxu0 %v1557
        %v1801 = vpop.f32.mrb[0].mxu0
        %v1802 = vadd.f32 0.0, %v1801
        %v1803 = vpop.f32.mrb[0].mxu0
        %1804 = vmatprep.mubr.f32.mxu0 0.0
        %1805 = vmatmul.mubr.f32.gmra.mrb[0].mxu0 %v1560
        %v1806 = vpop.f32.mrb[0].mxu0
        %v1807 = vadd.f32 0.0, %v1806
        %v1808 = vpop.f32.mrb[0].mxu0
        %1809 = vdwg.mxu0
        %v1810 = vadd.f32 %v1380, %v1632
        %v1811 = vadd.f32 %v1381, %v1637
        %v1812 = vadd.f32 %v1382, %v1642
        %v1813 = vadd.f32 %v1383, %v1647
        %v1814 = vadd.f32 %v1384, %v1652
        %v1815 = vadd.f32 %v1385, %v1657
        %v1816 = vadd.f32 %v1386, %v1662
        %v1817 = vadd.f32 %v1387, %v1667
        %v1818 = vadd.f32 %v1388, %v1672
        %v1819 = vadd.f32 %v1389, %v1677
        %v1820 = vadd.f32 %v1390, %v1682
        %v1821 = vadd.f32 %v1391, %v1687
        %v1822 = vadd.f32 %v1392, %v1692
        %v1823 = vadd.f32 %v1393, %v1697
        %v1824 = vadd.f32 %v1394, %v1702
        %v1825 = vadd.f32 %v1395, %v1707
        %v1826 = vadd.f32 %v1396, %v1712
        %v1827 = vadd.f32 %v1397, %v1717
        %v1828 = vadd.f32 %v1398, %v1722
        %v1829 = vadd.f32 %v1399, %v1727
        %v1830 = vadd.f32 %v1400, %v1732
        %v1831 = vadd.f32 %v1401, %v1737
        %v1832 = vadd.f32 %v1402, %v1742
        %v1833 = vadd.f32 %v1403, %v1747
        %v1834 = vadd.f32 %v1404, %v1752
        %v1835 = vadd.f32 %v1405, %v1757
        %v1836 = vadd.f32 %v1406, %v1762
        %v1837 = vadd.f32 %v1407, %v1767
        %v1838 = vadd.f32 %v1408, %v1772
        %v1839 = vadd.f32 %v1409, %v1777
        %v1840 = vadd.f32 %v1410, %v1782
        %v1841 = vadd.f32 %v1411, %v1787
        %v1842 = vadd.f32 %v1412, %v1792
        %v1843 = vadd.f32 %v1413, %v1797
        %v1844 = vadd.f32 %v1414, %v1802
        %v1845 = vadd.f32 %v1415, %v1807
        %v1846 = vld [vmem:[%s196 + $0x13] sm:$0xff]
        %v1847 = vld [vmem:[%s196 + $0x1b] sm:$0xff]
        %v1848 = vld [vmem:[%s196 + $0x23] sm:$0xff]
        %v1849 = vld [vmem:[%s196 + $0x2b] sm:$0xff]
        %v1850 = vld [vmem:[%s196 + $0x33] sm:$0xff]
        %v1851 = vld [vmem:[%s196 + $0x3b] sm:$0xff]
        %v1852 = vld [vmem:[%s196 + $0x43] sm:$0xff]
        %v1853 = vld [vmem:[%s196 + $0x4b] sm:$0xff]
        %v1854 = vld [vmem:[%s196 + $0x53] sm:$0xff]
        %v1855 = vld [vmem:[%s196 + $0x5b] sm:$0xff]
        %v1856 = vld [vmem:[%s196 + $0x63] sm:$0xff]
        %v1857 = vld [vmem:[%s196 + $0x6b] sm:$0xff]
        %v1858 = vld [vmem:[%s196 + $0x73] sm:$0xff]
        %v1859 = vld [vmem:[%s196 + $0x7b] sm:$0xff]
        %v1860 = vld [vmem:[%s196 + $0x83] sm:$0xff]
        %v1861 = vld [vmem:[%s196 + $0x8b] sm:$0xff]
        %v1862 = vld [vmem:[%s196 + $0x93] sm:$0xff]
        %v1863 = vld [vmem:[%s196 + $0x9b] sm:$0xff]
        %v1864 = vld [vmem:[%s196 + $0xa3] sm:$0xff]
        %v1865 = vld [vmem:[%s196 + $0xab] sm:$0xff]
        %v1866 = vld [vmem:[%s196 + $0xb3] sm:$0xff]
        %v1867 = vld [vmem:[%s196 + $0xbb] sm:$0xff]
        %v1868 = vld [vmem:[%s196 + $0xc3] sm:$0xff]
        %v1869 = vld [vmem:[%s196 + $0xcb] sm:$0xff]
        %v1870 = vld [vmem:[%s196 + $0xd3] sm:$0xff]
        %v1871 = vld [vmem:[%s196 + $0xdb] sm:$0xff]
        %v1872 = vld [vmem:[%s196 + $0xe3] sm:$0xff]
        %v1873 = vld [vmem:[%s196 + $0xeb] sm:$0xff]
        %v1874 = vld [vmem:[%s196 + $0xf3] sm:$0xff]
        %v1875 = vld [vmem:[%s196 + $0xfb] sm:$0xff]
        %v1876 = vld [vmem:[%s196 + $0x103] sm:$0xff]
        %v1877 = vld [vmem:[%s196 + $0x10b] sm:$0xff]
        %v1878 = vld [vmem:[%s196 + $0x113] sm:$0xff]
        %v1879 = vld [vmem:[%s196 + $0x11b] sm:$0xff]
        %v1880 = vld [vmem:[%s196 + $0x123] sm:$0xff]
        %v1881 = vld [vmem:[%s196 + $0x12b] sm:$0xff]
        %s1882 = scalar_lea.vmem %s1, 16
        %v1883 = vld [vmem:[%s1882] sm:$0xf]
        %v1885 = vsel %vm272, %v1846, 0
        %v1888 = vsel %vm272, %v1847, 0
        %v1891 = vsel %vm272, %v1848, 0
        %v1894 = vsel %vm272, %v1849, 0
        %v1897 = vsel %vm272, %v1850, 0
        %v1900 = vsel %vm272, %v1851, 0
        %v1903 = vsel %vm272, %v1852, 0
        %v1906 = vsel %vm272, %v1853, 0
        %v1909 = vsel %vm272, %v1854, 0
        %v1912 = vsel %vm272, %v1855, 0
        %v1915 = vsel %vm272, %v1856, 0
        %v1918 = vsel %vm272, %v1857, 0
        %v1921 = vsel %vm272, %v1858, 0
        %v1924 = vsel %vm272, %v1859, 0
        %v1927 = vsel %vm272, %v1860, 0
        %v1930 = vsel %vm272, %v1861, 0
        %v1933 = vsel %vm272, %v1862, 0
        %v1936 = vsel %vm272, %v1863, 0
        %v1939 = vsel %vm272, %v1864, 0
        %v1942 = vsel %vm272, %v1865, 0
        %v1945 = vsel %vm272, %v1866, 0
        %v1948 = vsel %vm272, %v1867, 0
        %v1951 = vsel %vm272, %v1868, 0
        %v1954 = vsel %vm272, %v1869, 0
        %v1957 = vsel %vm272, %v1870, 0
        %v1960 = vsel %vm272, %v1871, 0
        %v1963 = vsel %vm272, %v1872, 0
        %v1966 = vsel %vm272, %v1873, 0
        %v1969 = vsel %vm272, %v1874, 0
        %v1972 = vsel %vm272, %v1875, 0
        %v1975 = vsel %vm272, %v1876, 0
        %v1978 = vsel %vm272, %v1877, 0
        %v1981 = vsel %vm272, %v1878, 0
        %v1984 = vsel %vm272, %v1879, 0
        %v1987 = vsel %vm272, %v1880, 0
        %v1990 = vsel %vm272, %v1881, 0
        %v1993 = vsel %vm381, %v1883, 0
        %1995 = vmatprep.subr.mxu0 0.0
        %1996 = vmatpush1.msra.mxu0 %v1993
        %1997 = vmatprep.subr.mxu0 0.0
        %1998 = vmatpush1.msra.mxu0 0.0
        %1999 = vmatprep.subr.mxu0 0.0
        %2000 = vmatpush1.msra.mxu0 0.0
        %2001 = vmatprep.subr.mxu0 0.0
        %2002 = vmatpush1.msra.mxu0 0.0
        %2003 = vmatprep.subr.mxu0 0.0
        %2004 = vmatpush1.msra.mxu0 0.0
        %2005 = vmatprep.subr.mxu0 0.0
        %2006 = vmatpush1.msra.mxu0 0.0
        %2007 = vmatprep.subr.mxu0 0.0
        %2008 = vmatpush1.msra.mxu0 0.0
        %2009 = vmatprep.subr.mxu0 0.0
        %2010 = vmatpush1.msra.mxu0 0.0
        %2011 = vmatprep.subr.mxu0 0.0
        %2012 = vmatpush1.msra.mxu0 0.0
        %2013 = vmatprep.subr.mxu0 0.0
        %2014 = vmatpush1.msra.mxu0 0.0
        %2015 = vmatprep.subr.mxu0 0.0
        %2016 = vmatpush1.msra.mxu0 0.0
        %2017 = vmatprep.subr.mxu0 0.0
        %2018 = vmatpush1.msra.mxu0 0.0
        %2019 = vmatprep.subr.mxu0 0.0
        %2020 = vmatpush1.msra.mxu0 0.0
        %2021 = vmatprep.subr.mxu0 0.0
        %2022 = vmatpush1.msra.mxu0 0.0
        %2023 = vmatprep.subr.mxu0 0.0
        %2024 = vmatpush1.msra.mxu0 0.0
        %2025 = vmatprep.subr.mxu0 0.0
        %2026 = vmatpush1.msra.mxu0 0.0
        %2027 = vmatprep.subr.mxu0 0.0
        %2028 = vmatpush1.msra.mxu0 0.0
        %2029 = vmatprep.subr.mxu0 0.0
        %2030 = vmatpush1.msra.mxu0 0.0
        %2031 = vmatprep.subr.mxu0 0.0
        %2032 = vmatpush1.msra.mxu0 0.0
        %2033 = vmatprep.subr.mxu0 0.0
        %2034 = vmatpush1.msra.mxu0 0.0
        %2035 = vmatprep.subr.mxu0 0.0
        %2036 = vmatpush1.msra.mxu0 0.0
        %2037 = vmatprep.subr.mxu0 0.0
        %2038 = vmatpush1.msra.mxu0 0.0
        %2039 = vmatprep.subr.mxu0 0.0
        %2040 = vmatpush1.msra.mxu0 0.0
        %2041 = vmatprep.subr.mxu0 0.0
        %2042 = vmatpush1.msra.mxu0 0.0
        %2043 = vmatprep.subr.mxu0 0.0
        %2044 = vmatpush1.msra.mxu0 0.0
        %2045 = vmatprep.subr.mxu0 0.0
        %2046 = vmatpush1.msra.mxu0 0.0
        %2047 = vmatprep.subr.mxu0 0.0
        %2048 = vmatpush1.msra.mxu0 0.0
        %2049 = vmatprep.subr.mxu0 0.0
        %2050 = vmatpush1.msra.mxu0 0.0
        %2051 = vmatprep.subr.mxu0 0.0
        %2052 = vmatpush1.msra.mxu0 0.0
        %2053 = vmatprep.subr.mxu0 0.0
        %2054 = vmatpush1.msra.mxu0 0.0
        %2055 = vmatprep.subr.mxu0 0.0
        %2056 = vmatpush1.msra.mxu0 0.0
        %2057 = vmatprep.subr.mxu0 0.0
        %2058 = vmatpush1.msra.mxu0 0.0
        %2059 = vmatprep.mubr.f32.mxu0 0.0
        %2060 = vmatmul.mubr.f32.gmra.mrb[0].mxu0 %v1885
        %v2061 = vpop.f32.mrb[0].mxu0
        %v2062 = vadd.f32 0.0, %v2061
        %v2063 = vpop.f32.mrb[0].mxu0
        %2064 = vmatprep.mubr.f32.mxu0 0.0
        %2065 = vmatmul.mubr.f32.gmra.mrb[0].mxu0 %v1888
        %v2066 = vpop.f32.mrb[0].mxu0
        %v2067 = vadd.f32 0.0, %v2066
        %v2068 = vpop.f32.mrb[0].mxu0
        %2069 = vmatprep.mubr.f32.mxu0 0.0
        %2070 = vmatmul.mubr.f32.gmra.mrb[0].mxu0 %v1891
        %v2071 = vpop.f32.mrb[0].mxu0
        %v2072 = vadd.f32 0.0, %v2071
        %v2073 = vpop.f32.mrb[0].mxu0
        %2074 = vmatprep.mubr.f32.mxu0 0.0
        %2075 = vmatmul.mubr.f32.gmra.mrb[0].mxu0 %v1894
        %v2076 = vpop.f32.mrb[0].mxu0
        %v2077 = vadd.f32 0.0, %v2076
        %v2078 = vpop.f32.mrb[0].mxu0
        %2079 = vmatprep.mubr.f32.mxu0 0.0
        %2080 = vmatmul.mubr.f32.gmra.mrb[0].mxu0 %v1897
        %v2081 = vpop.f32.mrb[0].mxu0
        %v2082 = vadd.f32 0.0, %v2081
        %v2083 = vpop.f32.mrb[0].mxu0
        %2084 = vmatprep.mubr.f32.mxu0 0.0
        %2085 = vmatmul.mubr.f32.gmra.mrb[0].mxu0 %v1900
        %v2086 = vpop.f32.mrb[0].mxu0
        %v2087 = vadd.f32 0.0, %v2086
        %v2088 = vpop.f32.mrb[0].mxu0
        %2089 = vmatprep.mubr.f32.mxu0 0.0
        %2090 = vmatmul.mubr.f32.gmra.mrb[0].mxu0 %v1903
        %v2091 = vpop.f32.mrb[0].mxu0
        %v2092 = vadd.f32 0.0, %v2091
        %v2093 = vpop.f32.mrb[0].mxu0
        %2094 = vmatprep.mubr.f32.mxu0 0.0
        %2095 = vmatmul.mubr.f32.gmra.mrb[0].mxu0 %v1906
        %v2096 = vpop.f32.mrb[0].mxu0
        %v2097 = vadd.f32 0.0, %v2096
        %v2098 = vpop.f32.mrb[0].mxu0
        %2099 = vmatprep.mubr.f32.mxu0 0.0
        %2100 = vmatmul.mubr.f32.gmra.mrb[0].mxu0 %v1909
        %v2101 = vpop.f32.mrb[0].mxu0
        %v2102 = vadd.f32 0.0, %v2101
        %v2103 = vpop.f32.mrb[0].mxu0
        %2104 = vmatprep.mubr.f32.mxu0 0.0
        %2105 = vmatmul.mubr.f32.gmra.mrb[0].mxu0 %v1912
        %v2106 = vpop.f32.mrb[0].mxu0
        %v2107 = vadd.f32 0.0, %v2106
        %v2108 = vpop.f32.mrb[0].mxu0
        %2109 = vmatprep.mubr.f32.mxu0 0.0
        %2110 = vmatmul.mubr.f32.gmra.mrb[0].mxu0 %v1915
        %v2111 = vpop.f32.mrb[0].mxu0
        %v2112 = vadd.f32 0.0, %v2111
        %v2113 = vpop.f32.mrb[0].mxu0
        %2114 = vmatprep.mubr.f32.mxu0 0.0
        %2115 = vmatmul.mubr.f32.gmra.mrb[0].mxu0 %v1918
        %v2116 = vpop.f32.mrb[0].mxu0
        %v2117 = vadd.f32 0.0, %v2116
        %v2118 = vpop.f32.mrb[0].mxu0
        %2119 = vmatprep.mubr.f32.mxu0 0.0
        %2120 = vmatmul.mubr.f32.gmra.mrb[0].mxu0 %v1921
        %v2121 = vpop.f32.mrb[0].mxu0
        %v2122 = vadd.f32 0.0, %v2121
        %v2123 = vpop.f32.mrb[0].mxu0
        %2124 = vmatprep.mubr.f32.mxu0 0.0
        %2125 = vmatmul.mubr.f32.gmra.mrb[0].mxu0 %v1924
        %v2126 = vpop.f32.mrb[0].mxu0
        %v2127 = vadd.f32 0.0, %v2126
        %v2128 = vpop.f32.mrb[0].mxu0
        %2129 = vmatprep.mubr.f32.mxu0 0.0
        %2130 = vmatmul.mubr.f32.gmra.mrb[0].mxu0 %v1927
        %v2131 = vpop.f32.mrb[0].mxu0
        %v2132 = vadd.f32 0.0, %v2131
        %v2133 = vpop.f32.mrb[0].mxu0
        %2134 = vmatprep.mubr.f32.mxu0 0.0
        %2135 = vmatmul.mubr.f32.gmra.mrb[0].mxu0 %v1930
        %v2136 = vpop.f32.mrb[0].mxu0
        %v2137 = vadd.f32 0.0, %v2136
        %v2138 = vpop.f32.mrb[0].mxu0
        %2139 = vmatprep.mubr.f32.mxu0 0.0
        %2140 = vmatmul.mubr.f32.gmra.mrb[0].mxu0 %v1933
        %v2141 = vpop.f32.mrb[0].mxu0
        %v2142 = vadd.f32 0.0, %v2141
        %v2143 = vpop.f32.mrb[0].mxu0
        %2144 = vmatprep.mubr.f32.mxu0 0.0
        %2145 = vmatmul.mubr.f32.gmra.mrb[0].mxu0 %v1936
        %v2146 = vpop.f32.mrb[0].mxu0
        %v2147 = vadd.f32 0.0, %v2146
        %v2148 = vpop.f32.mrb[0].mxu0
        %2149 = vmatprep.mubr.f32.mxu0 0.0
        %2150 = vmatmul.mubr.f32.gmra.mrb[0].mxu0 %v1939
        %v2151 = vpop.f32.mrb[0].mxu0
        %v2152 = vadd.f32 0.0, %v2151
        %v2153 = vpop.f32.mrb[0].mxu0
        %2154 = vmatprep.mubr.f32.mxu0 0.0
        %2155 = vmatmul.mubr.f32.gmra.mrb[0].mxu0 %v1942
        %v2156 = vpop.f32.mrb[0].mxu0
        %v2157 = vadd.f32 0.0, %v2156
        %v2158 = vpop.f32.mrb[0].mxu0
        %2159 = vmatprep.mubr.f32.mxu0 0.0
        %2160 = vmatmul.mubr.f32.gmra.mrb[0].mxu0 %v1945
        %v2161 = vpop.f32.mrb[0].mxu0
        %v2162 = vadd.f32 0.0, %v2161
        %v2163 = vpop.f32.mrb[0].mxu0
        %2164 = vmatprep.mubr.f32.mxu0 0.0
        %2165 = vmatmul.mubr.f32.gmra.mrb[0].mxu0 %v1948
        %v2166 = vpop.f32.mrb[0].mxu0
        %v2167 = vadd.f32 0.0, %v2166
        %v2168 = vpop.f32.mrb[0].mxu0
        %2169 = vmatprep.mubr.f32.mxu0 0.0
        %2170 = vmatmul.mubr.f32.gmra.mrb[0].mxu0 %v1951
        %v2171 = vpop.f32.mrb[0].mxu0
        %v2172 = vadd.f32 0.0, %v2171
        %v2173 = vpop.f32.mrb[0].mxu0
        %2174 = vmatprep.mubr.f32.mxu0 0.0
        %2175 = vmatmul.mubr.f32.gmra.mrb[0].mxu0 %v1954
        %v2176 = vpop.f32.mrb[0].mxu0
        %v2177 = vadd.f32 0.0, %v2176
        %v2178 = vpop.f32.mrb[0].mxu0
        %2179 = vmatprep.mubr.f32.mxu0 0.0
        %2180 = vmatmul.mubr.f32.gmra.mrb[0].mxu0 %v1957
        %v2181 = vpop.f32.mrb[0].mxu0
        %v2182 = vadd.f32 0.0, %v2181
        %v2183 = vpop.f32.mrb[0].mxu0
        %2184 = vmatprep.mubr.f32.mxu0 0.0
        %2185 = vmatmul.mubr.f32.gmra.mrb[0].mxu0 %v1960
        %v2186 = vpop.f32.mrb[0].mxu0
        %v2187 = vadd.f32 0.0, %v2186
        %v2188 = vpop.f32.mrb[0].mxu0
        %2189 = vmatprep.mubr.f32.mxu0 0.0
        %2190 = vmatmul.mubr.f32.gmra.mrb[0].mxu0 %v1963
        %v2191 = vpop.f32.mrb[0].mxu0
        %v2192 = vadd.f32 0.0, %v2191
        %v2193 = vpop.f32.mrb[0].mxu0
        %2194 = vmatprep.mubr.f32.mxu0 0.0
        %2195 = vmatmul.mubr.f32.gmra.mrb[0].mxu0 %v1966
        %v2196 = vpop.f32.mrb[0].mxu0
        %v2197 = vadd.f32 0.0, %v2196
        %v2198 = vpop.f32.mrb[0].mxu0
        %2199 = vmatprep.mubr.f32.mxu0 0.0
        %2200 = vmatmul.mubr.f32.gmra.mrb[0].mxu0 %v1969
        %v2201 = vpop.f32.mrb[0].mxu0
        %v2202 = vadd.f32 0.0, %v2201
        %v2203 = vpop.f32.mrb[0].mxu0
        %2204 = vmatprep.mubr.f32.mxu0 0.0
        %2205 = vmatmul.mubr.f32.gmra.mrb[0].mxu0 %v1972
        %v2206 = vpop.f32.mrb[0].mxu0
        %v2207 = vadd.f32 0.0, %v2206
        %v2208 = vpop.f32.mrb[0].mxu0
        %2209 = vmatprep.mubr.f32.mxu0 0.0
        %2210 = vmatmul.mubr.f32.gmra.mrb[0].mxu0 %v1975
        %v2211 = vpop.f32.mrb[0].mxu0
        %v2212 = vadd.f32 0.0, %v2211
        %v2213 = vpop.f32.mrb[0].mxu0
        %2214 = vmatprep.mubr.f32.mxu0 0.0
        %2215 = vmatmul.mubr.f32.gmra.mrb[0].mxu0 %v1978
        %v2216 = vpop.f32.mrb[0].mxu0
        %v2217 = vadd.f32 0.0, %v2216
        %v2218 = vpop.f32.mrb[0].mxu0
        %2219 = vmatprep.mubr.f32.mxu0 0.0
        %2220 = vmatmul.mubr.f32.gmra.mrb[0].mxu0 %v1981
        %v2221 = vpop.f32.mrb[0].mxu0
        %v2222 = vadd.f32 0.0, %v2221
        %v2223 = vpop.f32.mrb[0].mxu0
        %2224 = vmatprep.mubr.f32.mxu0 0.0
        %2225 = vmatmul.mubr.f32.gmra.mrb[0].mxu0 %v1984
        %v2226 = vpop.f32.mrb[0].mxu0
        %v2227 = vadd.f32 0.0, %v2226
        %v2228 = vpop.f32.mrb[0].mxu0
        %2229 = vmatprep.mubr.f32.mxu0 0.0
        %2230 = vmatmul.mubr.f32.gmra.mrb[0].mxu0 %v1987
        %v2231 = vpop.f32.mrb[0].mxu0
        %v2232 = vadd.f32 0.0, %v2231
        %v2233 = vpop.f32.mrb[0].mxu0
        %2234 = vmatprep.mubr.f32.mxu0 0.0
        %2235 = vmatmul.mubr.f32.gmra.mrb[0].mxu0 %v1990
        %v2236 = vpop.f32.mrb[0].mxu0
        %v2237 = vadd.f32 0.0, %v2236
        %v2238 = vpop.f32.mrb[0].mxu0
        %2239 = vdwg.mxu0
        %v2240 = vadd.f32 %v1810, %v2062
        %v2241 = vadd.f32 %v1811, %v2067
        %v2242 = vadd.f32 %v1812, %v2072
        %v2243 = vadd.f32 %v1813, %v2077
        %v2244 = vadd.f32 %v1814, %v2082
        %v2245 = vadd.f32 %v1815, %v2087
        %v2246 = vadd.f32 %v1816, %v2092
        %v2247 = vadd.f32 %v1817, %v2097
        %v2248 = vadd.f32 %v1818, %v2102
        %v2249 = vadd.f32 %v1819, %v2107
        %v2250 = vadd.f32 %v1820, %v2112
        %v2251 = vadd.f32 %v1821, %v2117
        %v2252 = vadd.f32 %v1822, %v2122
        %v2253 = vadd.f32 %v1823, %v2127
        %v2254 = vadd.f32 %v1824, %v2132
        %v2255 = vadd.f32 %v1825, %v2137
        %v2256 = vadd.f32 %v1826, %v2142
        %v2257 = vadd.f32 %v1827, %v2147
        %v2258 = vadd.f32 %v1828, %v2152
        %v2259 = vadd.f32 %v1829, %v2157
        %v2260 = vadd.f32 %v1830, %v2162
        %v2261 = vadd.f32 %v1831, %v2167
        %v2262 = vadd.f32 %v1832, %v2172
        %v2263 = vadd.f32 %v1833, %v2177
        %v2264 = vadd.f32 %v1834, %v2182
        %v2265 = vadd.f32 %v1835, %v2187
        %v2266 = vadd.f32 %v1836, %v2192
        %v2267 = vadd.f32 %v1837, %v2197
        %v2268 = vadd.f32 %v1838, %v2202
        %v2269 = vadd.f32 %v1839, %v2207
        %v2270 = vadd.f32 %v1840, %v2212
        %v2271 = vadd.f32 %v1841, %v2217
        %v2272 = vadd.f32 %v1842, %v2222
        %v2273 = vadd.f32 %v1843, %v2227
        %v2274 = vadd.f32 %v1844, %v2232
        %v2275 = vadd.f32 %v1845, %v2237
        %v2276 = vld [vmem:[%s196 + $0x14] sm:$0xff]
        %v2277 = vld [vmem:[%s196 + $0x1c] sm:$0xff]
        %v2278 = vld [vmem:[%s196 + $0x24] sm:$0xff]
        %v2279 = vld [vmem:[%s196 + $0x2c] sm:$0xff]
        %v2280 = vld [vmem:[%s196 + $0x34] sm:$0xff]
        %v2281 = vld [vmem:[%s196 + $0x3c] sm:$0xff]
        %v2282 = vld [vmem:[%s196 + $0x44] sm:$0xff]
        %v2283 = vld [vmem:[%s196 + $0x4c] sm:$0xff]
        %v2284 = vld [vmem:[%s196 + $0x54] sm:$0xff]
        %v2285 = vld [vmem:[%s196 + $0x5c] sm:$0xff]
        %v2286 = vld [vmem:[%s196 + $0x64] sm:$0xff]
        %v2287 = vld [vmem:[%s196 + $0x6c] sm:$0xff]
        %v2288 = vld [vmem:[%s196 + $0x74] sm:$0xff]
        %v2289 = vld [vmem:[%s196 + $0x7c] sm:$0xff]
        %v2290 = vld [vmem:[%s196 + $0x84] sm:$0xff]
        %v2291 = vld [vmem:[%s196 + $0x8c] sm:$0xff]
        %v2292 = vld [vmem:[%s196 + $0x94] sm:$0xff]
        %v2293 = vld [vmem:[%s196 + $0x9c] sm:$0xff]
        %v2294 = vld [vmem:[%s196 + $0xa4] sm:$0xff]
        %v2295 = vld [vmem:[%s196 + $0xac] sm:$0xff]
        %v2296 = vld [vmem:[%s196 + $0xb4] sm:$0xff]
        %v2297 = vld [vmem:[%s196 + $0xbc] sm:$0xff]
        %v2298 = vld [vmem:[%s196 + $0xc4] sm:$0xff]
        %v2299 = vld [vmem:[%s196 + $0xcc] sm:$0xff]
        %v2300 = vld [vmem:[%s196 + $0xd4] sm:$0xff]
        %v2301 = vld [vmem:[%s196 + $0xdc] sm:$0xff]
        %v2302 = vld [vmem:[%s196 + $0xe4] sm:$0xff]
        %v2303 = vld [vmem:[%s196 + $0xec] sm:$0xff]
        %v2304 = vld [vmem:[%s196 + $0xf4] sm:$0xff]
        %v2305 = vld [vmem:[%s196 + $0xfc] sm:$0xff]
        %v2306 = vld [vmem:[%s196 + $0x104] sm:$0xff]
        %v2307 = vld [vmem:[%s196 + $0x10c] sm:$0xff]
        %v2308 = vld [vmem:[%s196 + $0x114] sm:$0xff]
        %v2309 = vld [vmem:[%s196 + $0x11c] sm:$0xff]
        %v2310 = vld [vmem:[%s196 + $0x124] sm:$0xff]
        %v2311 = vld [vmem:[%s196 + $0x12c] sm:$0xff]
        %s2312 = scalar_lea.vmem %s1, 20
        %v2313 = vld [vmem:[%s2312] sm:$0xf]
        %v2315 = vsel %vm272, %v2276, 0
        %v2318 = vsel %vm272, %v2277, 0
        %v2321 = vsel %vm272, %v2278, 0
        %v2324 = vsel %vm272, %v2279, 0
        %v2327 = vsel %vm272, %v2280, 0
        %v2330 = vsel %vm272, %v2281, 0
        %v2333 = vsel %vm272, %v2282, 0
        %v2336 = vsel %vm272, %v2283, 0
        %v2339 = vsel %vm272, %v2284, 0
        %v2342 = vsel %vm272, %v2285, 0
        %v2345 = vsel %vm272, %v2286, 0
        %v2348 = vsel %vm272, %v2287, 0
        %v2351 = vsel %vm272, %v2288, 0
        %v2354 = vsel %vm272, %v2289, 0
        %v2357 = vsel %vm272, %v2290, 0
        %v2360 = vsel %vm272, %v2291, 0
        %v2363 = vsel %vm272, %v2292, 0
        %v2366 = vsel %vm272, %v2293, 0
        %v2369 = vsel %vm272, %v2294, 0
        %v2372 = vsel %vm272, %v2295, 0
        %v2375 = vsel %vm272, %v2296, 0
        %v2378 = vsel %vm272, %v2297, 0
        %v2381 = vsel %vm272, %v2298, 0
        %v2384 = vsel %vm272, %v2299, 0
        %v2387 = vsel %vm272, %v2300, 0
        %v2390 = vsel %vm272, %v2301, 0
        %v2393 = vsel %vm272, %v2302, 0
        %v2396 = vsel %vm272, %v2303, 0
        %v2399 = vsel %vm272, %v2304, 0
        %v2402 = vsel %vm272, %v2305, 0
        %v2405 = vsel %vm272, %v2306, 0
        %v2408 = vsel %vm272, %v2307, 0
        %v2411 = vsel %vm272, %v2308, 0
        %v2414 = vsel %vm272, %v2309, 0
        %v2417 = vsel %vm272, %v2310, 0
        %v2420 = vsel %vm272, %v2311, 0
        %v2423 = vsel %vm381, %v2313, 0
        %2425 = vmatprep.subr.mxu0 0.0
        %2426 = vmatpush1.msra.mxu0 %v2423
        %2427 = vmatprep.subr.mxu0 0.0
        %2428 = vmatpush1.msra.mxu0 0.0
        %2429 = vmatprep.subr.mxu0 0.0
        %2430 = vmatpush1.msra.mxu0 0.0
        %2431 = vmatprep.subr.mxu0 0.0
        %2432 = vmatpush1.msra.mxu0 0.0
        %2433 = vmatprep.subr.mxu0 0.0
        %2434 = vmatpush1.msra.mxu0 0.0
        %2435 = vmatprep.subr.mxu0 0.0
        %2436 = vmatpush1.msra.mxu0 0.0
        %2437 = vmatprep.subr.mxu0 0.0
        %2438 = vmatpush1.msra.mxu0 0.0
        %2439 = vmatprep.subr.mxu0 0.0
        %2440 = vmatpush1.msra.mxu0 0.0
        %2441 = vmatprep.subr.mxu0 0.0
        %2442 = vmatpush1.msra.mxu0 0.0
        %2443 = vmatprep.subr.mxu0 0.0
        %2444 = vmatpush1.msra.mxu0 0.0
        %2445 = vmatprep.subr.mxu0 0.0
        %2446 = vmatpush1.msra.mxu0 0.0
        %2447 = vmatprep.subr.mxu0 0.0
        %2448 = vmatpush1.msra.mxu0 0.0
        %2449 = vmatprep.subr.mxu0 0.0
        %2450 = vmatpush1.msra.mxu0 0.0
        %2451 = vmatprep.subr.mxu0 0.0
        %2452 = vmatpush1.msra.mxu0 0.0
        %2453 = vmatprep.subr.mxu0 0.0
        %2454 = vmatpush1.msra.mxu0 0.0
        %2455 = vmatprep.subr.mxu0 0.0
        %2456 = vmatpush1.msra.mxu0 0.0
        %2457 = vmatprep.subr.mxu0 0.0
        %2458 = vmatpush1.msra.mxu0 0.0
        %2459 = vmatprep.subr.mxu0 0.0
        %2460 = vmatpush1.msra.mxu0 0.0
        %2461 = vmatprep.subr.mxu0 0.0
        %2462 = vmatpush1.msra.mxu0 0.0
        %2463 = vmatprep.subr.mxu0 0.0
        %2464 = vmatpush1.msra.mxu0 0.0
        %2465 = vmatprep.subr.mxu0 0.0
        %2466 = vmatpush1.msra.mxu0 0.0
        %2467 = vmatprep.subr.mxu0 0.0
        %2468 = vmatpush1.msra.mxu0 0.0
        %2469 = vmatprep.subr.mxu0 0.0
        %2470 = vmatpush1.msra.mxu0 0.0
        %2471 = vmatprep.subr.mxu0 0.0
        %2472 = vmatpush1.msra.mxu0 0.0
        %2473 = vmatprep.subr.mxu0 0.0
        %2474 = vmatpush1.msra.mxu0 0.0
        %2475 = vmatprep.subr.mxu0 0.0
        %2476 = vmatpush1.msra.mxu0 0.0
        %2477 = vmatprep.subr.mxu0 0.0
        %2478 = vmatpush1.msra.mxu0 0.0
        %2479 = vmatprep.subr.mxu0 0.0
        %2480 = vmatpush1.msra.mxu0 0.0
        %2481 = vmatprep.subr.mxu0 0.0
        %2482 = vmatpush1.msra.mxu0 0.0
        %2483 = vmatprep.subr.mxu0 0.0
        %2484 = vmatpush1.msra.mxu0 0.0
        %2485 = vmatprep.subr.mxu0 0.0
        %2486 = vmatpush1.msra.mxu0 0.0
        %2487 = vmatprep.subr.mxu0 0.0
        %2488 = vmatpush1.msra.mxu0 0.0
        %2489 = vmatprep.mubr.f32.mxu0 0.0
        %2490 = vmatmul.mubr.f32.gmra.mrb[0].mxu0 %v2315
        %v2491 = vpop.f32.mrb[0].mxu0
        %v2492 = vadd.f32 0.0, %v2491
        %v2493 = vpop.f32.mrb[0].mxu0
        %2494 = vmatprep.mubr.f32.mxu0 0.0
        %2495 = vmatmul.mubr.f32.gmra.mrb[0].mxu0 %v2318
        %v2496 = vpop.f32.mrb[0].mxu0
        %v2497 = vadd.f32 0.0, %v2496
        %v2498 = vpop.f32.mrb[0].mxu0
        %2499 = vmatprep.mubr.f32.mxu0 0.0
        %2500 = vmatmul.mubr.f32.gmra.mrb[0].mxu0 %v2321
        %v2501 = vpop.f32.mrb[0].mxu0
        %v2502 = vadd.f32 0.0, %v2501
        %v2503 = vpop.f32.mrb[0].mxu0
        %2504 = vmatprep.mubr.f32.mxu0 0.0
        %2505 = vmatmul.mubr.f32.gmra.mrb[0].mxu0 %v2324
        %v2506 = vpop.f32.mrb[0].mxu0
        %v2507 = vadd.f32 0.0, %v2506
        %v2508 = vpop.f32.mrb[0].mxu0
        %2509 = vmatprep.mubr.f32.mxu0 0.0
        %2510 = vmatmul.mubr.f32.gmra.mrb[0].mxu0 %v2327
        %v2511 = vpop.f32.mrb[0].mxu0
        %v2512 = vadd.f32 0.0, %v2511
        %v2513 = vpop.f32.mrb[0].mxu0
        %2514 = vmatprep.mubr.f32.mxu0 0.0
        %2515 = vmatmul.mubr.f32.gmra.mrb[0].mxu0 %v2330
        %v2516 = vpop.f32.mrb[0].mxu0
        %v2517 = vadd.f32 0.0, %v2516
        %v2518 = vpop.f32.mrb[0].mxu0
        %2519 = vmatprep.mubr.f32.mxu0 0.0
        %2520 = vmatmul.mubr.f32.gmra.mrb[0].mxu0 %v2333
        %v2521 = vpop.f32.mrb[0].mxu0
        %v2522 = vadd.f32 0.0, %v2521
        %v2523 = vpop.f32.mrb[0].mxu0
        %2524 = vmatprep.mubr.f32.mxu0 0.0
        %2525 = vmatmul.mubr.f32.gmra.mrb[0].mxu0 %v2336
        %v2526 = vpop.f32.mrb[0].mxu0
        %v2527 = vadd.f32 0.0, %v2526
        %v2528 = vpop.f32.mrb[0].mxu0
        %2529 = vmatprep.mubr.f32.mxu0 0.0
        %2530 = vmatmul.mubr.f32.gmra.mrb[0].mxu0 %v2339
        %v2531 = vpop.f32.mrb[0].mxu0
        %v2532 = vadd.f32 0.0, %v2531
        %v2533 = vpop.f32.mrb[0].mxu0
        %2534 = vmatprep.mubr.f32.mxu0 0.0
        %2535 = vmatmul.mubr.f32.gmra.mrb[0].mxu0 %v2342
        %v2536 = vpop.f32.mrb[0].mxu0
        %v2537 = vadd.f32 0.0, %v2536
        %v2538 = vpop.f32.mrb[0].mxu0
        %2539 = vmatprep.mubr.f32.mxu0 0.0
        %2540 = vmatmul.mubr.f32.gmra.mrb[0].mxu0 %v2345
        %v2541 = vpop.f32.mrb[0].mxu0
        %v2542 = vadd.f32 0.0, %v2541
        %v2543 = vpop.f32.mrb[0].mxu0
        %2544 = vmatprep.mubr.f32.mxu0 0.0
        %2545 = vmatmul.mubr.f32.gmra.mrb[0].mxu0 %v2348
        %v2546 = vpop.f32.mrb[0].mxu0
        %v2547 = vadd.f32 0.0, %v2546
        %v2548 = vpop.f32.mrb[0].mxu0
        %2549 = vmatprep.mubr.f32.mxu0 0.0
        %2550 = vmatmul.mubr.f32.gmra.mrb[0].mxu0 %v2351
        %v2551 = vpop.f32.mrb[0].mxu0
        %v2552 = vadd.f32 0.0, %v2551
        %v2553 = vpop.f32.mrb[0].mxu0
        %2554 = vmatprep.mubr.f32.mxu0 0.0
        %2555 = vmatmul.mubr.f32.gmra.mrb[0].mxu0 %v2354
        %v2556 = vpop.f32.mrb[0].mxu0
        %v2557 = vadd.f32 0.0, %v2556
        %v2558 = vpop.f32.mrb[0].mxu0
        %2559 = vmatprep.mubr.f32.mxu0 0.0
        %2560 = vmatmul.mubr.f32.gmra.mrb[0].mxu0 %v2357
        %v2561 = vpop.f32.mrb[0].mxu0
        %v2562 = vadd.f32 0.0, %v2561
        %v2563 = vpop.f32.mrb[0].mxu0
        %2564 = vmatprep.mubr.f32.mxu0 0.0
        %2565 = vmatmul.mubr.f32.gmra.mrb[0].mxu0 %v2360
        %v2566 = vpop.f32.mrb[0].mxu0
        %v2567 = vadd.f32 0.0, %v2566
        %v2568 = vpop.f32.mrb[0].mxu0
        %2569 = vmatprep.mubr.f32.mxu0 0.0
        %2570 = vmatmul.mubr.f32.gmra.mrb[0].mxu0 %v2363
        %v2571 = vpop.f32.mrb[0].mxu0
        %v2572 = vadd.f32 0.0, %v2571
        %v2573 = vpop.f32.mrb[0].mxu0
        %2574 = vmatprep.mubr.f32.mxu0 0.0
        %2575 = vmatmul.mubr.f32.gmra.mrb[0].mxu0 %v2366
        %v2576 = vpop.f32.mrb[0].mxu0
        %v2577 = vadd.f32 0.0, %v2576
        %v2578 = vpop.f32.mrb[0].mxu0
        %2579 = vmatprep.mubr.f32.mxu0 0.0
        %2580 = vmatmul.mubr.f32.gmra.mrb[0].mxu0 %v2369
        %v2581 = vpop.f32.mrb[0].mxu0
        %v2582 = vadd.f32 0.0, %v2581
        %v2583 = vpop.f32.mrb[0].mxu0
        %2584 = vmatprep.mubr.f32.mxu0 0.0
        %2585 = vmatmul.mubr.f32.gmra.mrb[0].mxu0 %v2372
        %v2586 = vpop.f32.mrb[0].mxu0
        %v2587 = vadd.f32 0.0, %v2586
        %v2588 = vpop.f32.mrb[0].mxu0
        %2589 = vmatprep.mubr.f32.mxu0 0.0
        %2590 = vmatmul.mubr.f32.gmra.mrb[0].mxu0 %v2375
        %v2591 = vpop.f32.mrb[0].mxu0
        %v2592 = vadd.f32 0.0, %v2591
        %v2593 = vpop.f32.mrb[0].mxu0
        %2594 = vmatprep.mubr.f32.mxu0 0.0
        %2595 = vmatmul.mubr.f32.gmra.mrb[0].mxu0 %v2378
        %v2596 = vpop.f32.mrb[0].mxu0
        %v2597 = vadd.f32 0.0, %v2596
        %v2598 = vpop.f32.mrb[0].mxu0
        %2599 = vmatprep.mubr.f32.mxu0 0.0
        %2600 = vmatmul.mubr.f32.gmra.mrb[0].mxu0 %v2381
        %v2601 = vpop.f32.mrb[0].mxu0
        %v2602 = vadd.f32 0.0, %v2601
        %v2603 = vpop.f32.mrb[0].mxu0
        %2604 = vmatprep.mubr.f32.mxu0 0.0
        %2605 = vmatmul.mubr.f32.gmra.mrb[0].mxu0 %v2384
        %v2606 = vpop.f32.mrb[0].mxu0
        %v2607 = vadd.f32 0.0, %v2606
        %v2608 = vpop.f32.mrb[0].mxu0
        %2609 = vmatprep.mubr.f32.mxu0 0.0
        %2610 = vmatmul.mubr.f32.gmra.mrb[0].mxu0 %v2387
        %v2611 = vpop.f32.mrb[0].mxu0
        %v2612 = vadd.f32 0.0, %v2611
        %v2613 = vpop.f32.mrb[0].mxu0
        %2614 = vmatprep.mubr.f32.mxu0 0.0
        %2615 = vmatmul.mubr.f32.gmra.mrb[0].mxu0 %v2390
        %v2616 = vpop.f32.mrb[0].mxu0
        %v2617 = vadd.f32 0.0, %v2616
        %v2618 = vpop.f32.mrb[0].mxu0
        %2619 = vmatprep.mubr.f32.mxu0 0.0
        %2620 = vmatmul.mubr.f32.gmra.mrb[0].mxu0 %v2393
        %v2621 = vpop.f32.mrb[0].mxu0
        %v2622 = vadd.f32 0.0, %v2621
        %v2623 = vpop.f32.mrb[0].mxu0
        %2624 = vmatprep.mubr.f32.mxu0 0.0
        %2625 = vmatmul.mubr.f32.gmra.mrb[0].mxu0 %v2396
        %v2626 = vpop.f32.mrb[0].mxu0
        %v2627 = vadd.f32 0.0, %v2626
        %v2628 = vpop.f32.mrb[0].mxu0
        %2629 = vmatprep.mubr.f32.mxu0 0.0
        %2630 = vmatmul.mubr.f32.gmra.mrb[0].mxu0 %v2399
        %v2631 = vpop.f32.mrb[0].mxu0
        %v2632 = vadd.f32 0.0, %v2631
        %v2633 = vpop.f32.mrb[0].mxu0
        %2634 = vmatprep.mubr.f32.mxu0 0.0
        %2635 = vmatmul.mubr.f32.gmra.mrb[0].mxu0 %v2402
        %v2636 = vpop.f32.mrb[0].mxu0
        %v2637 = vadd.f32 0.0, %v2636
        %v2638 = vpop.f32.mrb[0].mxu0
        %2639 = vmatprep.mubr.f32.mxu0 0.0
        %2640 = vmatmul.mubr.f32.gmra.mrb[0].mxu0 %v2405
        %v2641 = vpop.f32.mrb[0].mxu0
        %v2642 = vadd.f32 0.0, %v2641
        %v2643 = vpop.f32.mrb[0].mxu0
        %2644 = vmatprep.mubr.f32.mxu0 0.0
        %2645 = vmatmul.mubr.f32.gmra.mrb[0].mxu0 %v2408
        %v2646 = vpop.f32.mrb[0].mxu0
        %v2647 = vadd.f32 0.0, %v2646
        %v2648 = vpop.f32.mrb[0].mxu0
        %2649 = vmatprep.mubr.f32.mxu0 0.0
        %2650 = vmatmul.mubr.f32.gmra.mrb[0].mxu0 %v2411
        %v2651 = vpop.f32.mrb[0].mxu0
        %v2652 = vadd.f32 0.0, %v2651
        %v2653 = vpop.f32.mrb[0].mxu0
        %2654 = vmatprep.mubr.f32.mxu0 0.0
        %2655 = vmatmul.mubr.f32.gmra.mrb[0].mxu0 %v2414
        %v2656 = vpop.f32.mrb[0].mxu0
        %v2657 = vadd.f32 0.0, %v2656
        %v2658 = vpop.f32.mrb[0].mxu0
        %2659 = vmatprep.mubr.f32.mxu0 0.0
        %2660 = vmatmul.mubr.f32.gmra.mrb[0].mxu0 %v2417
        %v2661 = vpop.f32.mrb[0].mxu0
        %v2662 = vadd.f32 0.0, %v2661
        %v2663 = vpop.f32.mrb[0].mxu0
        %2664 = vmatprep.mubr.f32.mxu0 0.0
        %2665 = vmatmul.mubr.f32.gmra.mrb[0].mxu0 %v2420
        %v2666 = vpop.f32.mrb[0].mxu0
        %v2667 = vadd.f32 0.0, %v2666
        %v2668 = vpop.f32.mrb[0].mxu0
        %2669 = vdwg.mxu0
        %v2670 = vadd.f32 %v2240, %v2492
        %v2671 = vadd.f32 %v2241, %v2497
        %v2672 = vadd.f32 %v2242, %v2502
        %v2673 = vadd.f32 %v2243, %v2507
        %v2674 = vadd.f32 %v2244, %v2512
        %v2675 = vadd.f32 %v2245, %v2517
        %v2676 = vadd.f32 %v2246, %v2522
        %v2677 = vadd.f32 %v2247, %v2527
        %v2678 = vadd.f32 %v2248, %v2532
        %v2679 = vadd.f32 %v2249, %v2537
        %v2680 = vadd.f32 %v2250, %v2542
        %v2681 = vadd.f32 %v2251, %v2547
        %v2682 = vadd.f32 %v2252, %v2552
        %v2683 = vadd.f32 %v2253, %v2557
        %v2684 = vadd.f32 %v2254, %v2562
        %v2685 = vadd.f32 %v2255, %v2567
        %v2686 = vadd.f32 %v2256, %v2572
        %v2687 = vadd.f32 %v2257, %v2577
        %v2688 = vadd.f32 %v2258, %v2582
        %v2689 = vadd.f32 %v2259, %v2587
        %v2690 = vadd.f32 %v2260, %v2592
        %v2691 = vadd.f32 %v2261, %v2597
        %v2692 = vadd.f32 %v2262, %v2602
        %v2693 = vadd.f32 %v2263, %v2607
        %v2694 = vadd.f32 %v2264, %v2612
        %v2695 = vadd.f32 %v2265, %v2617
        %v2696 = vadd.f32 %v2266, %v2622
        %v2697 = vadd.f32 %v2267, %v2627
        %v2698 = vadd.f32 %v2268, %v2632
        %v2699 = vadd.f32 %v2269, %v2637
        %v2700 = vadd.f32 %v2270, %v2642
        %v2701 = vadd.f32 %v2271, %v2647
        %v2702 = vadd.f32 %v2272, %v2652
        %v2703 = vadd.f32 %v2273, %v2657
        %v2704 = vadd.f32 %v2274, %v2662
        %v2705 = vadd.f32 %v2275, %v2667
        %v2706 = vld [vmem:[%s196 + $0x24] sm:$0xff]
        %v2707 = vld [vmem:[%s196 + $0x2c] sm:$0xff]
        %v2708 = vld [vmem:[%s196 + $0x34] sm:$0xff]
        %v2709 = vld [vmem:[%s196 + $0x3c] sm:$0xff]
        %v2710 = vld [vmem:[%s196 + $0x44] sm:$0xff]
        %v2711 = vld [vmem:[%s196 + $0x4c] sm:$0xff]
        %v2712 = vld [vmem:[%s196 + $0x54] sm:$0xff]
        %v2713 = vld [vmem:[%s196 + $0x5c] sm:$0xff]
        %v2714 = vld [vmem:[%s196 + $0x64] sm:$0xff]
        %v2715 = vld [vmem:[%s196 + $0x6c] sm:$0xff]
        %v2716 = vld [vmem:[%s196 + $0x74] sm:$0xff]
        %v2717 = vld [vmem:[%s196 + $0x7c] sm:$0xff]
        %v2718 = vld [vmem:[%s196 + $0x84] sm:$0xff]
        %v2719 = vld [vmem:[%s196 + $0x8c] sm:$0xff]
        %v2720 = vld [vmem:[%s196 + $0x94] sm:$0xff]
        %v2721 = vld [vmem:[%s196 + $0x9c] sm:$0xff]
        %v2722 = vld [vmem:[%s196 + $0xa4] sm:$0xff]
        %v2723 = vld [vmem:[%s196 + $0xac] sm:$0xff]
        %v2724 = vld [vmem:[%s196 + $0xb4] sm:$0xff]
        %v2725 = vld [vmem:[%s196 + $0xbc] sm:$0xff]
        %v2726 = vld [vmem:[%s196 + $0xc4] sm:$0xff]
        %v2727 = vld [vmem:[%s196 + $0xcc] sm:$0xff]
        %v2728 = vld [vmem:[%s196 + $0xd4] sm:$0xff]
        %v2729 = vld [vmem:[%s196 + $0xdc] sm:$0xff]
        %v2730 = vld [vmem:[%s196 + $0xe4] sm:$0xff]
        %v2731 = vld [vmem:[%s196 + $0xec] sm:$0xff]
        %v2732 = vld [vmem:[%s196 + $0xf4] sm:$0xff]
        %v2733 = vld [vmem:[%s196 + $0xfc] sm:$0xff]
        %v2734 = vld [vmem:[%s196 + $0x104] sm:$0xff]
        %v2735 = vld [vmem:[%s196 + $0x10c] sm:$0xff]
        %v2736 = vld [vmem:[%s196 + $0x114] sm:$0xff]
        %v2737 = vld [vmem:[%s196 + $0x11c] sm:$0xff]
        %v2738 = vld [vmem:[%s196 + $0x124] sm:$0xff]
        %v2739 = vld [vmem:[%s196 + $0x12c] sm:$0xff]
        %v2740 = vld [vmem:[%s196 + $0x134] sm:$0xff]
        %v2741 = vld [vmem:[%s196 + $0x13c] sm:$0xff]
        %s2742 = scalar_lea.vmem %s1, 24
        %v2743 = vld [vmem:[%s2742] sm:$0xf]
        %v2745 = vsel %vm272, %v2706, 0
        %v2748 = vsel %vm272, %v2707, 0
        %v2751 = vsel %vm272, %v2708, 0
        %v2754 = vsel %vm272, %v2709, 0
        %v2757 = vsel %vm272, %v2710, 0
        %v2760 = vsel %vm272, %v2711, 0
        %v2763 = vsel %vm272, %v2712, 0
        %v2766 = vsel %vm272, %v2713, 0
        %v2769 = vsel %vm272, %v2714, 0
        %v2772 = vsel %vm272, %v2715, 0
        %v2775 = vsel %vm272, %v2716, 0
        %v2778 = vsel %vm272, %v2717, 0
        %v2781 = vsel %vm272, %v2718, 0
        %v2784 = vsel %vm272, %v2719, 0
        %v2787 = vsel %vm272, %v2720, 0
        %v2790 = vsel %vm272, %v2721, 0
        %v2793 = vsel %vm272, %v2722, 0
        %v2796 = vsel %vm272, %v2723, 0
        %v2799 = vsel %vm272, %v2724, 0
        %v2802 = vsel %vm272, %v2725, 0
        %v2805 = vsel %vm272, %v2726, 0
        %v2808 = vsel %vm272, %v2727, 0
        %v2811 = vsel %vm272, %v2728, 0
        %v2814 = vsel %vm272, %v2729, 0
        %v2817 = vsel %vm272, %v2730, 0
        %v2820 = vsel %vm272, %v2731, 0
        %v2823 = vsel %vm272, %v2732, 0
        %v2826 = vsel %vm272, %v2733, 0
        %v2829 = vsel %vm272, %v2734, 0
        %v2832 = vsel %vm272, %v2735, 0
        %v2835 = vsel %vm272, %v2736, 0
        %v2838 = vsel %vm272, %v2737, 0
        %v2841 = vsel %vm272, %v2738, 0
        %v2844 = vsel %vm272, %v2739, 0
        %v2847 = vsel %vm272, %v2740, 0
        %v2850 = vsel %vm272, %v2741, 0
        %v2853 = vsel %vm381, %v2743, 0
        %2855 = vmatprep.subr.mxu0 0.0
        %2856 = vmatpush1.msra.mxu0 %v2853
        %2857 = vmatprep.subr.mxu0 0.0
        %2858 = vmatpush1.msra.mxu0 0.0
        %2859 = vmatprep.subr.mxu0 0.0
        %2860 = vmatpush1.msra.mxu0 0.0
        %2861 = vmatprep.subr.mxu0 0.0
        %2862 = vmatpush1.msra.mxu0 0.0
        %2863 = vmatprep.subr.mxu0 0.0
        %2864 = vmatpush1.msra.mxu0 0.0
        %2865 = vmatprep.subr.mxu0 0.0
        %2866 = vmatpush1.msra.mxu0 0.0
        %2867 = vmatprep.subr.mxu0 0.0
        %2868 = vmatpush1.msra.mxu0 0.0
        %2869 = vmatprep.subr.mxu0 0.0
        %2870 = vmatpush1.msra.mxu0 0.0
        %2871 = vmatprep.subr.mxu0 0.0
        %2872 = vmatpush1.msra.mxu0 0.0
        %2873 = vmatprep.subr.mxu0 0.0
        %2874 = vmatpush1.msra.mxu0 0.0
        %2875 = vmatprep.subr.mxu0 0.0
        %2876 = vmatpush1.msra.mxu0 0.0
        %2877 = vmatprep.subr.mxu0 0.0
        %2878 = vmatpush1.msra.mxu0 0.0
        %2879 = vmatprep.subr.mxu0 0.0
        %2880 = vmatpush1.msra.mxu0 0.0
        %2881 = vmatprep.subr.mxu0 0.0
        %2882 = vmatpush1.msra.mxu0 0.0
        %2883 = vmatprep.subr.mxu0 0.0
        %2884 = vmatpush1.msra.mxu0 0.0
        %2885 = vmatprep.subr.mxu0 0.0
        %2886 = vmatpush1.msra.mxu0 0.0
        %2887 = vmatprep.subr.mxu0 0.0
        %2888 = vmatpush1.msra.mxu0 0.0
        %2889 = vmatprep.subr.mxu0 0.0
        %2890 = vmatpush1.msra.mxu0 0.0
        %2891 = vmatprep.subr.mxu0 0.0
        %2892 = vmatpush1.msra.mxu0 0.0
        %2893 = vmatprep.subr.mxu0 0.0
        %2894 = vmatpush1.msra.mxu0 0.0
        %2895 = vmatprep.subr.mxu0 0.0
        %2896 = vmatpush1.msra.mxu0 0.0
        %2897 = vmatprep.subr.mxu0 0.0
        %2898 = vmatpush1.msra.mxu0 0.0
        %2899 = vmatprep.subr.mxu0 0.0
        %2900 = vmatpush1.msra.mxu0 0.0
        %2901 = vmatprep.subr.mxu0 0.0
        %2902 = vmatpush1.msra.mxu0 0.0
        %2903 = vmatprep.subr.mxu0 0.0
        %2904 = vmatpush1.msra.mxu0 0.0
        %2905 = vmatprep.subr.mxu0 0.0
        %2906 = vmatpush1.msra.mxu0 0.0
        %2907 = vmatprep.subr.mxu0 0.0
        %2908 = vmatpush1.msra.mxu0 0.0
        %2909 = vmatprep.subr.mxu0 0.0
        %2910 = vmatpush1.msra.mxu0 0.0
        %2911 = vmatprep.subr.mxu0 0.0
        %2912 = vmatpush1.msra.mxu0 0.0
        %2913 = vmatprep.subr.mxu0 0.0
        %2914 = vmatpush1.msra.mxu0 0.0
        %2915 = vmatprep.subr.mxu0 0.0
        %2916 = vmatpush1.msra.mxu0 0.0
        %2917 = vmatprep.subr.mxu0 0.0
        %2918 = vmatpush1.msra.mxu0 0.0
        %2919 = vmatprep.mubr.f32.mxu0 0.0
        %2920 = vmatmul.mubr.f32.gmra.mrb[0].mxu0 %v2745
        %v2921 = vpop.f32.mrb[0].mxu0
        %v2922 = vadd.f32 0.0, %v2921
        %v2923 = vpop.f32.mrb[0].mxu0
        %2924 = vmatprep.mubr.f32.mxu0 0.0
        %2925 = vmatmul.mubr.f32.gmra.mrb[0].mxu0 %v2748
        %v2926 = vpop.f32.mrb[0].mxu0
        %v2927 = vadd.f32 0.0, %v2926
        %v2928 = vpop.f32.mrb[0].mxu0
        %2929 = vmatprep.mubr.f32.mxu0 0.0
        %2930 = vmatmul.mubr.f32.gmra.mrb[0].mxu0 %v2751
        %v2931 = vpop.f32.mrb[0].mxu0
        %v2932 = vadd.f32 0.0, %v2931
        %v2933 = vpop.f32.mrb[0].mxu0
        %2934 = vmatprep.mubr.f32.mxu0 0.0
        %2935 = vmatmul.mubr.f32.gmra.mrb[0].mxu0 %v2754
        %v2936 = vpop.f32.mrb[0].mxu0
        %v2937 = vadd.f32 0.0, %v2936
        %v2938 = vpop.f32.mrb[0].mxu0
        %2939 = vmatprep.mubr.f32.mxu0 0.0
        %2940 = vmatmul.mubr.f32.gmra.mrb[0].mxu0 %v2757
        %v2941 = vpop.f32.mrb[0].mxu0
        %v2942 = vadd.f32 0.0, %v2941
        %v2943 = vpop.f32.mrb[0].mxu0
        %2944 = vmatprep.mubr.f32.mxu0 0.0
        %2945 = vmatmul.mubr.f32.gmra.mrb[0].mxu0 %v2760
        %v2946 = vpop.f32.mrb[0].mxu0
        %v2947 = vadd.f32 0.0, %v2946
        %v2948 = vpop.f32.mrb[0].mxu0
        %2949 = vmatprep.mubr.f32.mxu0 0.0
        %2950 = vmatmul.mubr.f32.gmra.mrb[0].mxu0 %v2763
        %v2951 = vpop.f32.mrb[0].mxu0
        %v2952 = vadd.f32 0.0, %v2951
        %v2953 = vpop.f32.mrb[0].mxu0
        %2954 = vmatprep.mubr.f32.mxu0 0.0
        %2955 = vmatmul.mubr.f32.gmra.mrb[0].mxu0 %v2766
        %v2956 = vpop.f32.mrb[0].mxu0
        %v2957 = vadd.f32 0.0, %v2956
        %v2958 = vpop.f32.mrb[0].mxu0
        %2959 = vmatprep.mubr.f32.mxu0 0.0
        %2960 = vmatmul.mubr.f32.gmra.mrb[0].mxu0 %v2769
        %v2961 = vpop.f32.mrb[0].mxu0
        %v2962 = vadd.f32 0.0, %v2961
        %v2963 = vpop.f32.mrb[0].mxu0
        %2964 = vmatprep.mubr.f32.mxu0 0.0
        %2965 = vmatmul.mubr.f32.gmra.mrb[0].mxu0 %v2772
        %v2966 = vpop.f32.mrb[0].mxu0
        %v2967 = vadd.f32 0.0, %v2966
        %v2968 = vpop.f32.mrb[0].mxu0
        %2969 = vmatprep.mubr.f32.mxu0 0.0
        %2970 = vmatmul.mubr.f32.gmra.mrb[0].mxu0 %v2775
        %v2971 = vpop.f32.mrb[0].mxu0
        %v2972 = vadd.f32 0.0, %v2971
        %v2973 = vpop.f32.mrb[0].mxu0
        %2974 = vmatprep.mubr.f32.mxu0 0.0
        %2975 = vmatmul.mubr.f32.gmra.mrb[0].mxu0 %v2778
        %v2976 = vpop.f32.mrb[0].mxu0
        %v2977 = vadd.f32 0.0, %v2976
        %v2978 = vpop.f32.mrb[0].mxu0
        %2979 = vmatprep.mubr.f32.mxu0 0.0
        %2980 = vmatmul.mubr.f32.gmra.mrb[0].mxu0 %v2781
        %v2981 = vpop.f32.mrb[0].mxu0
        %v2982 = vadd.f32 0.0, %v2981
        %v2983 = vpop.f32.mrb[0].mxu0
        %2984 = vmatprep.mubr.f32.mxu0 0.0
        %2985 = vmatmul.mubr.f32.gmra.mrb[0].mxu0 %v2784
        %v2986 = vpop.f32.mrb[0].mxu0
        %v2987 = vadd.f32 0.0, %v2986
        %v2988 = vpop.f32.mrb[0].mxu0
        %2989 = vmatprep.mubr.f32.mxu0 0.0
        %2990 = vmatmul.mubr.f32.gmra.mrb[0].mxu0 %v2787
        %v2991 = vpop.f32.mrb[0].mxu0
        %v2992 = vadd.f32 0.0, %v2991
        %v2993 = vpop.f32.mrb[0].mxu0
        %2994 = vmatprep.mubr.f32.mxu0 0.0
        %2995 = vmatmul.mubr.f32.gmra.mrb[0].mxu0 %v2790
        %v2996 = vpop.f32.mrb[0].mxu0
        %v2997 = vadd.f32 0.0, %v2996
        %v2998 = vpop.f32.mrb[0].mxu0
        %2999 = vmatprep.mubr.f32.mxu0 0.0
        %3000 = vmatmul.mubr.f32.gmra.mrb[0].mxu0 %v2793
        %v3001 = vpop.f32.mrb[0].mxu0
        %v3002 = vadd.f32 0.0, %v3001
        %v3003 = vpop.f32.mrb[0].mxu0
        %3004 = vmatprep.mubr.f32.mxu0 0.0
        %3005 = vmatmul.mubr.f32.gmra.mrb[0].mxu0 %v2796
        %v3006 = vpop.f32.mrb[0].mxu0
        %v3007 = vadd.f32 0.0, %v3006
        %v3008 = vpop.f32.mrb[0].mxu0
        %3009 = vmatprep.mubr.f32.mxu0 0.0
        %3010 = vmatmul.mubr.f32.gmra.mrb[0].mxu0 %v2799
        %v3011 = vpop.f32.mrb[0].mxu0
        %v3012 = vadd.f32 0.0, %v3011
        %v3013 = vpop.f32.mrb[0].mxu0
        %3014 = vmatprep.mubr.f32.mxu0 0.0
        %3015 = vmatmul.mubr.f32.gmra.mrb[0].mxu0 %v2802
        %v3016 = vpop.f32.mrb[0].mxu0
        %v3017 = vadd.f32 0.0, %v3016
        %v3018 = vpop.f32.mrb[0].mxu0
        %3019 = vmatprep.mubr.f32.mxu0 0.0
        %3020 = vmatmul.mubr.f32.gmra.mrb[0].mxu0 %v2805
        %v3021 = vpop.f32.mrb[0].mxu0
        %v3022 = vadd.f32 0.0, %v3021
        %v3023 = vpop.f32.mrb[0].mxu0
        %3024 = vmatprep.mubr.f32.mxu0 0.0
        %3025 = vmatmul.mubr.f32.gmra.mrb[0].mxu0 %v2808
        %v3026 = vpop.f32.mrb[0].mxu0
        %v3027 = vadd.f32 0.0, %v3026
        %v3028 = vpop.f32.mrb[0].mxu0
        %3029 = vmatprep.mubr.f32.mxu0 0.0
        %3030 = vmatmul.mubr.f32.gmra.mrb[0].mxu0 %v2811
        %v3031 = vpop.f32.mrb[0].mxu0
        %v3032 = vadd.f32 0.0, %v3031
        %v3033 = vpop.f32.mrb[0].mxu0
        %3034 = vmatprep.mubr.f32.mxu0 0.0
        %3035 = vmatmul.mubr.f32.gmra.mrb[0].mxu0 %v2814
        %v3036 = vpop.f32.mrb[0].mxu0
        %v3037 = vadd.f32 0.0, %v3036
        %v3038 = vpop.f32.mrb[0].mxu0
        %3039 = vmatprep.mubr.f32.mxu0 0.0
        %3040 = vmatmul.mubr.f32.gmra.mrb[0].mxu0 %v2817
        %v3041 = vpop.f32.mrb[0].mxu0
        %v3042 = vadd.f32 0.0, %v3041
        %v3043 = vpop.f32.mrb[0].mxu0
        %3044 = vmatprep.mubr.f32.mxu0 0.0
        %3045 = vmatmul.mubr.f32.gmra.mrb[0].mxu0 %v2820
        %v3046 = vpop.f32.mrb[0].mxu0
        %v3047 = vadd.f32 0.0, %v3046
        %v3048 = vpop.f32.mrb[0].mxu0
        %3049 = vmatprep.mubr.f32.mxu0 0.0
        %3050 = vmatmul.mubr.f32.gmra.mrb[0].mxu0 %v2823
        %v3051 = vpop.f32.mrb[0].mxu0
        %v3052 = vadd.f32 0.0, %v3051
        %v3053 = vpop.f32.mrb[0].mxu0
        %3054 = vmatprep.mubr.f32.mxu0 0.0
        %3055 = vmatmul.mubr.f32.gmra.mrb[0].mxu0 %v2826
        %v3056 = vpop.f32.mrb[0].mxu0
        %v3057 = vadd.f32 0.0, %v3056
        %v3058 = vpop.f32.mrb[0].mxu0
        %3059 = vmatprep.mubr.f32.mxu0 0.0
        %3060 = vmatmul.mubr.f32.gmra.mrb[0].mxu0 %v2829
        %v3061 = vpop.f32.mrb[0].mxu0
        %v3062 = vadd.f32 0.0, %v3061
        %v3063 = vpop.f32.mrb[0].mxu0
        %3064 = vmatprep.mubr.f32.mxu0 0.0
        %3065 = vmatmul.mubr.f32.gmra.mrb[0].mxu0 %v2832
        %v3066 = vpop.f32.mrb[0].mxu0
        %v3067 = vadd.f32 0.0, %v3066
        %v3068 = vpop.f32.mrb[0].mxu0
        %3069 = vmatprep.mubr.f32.mxu0 0.0
        %3070 = vmatmul.mubr.f32.gmra.mrb[0].mxu0 %v2835
        %v3071 = vpop.f32.mrb[0].mxu0
        %v3072 = vadd.f32 0.0, %v3071
        %v3073 = vpop.f32.mrb[0].mxu0
        %3074 = vmatprep.mubr.f32.mxu0 0.0
        %3075 = vmatmul.mubr.f32.gmra.mrb[0].mxu0 %v2838
        %v3076 = vpop.f32.mrb[0].mxu0
        %v3077 = vadd.f32 0.0, %v3076
        %v3078 = vpop.f32.mrb[0].mxu0
        %3079 = vmatprep.mubr.f32.mxu0 0.0
        %3080 = vmatmul.mubr.f32.gmra.mrb[0].mxu0 %v2841
        %v3081 = vpop.f32.mrb[0].mxu0
        %v3082 = vadd.f32 0.0, %v3081
        %v3083 = vpop.f32.mrb[0].mxu0
        %3084 = vmatprep.mubr.f32.mxu0 0.0
        %3085 = vmatmul.mubr.f32.gmra.mrb[0].mxu0 %v2844
        %v3086 = vpop.f32.mrb[0].mxu0
        %v3087 = vadd.f32 0.0, %v3086
        %v3088 = vpop.f32.mrb[0].mxu0
        %3089 = vmatprep.mubr.f32.mxu0 0.0
        %3090 = vmatmul.mubr.f32.gmra.mrb[0].mxu0 %v2847
        %v3091 = vpop.f32.mrb[0].mxu0
        %v3092 = vadd.f32 0.0, %v3091
        %v3093 = vpop.f32.mrb[0].mxu0
        %3094 = vmatprep.mubr.f32.mxu0 0.0
        %3095 = vmatmul.mubr.f32.gmra.mrb[0].mxu0 %v2850
        %v3096 = vpop.f32.mrb[0].mxu0
        %v3097 = vadd.f32 0.0, %v3096
        %v3098 = vpop.f32.mrb[0].mxu0
        %3099 = vdwg.mxu0
        %v3100 = vadd.f32 %v2670, %v2922
        %v3101 = vadd.f32 %v2671, %v2927
        %v3102 = vadd.f32 %v2672, %v2932
        %v3103 = vadd.f32 %v2673, %v2937
        %v3104 = vadd.f32 %v2674, %v2942
        %v3105 = vadd.f32 %v2675, %v2947
        %v3106 = vadd.f32 %v2676, %v2952
        %v3107 = vadd.f32 %v2677, %v2957
        %v3108 = vadd.f32 %v2678, %v2962
        %v3109 = vadd.f32 %v2679, %v2967
        %v3110 = vadd.f32 %v2680, %v2972
        %v3111 = vadd.f32 %v2681, %v2977
        %v3112 = vadd.f32 %v2682, %v2982
        %v3113 = vadd.f32 %v2683, %v2987
        %v3114 = vadd.f32 %v2684, %v2992
        %v3115 = vadd.f32 %v2685, %v2997
        %v3116 = vadd.f32 %v2686, %v3002
        %v3117 = vadd.f32 %v2687, %v3007
        %v3118 = vadd.f32 %v2688, %v3012
        %v3119 = vadd.f32 %v2689, %v3017
        %v3120 = vadd.f32 %v2690, %v3022
        %v3121 = vadd.f32 %v2691, %v3027
        %v3122 = vadd.f32 %v2692, %v3032
        %v3123 = vadd.f32 %v2693, %v3037
        %v3124 = vadd.f32 %v2694, %v3042
        %v3125 = vadd.f32 %v2695, %v3047
        %v3126 = vadd.f32 %v2696, %v3052
        %v3127 = vadd.f32 %v2697, %v3057
        %v3128 = vadd.f32 %v2698, %v3062
        %v3129 = vadd.f32 %v2699, %v3067
        %v3130 = vadd.f32 %v2700, %v3072
        %v3131 = vadd.f32 %v2701, %v3077
        %v3132 = vadd.f32 %v2702, %v3082
        %v3133 = vadd.f32 %v2703, %v3087
        %v3134 = vadd.f32 %v2704, %v3092
        %v3135 = vadd.f32 %v2705, %v3097
        %v3136 = vld [vmem:[%s196 + $0x25] sm:$0xff]
        %v3137 = vld [vmem:[%s196 + $0x2d] sm:$0xff]
        %v3138 = vld [vmem:[%s196 + $0x35] sm:$0xff]
        %v3139 = vld [vmem:[%s196 + $0x3d] sm:$0xff]
        %v3140 = vld [vmem:[%s196 + $0x45] sm:$0xff]
        %v3141 = vld [vmem:[%s196 + $0x4d] sm:$0xff]
        %v3142 = vld [vmem:[%s196 + $0x55] sm:$0xff]
        %v3143 = vld [vmem:[%s196 + $0x5d] sm:$0xff]
        %v3144 = vld [vmem:[%s196 + $0x65] sm:$0xff]
        %v3145 = vld [vmem:[%s196 + $0x6d] sm:$0xff]
        %v3146 = vld [vmem:[%s196 + $0x75] sm:$0xff]
        %v3147 = vld [vmem:[%s196 + $0x7d] sm:$0xff]
        %v3148 = vld [vmem:[%s196 + $0x85] sm:$0xff]
        %v3149 = vld [vmem:[%s196 + $0x8d] sm:$0xff]
        %v3150 = vld [vmem:[%s196 + $0x95] sm:$0xff]
        %v3151 = vld [vmem:[%s196 + $0x9d] sm:$0xff]
        %v3152 = vld [vmem:[%s196 + $0xa5] sm:$0xff]
        %v3153 = vld [vmem:[%s196 + $0xad] sm:$0xff]
        %v3154 = vld [vmem:[%s196 + $0xb5] sm:$0xff]
        %v3155 = vld [vmem:[%s196 + $0xbd] sm:$0xff]
        %v3156 = vld [vmem:[%s196 + $0xc5] sm:$0xff]
        %v3157 = vld [vmem:[%s196 + $0xcd] sm:$0xff]
        %v3158 = vld [vmem:[%s196 + $0xd5] sm:$0xff]
        %v3159 = vld [vmem:[%s196 + $0xdd] sm:$0xff]
        %v3160 = vld [vmem:[%s196 + $0xe5] sm:$0xff]
        %v3161 = vld [vmem:[%s196 + $0xed] sm:$0xff]
        %v3162 = vld [vmem:[%s196 + $0xf5] sm:$0xff]
        %v3163 = vld [vmem:[%s196 + $0xfd] sm:$0xff]
        %v3164 = vld [vmem:[%s196 + $0x105] sm:$0xff]
        %v3165 = vld [vmem:[%s196 + $0x10d] sm:$0xff]
        %v3166 = vld [vmem:[%s196 + $0x115] sm:$0xff]
        %v3167 = vld [vmem:[%s196 + $0x11d] sm:$0xff]
        %v3168 = vld [vmem:[%s196 + $0x125] sm:$0xff]
        %v3169 = vld [vmem:[%s196 + $0x12d] sm:$0xff]
        %v3170 = vld [vmem:[%s196 + $0x135] sm:$0xff]
        %v3171 = vld [vmem:[%s196 + $0x13d] sm:$0xff]
        %s3172 = scalar_lea.vmem %s1, 28
        %v3173 = vld [vmem:[%s3172] sm:$0xf]
        %v3175 = vsel %vm272, %v3136, 0
        %v3178 = vsel %vm272, %v3137, 0
        %v3181 = vsel %vm272, %v3138, 0
        %v3184 = vsel %vm272, %v3139, 0
        %v3187 = vsel %vm272, %v3140, 0
        %v3190 = vsel %vm272, %v3141, 0
        %v3193 = vsel %vm272, %v3142, 0
        %v3196 = vsel %vm272, %v3143, 0
        %v3199 = vsel %vm272, %v3144, 0
        %v3202 = vsel %vm272, %v3145, 0
        %v3205 = vsel %vm272, %v3146, 0
        %v3208 = vsel %vm272, %v3147, 0
        %v3211 = vsel %vm272, %v3148, 0
        %v3214 = vsel %vm272, %v3149, 0
        %v3217 = vsel %vm272, %v3150, 0
        %v3220 = vsel %vm272, %v3151, 0
        %v3223 = vsel %vm272, %v3152, 0
        %v3226 = vsel %vm272, %v3153, 0
        %v3229 = vsel %vm272, %v3154, 0
        %v3232 = vsel %vm272, %v3155, 0
        %v3235 = vsel %vm272, %v3156, 0
        %v3238 = vsel %vm272, %v3157, 0
        %v3241 = vsel %vm272, %v3158, 0
        %v3244 = vsel %vm272, %v3159, 0
        %v3247 = vsel %vm272, %v3160, 0
        %v3250 = vsel %vm272, %v3161, 0
        %v3253 = vsel %vm272, %v3162, 0
        %v3256 = vsel %vm272, %v3163, 0
        %v3259 = vsel %vm272, %v3164, 0
        %v3262 = vsel %vm272, %v3165, 0
        %v3265 = vsel %vm272, %v3166, 0
        %v3268 = vsel %vm272, %v3167, 0
        %v3271 = vsel %vm272, %v3168, 0
        %v3274 = vsel %vm272, %v3169, 0
        %v3277 = vsel %vm272, %v3170, 0
        %v3280 = vsel %vm272, %v3171, 0
        %v3283 = vsel %vm381, %v3173, 0
        %3285 = vmatprep.subr.mxu0 0.0
        %3286 = vmatpush1.msra.mxu0 %v3283
        %3287 = vmatprep.subr.mxu0 0.0
        %3288 = vmatpush1.msra.mxu0 0.0
        %3289 = vmatprep.subr.mxu0 0.0
        %3290 = vmatpush1.msra.mxu0 0.0
        %3291 = vmatprep.subr.mxu0 0.0
        %3292 = vmatpush1.msra.mxu0 0.0
        %3293 = vmatprep.subr.mxu0 0.0
        %3294 = vmatpush1.msra.mxu0 0.0
        %3295 = vmatprep.subr.mxu0 0.0
        %3296 = vmatpush1.msra.mxu0 0.0
        %3297 = vmatprep.subr.mxu0 0.0
        %3298 = vmatpush1.msra.mxu0 0.0
        %3299 = vmatprep.subr.mxu0 0.0
        %3300 = vmatpush1.msra.mxu0 0.0
        %3301 = vmatprep.subr.mxu0 0.0
        %3302 = vmatpush1.msra.mxu0 0.0
        %3303 = vmatprep.subr.mxu0 0.0
        %3304 = vmatpush1.msra.mxu0 0.0
        %3305 = vmatprep.subr.mxu0 0.0
        %3306 = vmatpush1.msra.mxu0 0.0
        %3307 = vmatprep.subr.mxu0 0.0
        %3308 = vmatpush1.msra.mxu0 0.0
        %3309 = vmatprep.subr.mxu0 0.0
        %3310 = vmatpush1.msra.mxu0 0.0
        %3311 = vmatprep.subr.mxu0 0.0
        %3312 = vmatpush1.msra.mxu0 0.0
        %3313 = vmatprep.subr.mxu0 0.0
        %3314 = vmatpush1.msra.mxu0 0.0
        %3315 = vmatprep.subr.mxu0 0.0
        %3316 = vmatpush1.msra.mxu0 0.0
        %3317 = vmatprep.subr.mxu0 0.0
        %3318 = vmatpush1.msra.mxu0 0.0
        %3319 = vmatprep.subr.mxu0 0.0
        %3320 = vmatpush1.msra.mxu0 0.0
        %3321 = vmatprep.subr.mxu0 0.0
        %3322 = vmatpush1.msra.mxu0 0.0
        %3323 = vmatprep.subr.mxu0 0.0
        %3324 = vmatpush1.msra.mxu0 0.0
        %3325 = vmatprep.subr.mxu0 0.0
        %3326 = vmatpush1.msra.mxu0 0.0
        %3327 = vmatprep.subr.mxu0 0.0
        %3328 = vmatpush1.msra.mxu0 0.0
        %3329 = vmatprep.subr.mxu0 0.0
        %3330 = vmatpush1.msra.mxu0 0.0
        %3331 = vmatprep.subr.mxu0 0.0
        %3332 = vmatpush1.msra.mxu0 0.0
        %3333 = vmatprep.subr.mxu0 0.0
        %3334 = vmatpush1.msra.mxu0 0.0
        %3335 = vmatprep.subr.mxu0 0.0
        %3336 = vmatpush1.msra.mxu0 0.0
        %3337 = vmatprep.subr.mxu0 0.0
        %3338 = vmatpush1.msra.mxu0 0.0
        %3339 = vmatprep.subr.mxu0 0.0
        %3340 = vmatpush1.msra.mxu0 0.0
        %3341 = vmatprep.subr.mxu0 0.0
        %3342 = vmatpush1.msra.mxu0 0.0
        %3343 = vmatprep.subr.mxu0 0.0
        %3344 = vmatpush1.msra.mxu0 0.0
        %3345 = vmatprep.subr.mxu0 0.0
        %3346 = vmatpush1.msra.mxu0 0.0
        %3347 = vmatprep.subr.mxu0 0.0
        %3348 = vmatpush1.msra.mxu0 0.0
        %3349 = vmatprep.mubr.f32.mxu0 0.0
        %3350 = vmatmul.mubr.f32.gmra.mrb[0].mxu0 %v3175
        %v3351 = vpop.f32.mrb[0].mxu0
        %v3352 = vadd.f32 0.0, %v3351
        %v3353 = vpop.f32.mrb[0].mxu0
        %3354 = vmatprep.mubr.f32.mxu0 0.0
        %3355 = vmatmul.mubr.f32.gmra.mrb[0].mxu0 %v3178
        %v3356 = vpop.f32.mrb[0].mxu0
        %v3357 = vadd.f32 0.0, %v3356
        %v3358 = vpop.f32.mrb[0].mxu0
        %3359 = vmatprep.mubr.f32.mxu0 0.0
        %3360 = vmatmul.mubr.f32.gmra.mrb[0].mxu0 %v3181
        %v3361 = vpop.f32.mrb[0].mxu0
        %v3362 = vadd.f32 0.0, %v3361
        %v3363 = vpop.f32.mrb[0].mxu0
        %3364 = vmatprep.mubr.f32.mxu0 0.0
        %3365 = vmatmul.mubr.f32.gmra.mrb[0].mxu0 %v3184
        %v3366 = vpop.f32.mrb[0].mxu0
        %v3367 = vadd.f32 0.0, %v3366
        %v3368 = vpop.f32.mrb[0].mxu0
        %3369 = vmatprep.mubr.f32.mxu0 0.0
        %3370 = vmatmul.mubr.f32.gmra.mrb[0].mxu0 %v3187
        %v3371 = vpop.f32.mrb[0].mxu0
        %v3372 = vadd.f32 0.0, %v3371
        %v3373 = vpop.f32.mrb[0].mxu0
        %3374 = vmatprep.mubr.f32.mxu0 0.0
        %3375 = vmatmul.mubr.f32.gmra.mrb[0].mxu0 %v3190
        %v3376 = vpop.f32.mrb[0].mxu0
        %v3377 = vadd.f32 0.0, %v3376
        %v3378 = vpop.f32.mrb[0].mxu0
        %3379 = vmatprep.mubr.f32.mxu0 0.0
        %3380 = vmatmul.mubr.f32.gmra.mrb[0].mxu0 %v3193
        %v3381 = vpop.f32.mrb[0].mxu0
        %v3382 = vadd.f32 0.0, %v3381
        %v3383 = vpop.f32.mrb[0].mxu0
        %3384 = vmatprep.mubr.f32.mxu0 0.0
        %3385 = vmatmul.mubr.f32.gmra.mrb[0].mxu0 %v3196
        %v3386 = vpop.f32.mrb[0].mxu0
        %v3387 = vadd.f32 0.0, %v3386
        %v3388 = vpop.f32.mrb[0].mxu0
        %3389 = vmatprep.mubr.f32.mxu0 0.0
        %3390 = vmatmul.mubr.f32.gmra.mrb[0].mxu0 %v3199
        %v3391 = vpop.f32.mrb[0].mxu0
        %v3392 = vadd.f32 0.0, %v3391
        %v3393 = vpop.f32.mrb[0].mxu0
        %3394 = vmatprep.mubr.f32.mxu0 0.0
        %3395 = vmatmul.mubr.f32.gmra.mrb[0].mxu0 %v3202
        %v3396 = vpop.f32.mrb[0].mxu0
        %v3397 = vadd.f32 0.0, %v3396
        %v3398 = vpop.f32.mrb[0].mxu0
        %3399 = vmatprep.mubr.f32.mxu0 0.0
        %3400 = vmatmul.mubr.f32.gmra.mrb[0].mxu0 %v3205
        %v3401 = vpop.f32.mrb[0].mxu0
        %v3402 = vadd.f32 0.0, %v3401
        %v3403 = vpop.f32.mrb[0].mxu0
        %3404 = vmatprep.mubr.f32.mxu0 0.0
        %3405 = vmatmul.mubr.f32.gmra.mrb[0].mxu0 %v3208
        %v3406 = vpop.f32.mrb[0].mxu0
        %v3407 = vadd.f32 0.0, %v3406
        %v3408 = vpop.f32.mrb[0].mxu0
        %3409 = vmatprep.mubr.f32.mxu0 0.0
        %3410 = vmatmul.mubr.f32.gmra.mrb[0].mxu0 %v3211
        %v3411 = vpop.f32.mrb[0].mxu0
        %v3412 = vadd.f32 0.0, %v3411
        %v3413 = vpop.f32.mrb[0].mxu0
        %3414 = vmatprep.mubr.f32.mxu0 0.0
        %3415 = vmatmul.mubr.f32.gmra.mrb[0].mxu0 %v3214
        %v3416 = vpop.f32.mrb[0].mxu0
        %v3417 = vadd.f32 0.0, %v3416
        %v3418 = vpop.f32.mrb[0].mxu0
        %3419 = vmatprep.mubr.f32.mxu0 0.0
        %3420 = vmatmul.mubr.f32.gmra.mrb[0].mxu0 %v3217
        %v3421 = vpop.f32.mrb[0].mxu0
        %v3422 = vadd.f32 0.0, %v3421
        %v3423 = vpop.f32.mrb[0].mxu0
        %3424 = vmatprep.mubr.f32.mxu0 0.0
        %3425 = vmatmul.mubr.f32.gmra.mrb[0].mxu0 %v3220
        %v3426 = vpop.f32.mrb[0].mxu0
        %v3427 = vadd.f32 0.0, %v3426
        %v3428 = vpop.f32.mrb[0].mxu0
        %3429 = vmatprep.mubr.f32.mxu0 0.0
        %3430 = vmatmul.mubr.f32.gmra.mrb[0].mxu0 %v3223
        %v3431 = vpop.f32.mrb[0].mxu0
        %v3432 = vadd.f32 0.0, %v3431
        %v3433 = vpop.f32.mrb[0].mxu0
        %3434 = vmatprep.mubr.f32.mxu0 0.0
        %3435 = vmatmul.mubr.f32.gmra.mrb[0].mxu0 %v3226
        %v3436 = vpop.f32.mrb[0].mxu0
        %v3437 = vadd.f32 0.0, %v3436
        %v3438 = vpop.f32.mrb[0].mxu0
        %3439 = vmatprep.mubr.f32.mxu0 0.0
        %3440 = vmatmul.mubr.f32.gmra.mrb[0].mxu0 %v3229
        %v3441 = vpop.f32.mrb[0].mxu0
        %v3442 = vadd.f32 0.0, %v3441
        %v3443 = vpop.f32.mrb[0].mxu0
        %3444 = vmatprep.mubr.f32.mxu0 0.0
        %3445 = vmatmul.mubr.f32.gmra.mrb[0].mxu0 %v3232
        %v3446 = vpop.f32.mrb[0].mxu0
        %v3447 = vadd.f32 0.0, %v3446
        %v3448 = vpop.f32.mrb[0].mxu0
        %3449 = vmatprep.mubr.f32.mxu0 0.0
        %3450 = vmatmul.mubr.f32.gmra.mrb[0].mxu0 %v3235
        %v3451 = vpop.f32.mrb[0].mxu0
        %v3452 = vadd.f32 0.0, %v3451
        %v3453 = vpop.f32.mrb[0].mxu0
        %3454 = vmatprep.mubr.f32.mxu0 0.0
        %3455 = vmatmul.mubr.f32.gmra.mrb[0].mxu0 %v3238
        %v3456 = vpop.f32.mrb[0].mxu0
        %v3457 = vadd.f32 0.0, %v3456
        %v3458 = vpop.f32.mrb[0].mxu0
        %3459 = vmatprep.mubr.f32.mxu0 0.0
        %3460 = vmatmul.mubr.f32.gmra.mrb[0].mxu0 %v3241
        %v3461 = vpop.f32.mrb[0].mxu0
        %v3462 = vadd.f32 0.0, %v3461
        %v3463 = vpop.f32.mrb[0].mxu0
        %3464 = vmatprep.mubr.f32.mxu0 0.0
        %3465 = vmatmul.mubr.f32.gmra.mrb[0].mxu0 %v3244
        %v3466 = vpop.f32.mrb[0].mxu0
        %v3467 = vadd.f32 0.0, %v3466
        %v3468 = vpop.f32.mrb[0].mxu0
        %3469 = vmatprep.mubr.f32.mxu0 0.0
        %3470 = vmatmul.mubr.f32.gmra.mrb[0].mxu0 %v3247
        %v3471 = vpop.f32.mrb[0].mxu0
        %v3472 = vadd.f32 0.0, %v3471
        %v3473 = vpop.f32.mrb[0].mxu0
        %3474 = vmatprep.mubr.f32.mxu0 0.0
        %3475 = vmatmul.mubr.f32.gmra.mrb[0].mxu0 %v3250
        %v3476 = vpop.f32.mrb[0].mxu0
        %v3477 = vadd.f32 0.0, %v3476
        %v3478 = vpop.f32.mrb[0].mxu0
        %3479 = vmatprep.mubr.f32.mxu0 0.0
        %3480 = vmatmul.mubr.f32.gmra.mrb[0].mxu0 %v3253
        %v3481 = vpop.f32.mrb[0].mxu0
        %v3482 = vadd.f32 0.0, %v3481
        %v3483 = vpop.f32.mrb[0].mxu0
        %3484 = vmatprep.mubr.f32.mxu0 0.0
        %3485 = vmatmul.mubr.f32.gmra.mrb[0].mxu0 %v3256
        %v3486 = vpop.f32.mrb[0].mxu0
        %v3487 = vadd.f32 0.0, %v3486
        %v3488 = vpop.f32.mrb[0].mxu0
        %3489 = vmatprep.mubr.f32.mxu0 0.0
        %3490 = vmatmul.mubr.f32.gmra.mrb[0].mxu0 %v3259
        %v3491 = vpop.f32.mrb[0].mxu0
        %v3492 = vadd.f32 0.0, %v3491
        %v3493 = vpop.f32.mrb[0].mxu0
        %3494 = vmatprep.mubr.f32.mxu0 0.0
        %3495 = vmatmul.mubr.f32.gmra.mrb[0].mxu0 %v3262
        %v3496 = vpop.f32.mrb[0].mxu0
        %v3497 = vadd.f32 0.0, %v3496
        %v3498 = vpop.f32.mrb[0].mxu0
        %3499 = vmatprep.mubr.f32.mxu0 0.0
        %3500 = vmatmul.mubr.f32.gmra.mrb[0].mxu0 %v3265
        %v3501 = vpop.f32.mrb[0].mxu0
        %v3502 = vadd.f32 0.0, %v3501
        %v3503 = vpop.f32.mrb[0].mxu0
        %3504 = vmatprep.mubr.f32.mxu0 0.0
        %3505 = vmatmul.mubr.f32.gmra.mrb[0].mxu0 %v3268
        %v3506 = vpop.f32.mrb[0].mxu0
        %v3507 = vadd.f32 0.0, %v3506
        %v3508 = vpop.f32.mrb[0].mxu0
        %3509 = vmatprep.mubr.f32.mxu0 0.0
        %3510 = vmatmul.mubr.f32.gmra.mrb[0].mxu0 %v3271
        %v3511 = vpop.f32.mrb[0].mxu0
        %v3512 = vadd.f32 0.0, %v3511
        %v3513 = vpop.f32.mrb[0].mxu0
        %3514 = vmatprep.mubr.f32.mxu0 0.0
        %3515 = vmatmul.mubr.f32.gmra.mrb[0].mxu0 %v3274
        %v3516 = vpop.f32.mrb[0].mxu0
        %v3517 = vadd.f32 0.0, %v3516
        %v3518 = vpop.f32.mrb[0].mxu0
        %3519 = vmatprep.mubr.f32.mxu0 0.0
        %3520 = vmatmul.mubr.f32.gmra.mrb[0].mxu0 %v3277
        %v3521 = vpop.f32.mrb[0].mxu0
        %v3522 = vadd.f32 0.0, %v3521
        %v3523 = vpop.f32.mrb[0].mxu0
        %3524 = vmatprep.mubr.f32.mxu0 0.0
        %3525 = vmatmul.mubr.f32.gmra.mrb[0].mxu0 %v3280
        %v3526 = vpop.f32.mrb[0].mxu0
        %v3527 = vadd.f32 0.0, %v3526
        %v3528 = vpop.f32.mrb[0].mxu0
        %3529 = vdwg.mxu0
        %v3530 = vadd.f32 %v3100, %v3352
        %v3531 = vadd.f32 %v3101, %v3357
        %v3532 = vadd.f32 %v3102, %v3362
        %v3533 = vadd.f32 %v3103, %v3367
        %v3534 = vadd.f32 %v3104, %v3372
        %v3535 = vadd.f32 %v3105, %v3377
        %v3536 = vadd.f32 %v3106, %v3382
        %v3537 = vadd.f32 %v3107, %v3387
        %v3538 = vadd.f32 %v3108, %v3392
        %v3539 = vadd.f32 %v3109, %v3397
        %v3540 = vadd.f32 %v3110, %v3402
        %v3541 = vadd.f32 %v3111, %v3407
        %v3542 = vadd.f32 %v3112, %v3412
        %v3543 = vadd.f32 %v3113, %v3417
        %v3544 = vadd.f32 %v3114, %v3422
        %v3545 = vadd.f32 %v3115, %v3427
        %v3546 = vadd.f32 %v3116, %v3432
        %v3547 = vadd.f32 %v3117, %v3437
        %v3548 = vadd.f32 %v3118, %v3442
        %v3549 = vadd.f32 %v3119, %v3447
        %v3550 = vadd.f32 %v3120, %v3452
        %v3551 = vadd.f32 %v3121, %v3457
        %v3552 = vadd.f32 %v3122, %v3462
        %v3553 = vadd.f32 %v3123, %v3467
        %v3554 = vadd.f32 %v3124, %v3472
        %v3555 = vadd.f32 %v3125, %v3477
        %v3556 = vadd.f32 %v3126, %v3482
        %v3557 = vadd.f32 %v3127, %v3487
        %v3558 = vadd.f32 %v3128, %v3492
        %v3559 = vadd.f32 %v3129, %v3497
        %v3560 = vadd.f32 %v3130, %v3502
        %v3561 = vadd.f32 %v3131, %v3507
        %v3562 = vadd.f32 %v3132, %v3512
        %v3563 = vadd.f32 %v3133, %v3517
        %v3564 = vadd.f32 %v3134, %v3522
        %v3565 = vadd.f32 %v3135, %v3527
        %v3566 = vld [vmem:[%s196 + $0x26] sm:$0xff]
        %v3567 = vld [vmem:[%s196 + $0x2e] sm:$0xff]
        %v3568 = vld [vmem:[%s196 + $0x36] sm:$0xff]
        %v3569 = vld [vmem:[%s196 + $0x3e] sm:$0xff]
        %v3570 = vld [vmem:[%s196 + $0x46] sm:$0xff]
        %v3571 = vld [vmem:[%s196 + $0x4e] sm:$0xff]
        %v3572 = vld [vmem:[%s196 + $0x56] sm:$0xff]
        %v3573 = vld [vmem:[%s196 + $0x5e] sm:$0xff]
        %v3574 = vld [vmem:[%s196 + $0x66] sm:$0xff]
        %v3575 = vld [vmem:[%s196 + $0x6e] sm:$0xff]
        %v3576 = vld [vmem:[%s196 + $0x76] sm:$0xff]
        %v3577 = vld [vmem:[%s196 + $0x7e] sm:$0xff]
        %v3578 = vld [vmem:[%s196 + $0x86] sm:$0xff]
        %v3579 = vld [vmem:[%s196 + $0x8e] sm:$0xff]
        %v3580 = vld [vmem:[%s196 + $0x96] sm:$0xff]
        %v3581 = vld [vmem:[%s196 + $0x9e] sm:$0xff]
        %v3582 = vld [vmem:[%s196 + $0xa6] sm:$0xff]
        %v3583 = vld [vmem:[%s196 + $0xae] sm:$0xff]
        %v3584 = vld [vmem:[%s196 + $0xb6] sm:$0xff]
        %v3585 = vld [vmem:[%s196 + $0xbe] sm:$0xff]
        %v3586 = vld [vmem:[%s196 + $0xc6] sm:$0xff]
        %v3587 = vld [vmem:[%s196 + $0xce] sm:$0xff]
        %v3588 = vld [vmem:[%s196 + $0xd6] sm:$0xff]
        %v3589 = vld [vmem:[%s196 + $0xde] sm:$0xff]
        %v3590 = vld [vmem:[%s196 + $0xe6] sm:$0xff]
        %v3591 = vld [vmem:[%s196 + $0xee] sm:$0xff]
        %v3592 = vld [vmem:[%s196 + $0xf6] sm:$0xff]
        %v3593 = vld [vmem:[%s196 + $0xfe] sm:$0xff]
        %v3594 = vld [vmem:[%s196 + $0x106] sm:$0xff]
        %v3595 = vld [vmem:[%s196 + $0x10e] sm:$0xff]
        %v3596 = vld [vmem:[%s196 + $0x116] sm:$0xff]
        %v3597 = vld [vmem:[%s196 + $0x11e] sm:$0xff]
        %v3598 = vld [vmem:[%s196 + $0x126] sm:$0xff]
        %v3599 = vld [vmem:[%s196 + $0x12e] sm:$0xff]
        %v3600 = vld [vmem:[%s196 + $0x136] sm:$0xff]
        %v3601 = vld [vmem:[%s196 + $0x13e] sm:$0xff]
        %s3602 = scalar_lea.vmem %s1, 32
        %v3603 = vld [vmem:[%s3602] sm:$0xf]
        %v3605 = vsel %vm272, %v3566, 0
        %v3608 = vsel %vm272, %v3567, 0
        %v3611 = vsel %vm272, %v3568, 0
        %v3614 = vsel %vm272, %v3569, 0
        %v3617 = vsel %vm272, %v3570, 0
        %v3620 = vsel %vm272, %v3571, 0
        %v3623 = vsel %vm272, %v3572, 0
        %v3626 = vsel %vm272, %v3573, 0
        %v3629 = vsel %vm272, %v3574, 0
        %v3632 = vsel %vm272, %v3575, 0
        %v3635 = vsel %vm272, %v3576, 0
        %v3638 = vsel %vm272, %v3577, 0
        %v3641 = vsel %vm272, %v3578, 0
        %v3644 = vsel %vm272, %v3579, 0
        %v3647 = vsel %vm272, %v3580, 0
        %v3650 = vsel %vm272, %v3581, 0
        %v3653 = vsel %vm272, %v3582, 0
        %v3656 = vsel %vm272, %v3583, 0
        %v3659 = vsel %vm272, %v3584, 0
        %v3662 = vsel %vm272, %v3585, 0
        %v3665 = vsel %vm272, %v3586, 0
        %v3668 = vsel %vm272, %v3587, 0
        %v3671 = vsel %vm272, %v3588, 0
        %v3674 = vsel %vm272, %v3589, 0
        %v3677 = vsel %vm272, %v3590, 0
        %v3680 = vsel %vm272, %v3591, 0
        %v3683 = vsel %vm272, %v3592, 0
        %v3686 = vsel %vm272, %v3593, 0
        %v3689 = vsel %vm272, %v3594, 0
        %v3692 = vsel %vm272, %v3595, 0
        %v3695 = vsel %vm272, %v3596, 0
        %v3698 = vsel %vm272, %v3597, 0
        %v3701 = vsel %vm272, %v3598, 0
        %v3704 = vsel %vm272, %v3599, 0
        %v3707 = vsel %vm272, %v3600, 0
        %v3710 = vsel %vm272, %v3601, 0
        %v3713 = vsel %vm381, %v3603, 0
        %3715 = vmatprep.subr.mxu0 0.0
        %3716 = vmatpush1.msra.mxu0 %v3713
        %3717 = vmatprep.subr.mxu0 0.0
        %3718 = vmatpush1.msra.mxu0 0.0
        %3719 = vmatprep.subr.mxu0 0.0
        %3720 = vmatpush1.msra.mxu0 0.0
        %3721 = vmatprep.subr.mxu0 0.0
        %3722 = vmatpush1.msra.mxu0 0.0
        %3723 = vmatprep.subr.mxu0 0.0
        %3724 = vmatpush1.msra.mxu0 0.0
        %3725 = vmatprep.subr.mxu0 0.0
        %3726 = vmatpush1.msra.mxu0 0.0
        %3727 = vmatprep.subr.mxu0 0.0
        %3728 = vmatpush1.msra.mxu0 0.0
        %3729 = vmatprep.subr.mxu0 0.0
        %3730 = vmatpush1.msra.mxu0 0.0
        %3731 = vmatprep.subr.mxu0 0.0
        %3732 = vmatpush1.msra.mxu0 0.0
        %3733 = vmatprep.subr.mxu0 0.0
        %3734 = vmatpush1.msra.mxu0 0.0
        %3735 = vmatprep.subr.mxu0 0.0
        %3736 = vmatpush1.msra.mxu0 0.0
        %3737 = vmatprep.subr.mxu0 0.0
        %3738 = vmatpush1.msra.mxu0 0.0
        %3739 = vmatprep.subr.mxu0 0.0
        %3740 = vmatpush1.msra.mxu0 0.0
        %3741 = vmatprep.subr.mxu0 0.0
        %3742 = vmatpush1.msra.mxu0 0.0
        %3743 = vmatprep.subr.mxu0 0.0
        %3744 = vmatpush1.msra.mxu0 0.0
        %3745 = vmatprep.subr.mxu0 0.0
        %3746 = vmatpush1.msra.mxu0 0.0
        %3747 = vmatprep.subr.mxu0 0.0
        %3748 = vmatpush1.msra.mxu0 0.0
        %3749 = vmatprep.subr.mxu0 0.0
        %3750 = vmatpush1.msra.mxu0 0.0
        %3751 = vmatprep.subr.mxu0 0.0
        %3752 = vmatpush1.msra.mxu0 0.0
        %3753 = vmatprep.subr.mxu0 0.0
        %3754 = vmatpush1.msra.mxu0 0.0
        %3755 = vmatprep.subr.mxu0 0.0
        %3756 = vmatpush1.msra.mxu0 0.0
        %3757 = vmatprep.subr.mxu0 0.0
        %3758 = vmatpush1.msra.mxu0 0.0
        %3759 = vmatprep.subr.mxu0 0.0
        %3760 = vmatpush1.msra.mxu0 0.0
        %3761 = vmatprep.subr.mxu0 0.0
        %3762 = vmatpush1.msra.mxu0 0.0
        %3763 = vmatprep.subr.mxu0 0.0
        %3764 = vmatpush1.msra.mxu0 0.0
        %3765 = vmatprep.subr.mxu0 0.0
        %3766 = vmatpush1.msra.mxu0 0.0
        %3767 = vmatprep.subr.mxu0 0.0
        %3768 = vmatpush1.msra.mxu0 0.0
        %3769 = vmatprep.subr.mxu0 0.0
        %3770 = vmatpush1.msra.mxu0 0.0
        %3771 = vmatprep.subr.mxu0 0.0
        %3772 = vmatpush1.msra.mxu0 0.0
        %3773 = vmatprep.subr.mxu0 0.0
        %3774 = vmatpush1.msra.mxu0 0.0
        %3775 = vmatprep.subr.mxu0 0.0
        %3776 = vmatpush1.msra.mxu0 0.0
        %3777 = vmatprep.subr.mxu0 0.0
        %3778 = vmatpush1.msra.mxu0 0.0
        %3779 = vmatprep.mubr.f32.mxu0 0.0
        %3780 = vmatmul.mubr.f32.gmra.mrb[0].mxu0 %v3605
        %v3781 = vpop.f32.mrb[0].mxu0
        %v3782 = vadd.f32 0.0, %v3781
        %v3783 = vpop.f32.mrb[0].mxu0
        %3784 = vmatprep.mubr.f32.mxu0 0.0
        %3785 = vmatmul.mubr.f32.gmra.mrb[0].mxu0 %v3608
        %v3786 = vpop.f32.mrb[0].mxu0
        %v3787 = vadd.f32 0.0, %v3786
        %v3788 = vpop.f32.mrb[0].mxu0
        %3789 = vmatprep.mubr.f32.mxu0 0.0
        %3790 = vmatmul.mubr.f32.gmra.mrb[0].mxu0 %v3611
        %v3791 = vpop.f32.mrb[0].mxu0
        %v3792 = vadd.f32 0.0, %v3791
        %v3793 = vpop.f32.mrb[0].mxu0
        %3794 = vmatprep.mubr.f32.mxu0 0.0
        %3795 = vmatmul.mubr.f32.gmra.mrb[0].mxu0 %v3614
        %v3796 = vpop.f32.mrb[0].mxu0
        %v3797 = vadd.f32 0.0, %v3796
        %v3798 = vpop.f32.mrb[0].mxu0
        %3799 = vmatprep.mubr.f32.mxu0 0.0
        %3800 = vmatmul.mubr.f32.gmra.mrb[0].mxu0 %v3617
        %v3801 = vpop.f32.mrb[0].mxu0
        %v3802 = vadd.f32 0.0, %v3801
        %v3803 = vpop.f32.mrb[0].mxu0
        %3804 = vmatprep.mubr.f32.mxu0 0.0
        %3805 = vmatmul.mubr.f32.gmra.mrb[0].mxu0 %v3620
        %v3806 = vpop.f32.mrb[0].mxu0
        %v3807 = vadd.f32 0.0, %v3806
        %v3808 = vpop.f32.mrb[0].mxu0
        %3809 = vmatprep.mubr.f32.mxu0 0.0
        %3810 = vmatmul.mubr.f32.gmra.mrb[0].mxu0 %v3623
        %v3811 = vpop.f32.mrb[0].mxu0
        %v3812 = vadd.f32 0.0, %v3811
        %v3813 = vpop.f32.mrb[0].mxu0
        %3814 = vmatprep.mubr.f32.mxu0 0.0
        %3815 = vmatmul.mubr.f32.gmra.mrb[0].mxu0 %v3626
        %v3816 = vpop.f32.mrb[0].mxu0
        %v3817 = vadd.f32 0.0, %v3816
        %v3818 = vpop.f32.mrb[0].mxu0
        %3819 = vmatprep.mubr.f32.mxu0 0.0
        %3820 = vmatmul.mubr.f32.gmra.mrb[0].mxu0 %v3629
        %v3821 = vpop.f32.mrb[0].mxu0
        %v3822 = vadd.f32 0.0, %v3821
        %v3823 = vpop.f32.mrb[0].mxu0
        %3824 = vmatprep.mubr.f32.mxu0 0.0
        %3825 = vmatmul.mubr.f32.gmra.mrb[0].mxu0 %v3632
        %v3826 = vpop.f32.mrb[0].mxu0
        %v3827 = vadd.f32 0.0, %v3826
        %v3828 = vpop.f32.mrb[0].mxu0
        %3829 = vmatprep.mubr.f32.mxu0 0.0
        %3830 = vmatmul.mubr.f32.gmra.mrb[0].mxu0 %v3635
        %v3831 = vpop.f32.mrb[0].mxu0
        %v3832 = vadd.f32 0.0, %v3831
        %v3833 = vpop.f32.mrb[0].mxu0
        %3834 = vmatprep.mubr.f32.mxu0 0.0
        %3835 = vmatmul.mubr.f32.gmra.mrb[0].mxu0 %v3638
        %v3836 = vpop.f32.mrb[0].mxu0
        %v3837 = vadd.f32 0.0, %v3836
        %v3838 = vpop.f32.mrb[0].mxu0
        %3839 = vmatprep.mubr.f32.mxu0 0.0
        %3840 = vmatmul.mubr.f32.gmra.mrb[0].mxu0 %v3641
        %v3841 = vpop.f32.mrb[0].mxu0
        %v3842 = vadd.f32 0.0, %v3841
        %v3843 = vpop.f32.mrb[0].mxu0
        %3844 = vmatprep.mubr.f32.mxu0 0.0
        %3845 = vmatmul.mubr.f32.gmra.mrb[0].mxu0 %v3644
        %v3846 = vpop.f32.mrb[0].mxu0
        %v3847 = vadd.f32 0.0, %v3846
        %v3848 = vpop.f32.mrb[0].mxu0
        %3849 = vmatprep.mubr.f32.mxu0 0.0
        %3850 = vmatmul.mubr.f32.gmra.mrb[0].mxu0 %v3647
        %v3851 = vpop.f32.mrb[0].mxu0
        %v3852 = vadd.f32 0.0, %v3851
        %v3853 = vpop.f32.mrb[0].mxu0
        %3854 = vmatprep.mubr.f32.mxu0 0.0
        %3855 = vmatmul.mubr.f32.gmra.mrb[0].mxu0 %v3650
        %v3856 = vpop.f32.mrb[0].mxu0
        %v3857 = vadd.f32 0.0, %v3856
        %v3858 = vpop.f32.mrb[0].mxu0
        %3859 = vmatprep.mubr.f32.mxu0 0.0
        %3860 = vmatmul.mubr.f32.gmra.mrb[0].mxu0 %v3653
        %v3861 = vpop.f32.mrb[0].mxu0
        %v3862 = vadd.f32 0.0, %v3861
        %v3863 = vpop.f32.mrb[0].mxu0
        %3864 = vmatprep.mubr.f32.mxu0 0.0
        %3865 = vmatmul.mubr.f32.gmra.mrb[0].mxu0 %v3656
        %v3866 = vpop.f32.mrb[0].mxu0
        %v3867 = vadd.f32 0.0, %v3866
        %v3868 = vpop.f32.mrb[0].mxu0
        %3869 = vmatprep.mubr.f32.mxu0 0.0
        %3870 = vmatmul.mubr.f32.gmra.mrb[0].mxu0 %v3659
        %v3871 = vpop.f32.mrb[0].mxu0
        %v3872 = vadd.f32 0.0, %v3871
        %v3873 = vpop.f32.mrb[0].mxu0
        %3874 = vmatprep.mubr.f32.mxu0 0.0
        %3875 = vmatmul.mubr.f32.gmra.mrb[0].mxu0 %v3662
        %v3876 = vpop.f32.mrb[0].mxu0
        %v3877 = vadd.f32 0.0, %v3876
        %v3878 = vpop.f32.mrb[0].mxu0
        %3879 = vmatprep.mubr.f32.mxu0 0.0
        %3880 = vmatmul.mubr.f32.gmra.mrb[0].mxu0 %v3665
        %v3881 = vpop.f32.mrb[0].mxu0
        %v3882 = vadd.f32 0.0, %v3881
        %v3883 = vpop.f32.mrb[0].mxu0
        %3884 = vmatprep.mubr.f32.mxu0 0.0
        %3885 = vmatmul.mubr.f32.gmra.mrb[0].mxu0 %v3668
        %v3886 = vpop.f32.mrb[0].mxu0
        %v3887 = vadd.f32 0.0, %v3886
        %v3888 = vpop.f32.mrb[0].mxu0
        %3889 = vmatprep.mubr.f32.mxu0 0.0
        %3890 = vmatmul.mubr.f32.gmra.mrb[0].mxu0 %v3671
        %v3891 = vpop.f32.mrb[0].mxu0
        %v3892 = vadd.f32 0.0, %v3891
        %v3893 = vpop.f32.mrb[0].mxu0
        %3894 = vmatprep.mubr.f32.mxu0 0.0
        %3895 = vmatmul.mubr.f32.gmra.mrb[0].mxu0 %v3674
        %v3896 = vpop.f32.mrb[0].mxu0
        %v3897 = vadd.f32 0.0, %v3896
        %v3898 = vpop.f32.mrb[0].mxu0
        %3899 = vmatprep.mubr.f32.mxu0 0.0
        %3900 = vmatmul.mubr.f32.gmra.mrb[0].mxu0 %v3677
        %v3901 = vpop.f32.mrb[0].mxu0
        %v3902 = vadd.f32 0.0, %v3901
        %v3903 = vpop.f32.mrb[0].mxu0
        %3904 = vmatprep.mubr.f32.mxu0 0.0
        %3905 = vmatmul.mubr.f32.gmra.mrb[0].mxu0 %v3680
        %v3906 = vpop.f32.mrb[0].mxu0
        %v3907 = vadd.f32 0.0, %v3906
        %v3908 = vpop.f32.mrb[0].mxu0
        %3909 = vmatprep.mubr.f32.mxu0 0.0
        %3910 = vmatmul.mubr.f32.gmra.mrb[0].mxu0 %v3683
        %v3911 = vpop.f32.mrb[0].mxu0
        %v3912 = vadd.f32 0.0, %v3911
        %v3913 = vpop.f32.mrb[0].mxu0
        %3914 = vmatprep.mubr.f32.mxu0 0.0
        %3915 = vmatmul.mubr.f32.gmra.mrb[0].mxu0 %v3686
        %v3916 = vpop.f32.mrb[0].mxu0
        %v3917 = vadd.f32 0.0, %v3916
        %v3918 = vpop.f32.mrb[0].mxu0
        %3919 = vmatprep.mubr.f32.mxu0 0.0
        %3920 = vmatmul.mubr.f32.gmra.mrb[0].mxu0 %v3689
        %v3921 = vpop.f32.mrb[0].mxu0
        %v3922 = vadd.f32 0.0, %v3921
        %v3923 = vpop.f32.mrb[0].mxu0
        %3924 = vmatprep.mubr.f32.mxu0 0.0
        %3925 = vmatmul.mubr.f32.gmra.mrb[0].mxu0 %v3692
        %v3926 = vpop.f32.mrb[0].mxu0
        %v3927 = vadd.f32 0.0, %v3926
        %v3928 = vpop.f32.mrb[0].mxu0
        %3929 = vmatprep.mubr.f32.mxu0 0.0
        %3930 = vmatmul.mubr.f32.gmra.mrb[0].mxu0 %v3695
        %v3931 = vpop.f32.mrb[0].mxu0
        %v3932 = vadd.f32 0.0, %v3931
        %v3933 = vpop.f32.mrb[0].mxu0
        %3934 = vmatprep.mubr.f32.mxu0 0.0
        %3935 = vmatmul.mubr.f32.gmra.mrb[0].mxu0 %v3698
        %v3936 = vpop.f32.mrb[0].mxu0
        %v3937 = vadd.f32 0.0, %v3936
        %v3938 = vpop.f32.mrb[0].mxu0
        %3939 = vmatprep.mubr.f32.mxu0 0.0
        %3940 = vmatmul.mubr.f32.gmra.mrb[0].mxu0 %v3701
        %v3941 = vpop.f32.mrb[0].mxu0
        %v3942 = vadd.f32 0.0, %v3941
        %v3943 = vpop.f32.mrb[0].mxu0
        %3944 = vmatprep.mubr.f32.mxu0 0.0
        %3945 = vmatmul.mubr.f32.gmra.mrb[0].mxu0 %v3704
        %v3946 = vpop.f32.mrb[0].mxu0
        %v3947 = vadd.f32 0.0, %v3946
        %v3948 = vpop.f32.mrb[0].mxu0
        %3949 = vmatprep.mubr.f32.mxu0 0.0
        %3950 = vmatmul.mubr.f32.gmra.mrb[0].mxu0 %v3707
        %v3951 = vpop.f32.mrb[0].mxu0
        %v3952 = vadd.f32 0.0, %v3951
        %v3953 = vpop.f32.mrb[0].mxu0
        %3954 = vmatprep.mubr.f32.mxu0 0.0
        %3955 = vmatmul.mubr.f32.gmra.mrb[0].mxu0 %v3710
        %v3956 = vpop.f32.mrb[0].mxu0
        %v3957 = vadd.f32 0.0, %v3956
        %v3958 = vpop.f32.mrb[0].mxu0
        %3959 = vdwg.mxu0
        %v3960 = vadd.f32 %v3530, %v3782
        %v3961 = vadd.f32 %v3531, %v3787
        %v3962 = vadd.f32 %v3532, %v3792
        %v3963 = vadd.f32 %v3533, %v3797
        %v3964 = vadd.f32 %v3534, %v3802
        %v3965 = vadd.f32 %v3535, %v3807
        %v3966 = vadd.f32 %v3536, %v3812
        %v3967 = vadd.f32 %v3537, %v3817
        %v3968 = vadd.f32 %v3538, %v3822
        %v3969 = vadd.f32 %v3539, %v3827
        %v3970 = vadd.f32 %v3540, %v3832
        %v3971 = vadd.f32 %v3541, %v3837
        %v3972 = vadd.f32 %v3542, %v3842
        %v3973 = vadd.f32 %v3543, %v3847
        %v3974 = vadd.f32 %v3544, %v3852
        %v3975 = vadd.f32 %v3545, %v3857
        %v3976 = vadd.f32 %v3546, %v3862
        %v3977 = vadd.f32 %v3547, %v3867
        %v3978 = vadd.f32 %v3548, %v3872
        %v3979 = vadd.f32 %v3549, %v3877
        %v3980 = vadd.f32 %v3550, %v3882
        %v3981 = vadd.f32 %v3551, %v3887
        %v3982 = vadd.f32 %v3552, %v3892
        %v3983 = vadd.f32 %v3553, %v3897
        %v3984 = vadd.f32 %v3554, %v3902
        %v3985 = vadd.f32 %v3555, %v3907
        %v3986 = vadd.f32 %v3556, %v3912
        %v3987 = vadd.f32 %v3557, %v3917
        %v3988 = vadd.f32 %v3558, %v3922
        %v3989 = vadd.f32 %v3559, %v3927
        %v3990 = vadd.f32 %v3560, %v3932
        %v3991 = vadd.f32 %v3561, %v3937
        %v3992 = vadd.f32 %v3562, %v3942
        %v3993 = vadd.f32 %v3563, %v3947
        %v3994 = vadd.f32 %v3564, %v3952
        %v3995 = vadd.f32 %v3565, %v3957
        %v3996 = vld [vmem:[%s2] sm:$0x1]
        %v3998 = vlaneseq
        %v3999 = vshrl.u32 %v3998, 7
        %v4000 = vsub.s32 0, %v3999
        %v4001 = vrot.slane %v3996, %v4000
        %v4003 = vadd.f32 %v3960, %v4001
        %v4004 = vadd.f32 %v3961, %v4001
        %v4005 = vadd.f32 %v3962, %v4001
        %v4006 = vadd.f32 %v3963, %v4001
        %v4007 = vadd.f32 %v3964, %v4001
        %v4008 = vadd.f32 %v3965, %v4001
        %v4009 = vadd.f32 %v3966, %v4001
        %v4010 = vadd.f32 %v3967, %v4001
        %v4011 = vadd.f32 %v3968, %v4001
        %v4012 = vadd.f32 %v3969, %v4001
        %v4013 = vadd.f32 %v3970, %v4001
        %v4014 = vadd.f32 %v3971, %v4001
        %v4015 = vadd.f32 %v3972, %v4001
        %v4016 = vadd.f32 %v3973, %v4001
        %v4017 = vadd.f32 %v3974, %v4001
        %v4018 = vadd.f32 %v3975, %v4001
        %v4019 = vadd.f32 %v3976, %v4001
        %v4020 = vadd.f32 %v3977, %v4001
        %v4021 = vadd.f32 %v3978, %v4001
        %v4022 = vadd.f32 %v3979, %v4001
        %v4023 = vadd.f32 %v3980, %v4001
        %v4024 = vadd.f32 %v3981, %v4001
        %v4025 = vadd.f32 %v3982, %v4001
        %v4026 = vadd.f32 %v3983, %v4001
        %v4027 = vadd.f32 %v3984, %v4001
        %v4028 = vadd.f32 %v3985, %v4001
        %v4029 = vadd.f32 %v3986, %v4001
        %v4030 = vadd.f32 %v3987, %v4001
        %v4031 = vadd.f32 %v3988, %v4001
        %v4032 = vadd.f32 %v3989, %v4001
        %v4033 = vadd.f32 %v3990, %v4001
        %v4034 = vadd.f32 %v3991, %v4001
        %v4035 = vadd.f32 %v3992, %v4001
        %v4036 = vadd.f32 %v3993, %v4001
        %v4037 = vadd.f32 %v3994, %v4001
        %v4038 = vadd.f32 %v3995, %v4001
        %vm4039 = vcmp.ge.f32.partialorder %v4003, 0.0
        %vm4040 = vcmp.ge.f32.partialorder %v4004, 0.0
        %vm4041 = vcmp.ge.f32.partialorder %v4005, 0.0
        %vm4042 = vcmp.ge.f32.partialorder %v4006, 0.0
        %vm4043 = vcmp.ge.f32.partialorder %v4007, 0.0
        %vm4044 = vcmp.ge.f32.partialorder %v4008, 0.0
        %vm4045 = vcmp.ge.f32.partialorder %v4009, 0.0
        %vm4046 = vcmp.ge.f32.partialorder %v4010, 0.0
        %vm4047 = vcmp.ge.f32.partialorder %v4011, 0.0
        %vm4048 = vcmp.ge.f32.partialorder %v4012, 0.0
        %vm4049 = vcmp.ge.f32.partialorder %v4013, 0.0
        %vm4050 = vcmp.ge.f32.partialorder %v4014, 0.0
        %vm4051 = vcmp.ge.f32.partialorder %v4015, 0.0
        %vm4052 = vcmp.ge.f32.partialorder %v4016, 0.0
        %vm4053 = vcmp.ge.f32.partialorder %v4017, 0.0
        %vm4054 = vcmp.ge.f32.partialorder %v4018, 0.0
        %vm4055 = vcmp.ge.f32.partialorder %v4019, 0.0
        %vm4056 = vcmp.ge.f32.partialorder %v4020, 0.0
        %vm4057 = vcmp.ge.f32.partialorder %v4021, 0.0
        %vm4058 = vcmp.ge.f32.partialorder %v4022, 0.0
        %vm4059 = vcmp.ge.f32.partialorder %v4023, 0.0
        %vm4060 = vcmp.ge.f32.partialorder %v4024, 0.0
        %vm4061 = vcmp.ge.f32.partialorder %v4025, 0.0
        %vm4062 = vcmp.ge.f32.partialorder %v4026, 0.0
        %vm4063 = vcmp.ge.f32.partialorder %v4027, 0.0
        %vm4064 = vcmp.ge.f32.partialorder %v4028, 0.0
        %vm4065 = vcmp.ge.f32.partialorder %v4029, 0.0
        %vm4066 = vcmp.ge.f32.partialorder %v4030, 0.0
        %vm4067 = vcmp.ge.f32.partialorder %v4031, 0.0
        %vm4068 = vcmp.ge.f32.partialorder %v4032, 0.0
        %vm4069 = vcmp.ge.f32.partialorder %v4033, 0.0
        %vm4070 = vcmp.ge.f32.partialorder %v4034, 0.0
        %vm4071 = vcmp.ge.f32.partialorder %v4035, 0.0
        %vm4072 = vcmp.ge.f32.partialorder %v4036, 0.0
        %vm4073 = vcmp.ge.f32.partialorder %v4037, 0.0
        %vm4074 = vcmp.ge.f32.partialorder %v4038, 0.0
        %v4075 = vmul.f32 %v4003, 0.2
        %v4076 = vmul.f32 %v4004, 0.2
        %v4077 = vmul.f32 %v4005, 0.2
        %v4078 = vmul.f32 %v4006, 0.2
        %v4079 = vmul.f32 %v4007, 0.2
        %v4080 = vmul.f32 %v4008, 0.2
        %v4081 = vmul.f32 %v4009, 0.2
        %v4082 = vmul.f32 %v4010, 0.2
        %v4083 = vmul.f32 %v4011, 0.2
        %v4084 = vmul.f32 %v4012, 0.2
        %v4085 = vmul.f32 %v4013, 0.2
        %v4086 = vmul.f32 %v4014, 0.2
        %v4087 = vmul.f32 %v4015, 0.2
        %v4088 = vmul.f32 %v4016, 0.2
        %v4089 = vmul.f32 %v4017, 0.2
        %v4090 = vmul.f32 %v4018, 0.2
        %v4091 = vmul.f32 %v4019, 0.2
        %v4092 = vmul.f32 %v4020, 0.2
        %v4093 = vmul.f32 %v4021, 0.2
        %v4094 = vmul.f32 %v4022, 0.2
        %v4095 = vmul.f32 %v4023, 0.2
        %v4096 = vmul.f32 %v4024, 0.2
        %v4097 = vmul.f32 %v4025, 0.2
        %v4098 = vmul.f32 %v4026, 0.2
        %v4099 = vmul.f32 %v4027, 0.2
        %v4100 = vmul.f32 %v4028, 0.2
        %v4101 = vmul.f32 %v4029, 0.2
        %v4102 = vmul.f32 %v4030, 0.2
        %v4103 = vmul.f32 %v4031, 0.2
        %v4104 = vmul.f32 %v4032, 0.2
        %v4105 = vmul.f32 %v4033, 0.2
        %v4106 = vmul.f32 %v4034, 0.2
        %v4107 = vmul.f32 %v4035, 0.2
        %v4108 = vmul.f32 %v4036, 0.2
        %v4109 = vmul.f32 %v4037, 0.2
        %v4110 = vmul.f32 %v4038, 0.2
        %v4111 = vsel %vm4039, %v4003, %v4075
        %v4112 = vsel %vm4040, %v4004, %v4076
        %v4113 = vsel %vm4041, %v4005, %v4077
        %v4114 = vsel %vm4042, %v4006, %v4078
        %v4115 = vsel %vm4043, %v4007, %v4079
        %v4116 = vsel %vm4044, %v4008, %v4080
        %v4117 = vsel %vm4045, %v4009, %v4081
        %v4118 = vsel %vm4046, %v4010, %v4082
        %v4119 = vsel %vm4047, %v4011, %v4083
        %v4120 = vsel %vm4048, %v4012, %v4084
        %v4121 = vsel %vm4049, %v4013, %v4085
        %v4122 = vsel %vm4050, %v4014, %v4086
        %v4123 = vsel %vm4051, %v4015, %v4087
        %v4124 = vsel %vm4052, %v4016, %v4088
        %v4125 = vsel %vm4053, %v4017, %v4089
        %v4126 = vsel %vm4054, %v4018, %v4090
        %v4127 = vsel %vm4055, %v4019, %v4091
        %v4128 = vsel %vm4056, %v4020, %v4092
        %v4129 = vsel %vm4057, %v4021, %v4093
        %v4130 = vsel %vm4058, %v4022, %v4094
        %v4131 = vsel %vm4059, %v4023, %v4095
        %v4132 = vsel %vm4060, %v4024, %v4096
        %v4133 = vsel %vm4061, %v4025, %v4097
        %v4134 = vsel %vm4062, %v4026, %v4098
        %v4135 = vsel %vm4063, %v4027, %v4099
        %v4136 = vsel %vm4064, %v4028, %v4100
        %v4137 = vsel %vm4065, %v4029, %v4101
        %v4138 = vsel %vm4066, %v4030, %v4102
        %v4139 = vsel %vm4067, %v4031, %v4103
        %v4140 = vsel %vm4068, %v4032, %v4104
        %v4141 = vsel %vm4069, %v4033, %v4105
        %v4142 = vsel %vm4070, %v4034, %v4106
        %v4143 = vsel %vm4071, %v4035, %v4107
        %v4144 = vsel %vm4072, %v4036, %v4108
        %v4145 = vsel %vm4073, %v4037, %v4109
        %v4146 = vsel %vm4074, %v4038, %v4110
        %4147 = vst [vmem:[%s187] sm:$0xff] %v4111
        %4148 = vst [vmem:[%s187 + $0x8] sm:$0xff] %v4112
        %4149 = vst [vmem:[%s187 + $0x10] sm:$0xff] %v4113
        %4150 = vst [vmem:[%s187 + $0x18] sm:$0xff] %v4114
        %4151 = vst [vmem:[%s187 + $0x20] sm:$0xff] %v4115
        %4152 = vst [vmem:[%s187 + $0x28] sm:$0xff] %v4116
        %4153 = vst [vmem:[%s187 + $0x30] sm:$0xff] %v4117
        %4154 = vst [vmem:[%s187 + $0x38] sm:$0xff] %v4118
        %4155 = vst [vmem:[%s187 + $0x40] sm:$0xff] %v4119
        %4156 = vst [vmem:[%s187 + $0x48] sm:$0xff] %v4120
        %4157 = vst [vmem:[%s187 + $0x50] sm:$0xff] %v4121
        %4158 = vst [vmem:[%s187 + $0x58] sm:$0xff] %v4122
        %4159 = vst [vmem:[%s187 + $0x60] sm:$0xff] %v4123
        %4160 = vst [vmem:[%s187 + $0x68] sm:$0xff] %v4124
        %4161 = vst [vmem:[%s187 + $0x70] sm:$0xff] %v4125
        %4162 = vst [vmem:[%s187 + $0x78] sm:$0xff] %v4126
        %4163 = vst [vmem:[%s187 + $0x80] sm:$0xff] %v4127
        %4164 = vst [vmem:[%s187 + $0x88] sm:$0xff] %v4128
        %4165 = vst [vmem:[%s187 + $0x90] sm:$0xff] %v4129
        %4166 = vst [vmem:[%s187 + $0x98] sm:$0xff] %v4130
        %4167 = vst [vmem:[%s187 + $0xa0] sm:$0xff] %v4131
        %4168 = vst [vmem:[%s187 + $0xa8] sm:$0xff] %v4132
        %4169 = vst [vmem:[%s187 + $0xb0] sm:$0xff] %v4133
        %4170 = vst [vmem:[%s187 + $0xb8] sm:$0xff] %v4134
        %4171 = vst [vmem:[%s187 + $0xc0] sm:$0xff] %v4135
        %4172 = vst [vmem:[%s187 + $0xc8] sm:$0xff] %v4136
        %4173 = vst [vmem:[%s187 + $0xd0] sm:$0xff] %v4137
        %4174 = vst [vmem:[%s187 + $0xd8] sm:$0xff] %v4138
        %4175 = vst [vmem:[%s187 + $0xe0] sm:$0xff] %v4139
        %4176 = vst [vmem:[%s187 + $0xe8] sm:$0xff] %v4140
        %4177 = vst [vmem:[%s187 + $0xf0] sm:$0xff] %v4141
        %4178 = vst [vmem:[%s187 + $0xf8] sm:$0xff] %v4142
        %4179 = vst [vmem:[%s187 + $0x100] sm:$0xff] %v4143
        %4180 = vst [vmem:[%s187 + $0x108] sm:$0xff] %v4144
        %4181 = vst [vmem:[%s187 + $0x110] sm:$0xff] %v4145
        %4182 = vst [vmem:[%s187 + $0x118] sm:$0xff] %v4146
        %s4183 = sand.u32 %s109, 1
        %s4184 = scalar_lea.sflag [#allocation3], %s4183
        %s4185 = sand.u32 %s109, 1
        %s4186 = smul.addr %s4185, 288
        %s4187 = scalar_lea.vmem [#allocation2], %s4186
        // Predicated region
        $region33: #{tpu_custom_call.1} parent=31 // pred_check
          %p4188 = pneg %p119
        $region34: #{tpu_custom_call.1} parent=31 // pred_check_branch
          %4190 = sbr.rel (%p4188) target = $region36
        $region35: #{tpu_custom_call.1} parent=31 // pred_region
          %s4192 = ssub.s32 4608, 4608
          %4193 = vsyncadd %s4184, %s4192
          %s4194 = smul.addr %s22, 36
          %s4195 = smul.addr %s21, 36
          %s4196 = sadd.s32 %s4194, %s4195
          %s4197 = smul.addr %s4196, 128
          %s4198 = scalar_lea.hbm %s3, %s4197
          %s4199 = sshll.u32 %s4187, 4
          %s4200 = int_to_ptr.vmem [resolvable:$true] %s4199
          %4205 = dma.vmem_to_hbm [thread:$0]  %s4200, 4608, %s4198, %s4184, 128, 128, 8
        $region36: #{tpu_custom_call.1} parent=31 // pred_fallthru
          _
      $region32: #{tpu_custom_call.1} parent=5 // pred_fallthru
        _
      %p4206 = scmp.le.s32.totalorder 2, %s12
      // Predicated region
      $region37: #{tpu_custom_call.1} parent=5 // pred_check
        %p4207 = pneg %p4206
      $region38: #{tpu_custom_call.1} parent=5 // pred_check_branch
        %4209 = sbr.rel (%p4207) target = $region40
      $region39: #{tpu_custom_call.1} parent=5 // pred_region
        %s4210 = ssub.s32 %s12, 2
        // Predicated region
        $region41: #{tpu_custom_call.1} parent=39 // pred_check
          %p4211 = pneg %p125
        $region42: #{tpu_custom_call.1} parent=39 // pred_check_branch
          %4213 = sbr.rel (%p4211) target = $region44
        $region43: #{tpu_custom_call.1} parent=39 // pred_region
          %s4214 = sand.u32 %s110, 1
          %s4215 = scalar_lea.sflag [#allocation3], %s4214
          %s4216 = sand.u32 %s110, 1
          %s4217 = smul.addr %s4216, 288
          %s4218 = scalar_lea.vmem [#allocation2], %s4217
          %4219 = dma.done %s4215, 4608
        $region44: #{tpu_custom_call.1} parent=39 // pred_fallthru
          _
      $region40: #{tpu_custom_call.1} parent=5 // pred_fallthru
        _
    $region6: #{tpu_custom_call.1} parent=1 // loop_footer
      %s16 = sadd.s32 1, %s12
    $region7: #{tpu_custom_call.1} parent=1 // loop_footer_branch
      %11 = sbr.rel target = $region3
    $region8: #{tpu_custom_call.1} parent=1 // loop_exit
      _
    %4220 = vsyncpa [#allocation3], 1
    %s4221 = scalar_lea.sflag [#allocation3], 1
    %4222 = vsyncpa %s4221, 1

</llo_original>
